<compile_context>
chip_gen: v7x
topology: tpu7x:2x2x1
jax: 0.10.0
libtpu: 0.0.40
codegen_flags: <defaults>
</compile_context>

<pallas_src>
import functools

import jax
import jax.numpy as jnp
from jax.experimental import pallas as pl
from jax.experimental.pallas import tpu as pltpu


def _round_up(x, m):
    return (x + m - 1) // m * m


# --------------------------------------------------------------------------
# Exact GELU (erf-based, matches torch.nn.GELU() default)
# --------------------------------------------------------------------------
def _erf(x, poly_dtype):
    # Abramowitz & Stegun 7.1.26.  Polynomial evaluated in `poly_dtype`
    # (bf16 on v6e/v7x to halve VALU cycles, f32 elsewhere); exp / reciprocal
    # stay on the EUP slot (~free).
    a1, a2, a3, a4, a5 = (0.254829592, -0.284496736, 1.421413741,
                          -1.453152027, 1.061405429)
    p = 0.3275911
    ax = jnp.abs(x)
    t = pl.reciprocal(1.0 + p * ax, approx=True)          # EUP
    e = jnp.exp(-ax * ax)                                  # EUP
    td = t.astype(poly_dtype)
    poly = ((((a5 * td + a4) * td + a3) * td + a2) * td + a1) * td
    y = 1.0 - poly.astype(jnp.float32) * e
    return jnp.where(x < 0.0, -y, y)


def _gelu_exact(x, poly_dtype):
    return 0.5 * x * (1.0 + _erf(x * 0.7071067811865476, poly_dtype))


# --------------------------------------------------------------------------
# Fused MLP kernel: out = GELU(x @ W1 + b1) @ W2 + b2   (bf16 MXU, f32 acc)
# --------------------------------------------------------------------------
def _mlp_kernel(x_ref, w1_ref, b1_ref, w2_ref, b2_ref, o_ref, *,
                gelu_poly_dtype):
    # dense_1: cast the f32 row tile to bf16 in-kernel (VPU filler, hidden
    # under the MXU), accumulate in f32.
    x = x_ref[...].astype(jnp.bfloat16)
    h = jnp.dot(x, w1_ref[...], preferred_element_type=jnp.float32)
    h = _gelu_exact(h + b1_ref[...], gelu_poly_dtype)
    # dense_2
    out = jnp.dot(h.astype(jnp.bfloat16), w2_ref[...],
                  preferred_element_type=jnp.float32)
    out = out + b2_ref[...]
    # TODO(synk): training-mode Dropout(0.1) would mask + 1/(1-p)-scale here
    # via pltpu.prng_seed / pltpu.prng_random_bits; eval-mode identity used.
    o_ref[...] = out.astype(o_ref.dtype)


# --------------------------------------------------------------------------
# One-time weight prep (hoisted out of the hot path per perf review)
# --------------------------------------------------------------------------
def prepare_params(params):
    """Transpose + bf16-cast the weights once; reuse across every forward."""
    w1 = params["dense_1.weight"]            # (H, D) torch layout (out, in)
    w2 = params["dense_2.weight"]            # (D, H)
    H, D = w1.shape
    assert w2.shape == (D, H)
    return {
        "w1_t": jnp.transpose(w1).astype(jnp.bfloat16),   # (D, H)
        "w2_t": jnp.transpose(w2).astype(jnp.bfloat16),   # (H, D)
        "b1": params["dense_1.bias"].reshape(1, H).astype(jnp.float32),
        "b2": params["dense_2.bias"].reshape(1, D).astype(jnp.float32),
    }


def _gelu_poly_dtype_for_backend():
    # bf16 VPU exists on v6e / v7x -> bf16 polynomial halves GELU VALU cost.
    # v5e (and unknown chips) keep f32: no bf16 VPU, and GELU hides under the
    # slower 4x128^2 MXU there anyway.
    try:
        kind = jax.devices()[0].device_kind.lower()
    except Exception:
        return jnp.float32
    if ("v6" in kind) or ("v7" in kind) or ("7x" in kind):
        return jnp.bfloat16
    return jnp.float32


# --------------------------------------------------------------------------
# Wrapper
# --------------------------------------------------------------------------
def mlp_forward(x, prepared, *, tm_max=512, out_dtype=jnp.bfloat16,
                gelu_poly_dtype=None):
    """x: (B, S, D) float32; `prepared` comes from prepare_params()."""
    B, S, D = x.shape
    M = B * S
    w1_t, w2_t = prepared["w1_t"], prepared["w2_t"]
    b1, b2 = prepared["b1"], prepared["b2"]
    H = w1_t.shape[1]
    assert w1_t.shape == (D, H) and w2_t.shape == (H, D)
    assert D % 128 == 0 and H % 128 == 0, (D, H)   # lane-dense blocks

    if gelu_poly_dtype is None:
        gelu_poly_dtype = _gelu_poly_dtype_for_backend()

    # Row tile: multiple of 16 (bf16 output sublane quantum), >=2 grid blocks
    # whenever M allows (both v7x TensorCores get work), capped at tm_max to
    # bound VMEM and amortize per-step overhead.
    tm = min(tm_max, max(16, _round_up(pl.cdiv(M, 2), 16)))
    Mp = _round_up(M, tm)

    x2 = x.reshape(M, D)
    if Mp != M:                                  # pad only when actually needed
        x2 = jnp.pad(x2, ((0, Mp - M), (0, 0)))

    def run(single_buffer_residents):
        if single_buffer_residents:
            # Constant index_map => weights/biases stay resident; no need to
            # double-buffer them (halves resident VMEM footprint).
            def resident(shape):
                return pl.BlockSpec(shape, lambda i: (0, 0),
                                    pipeline_mode=pl.Buffered(1))
        else:
            def resident(shape):
                return pl.BlockSpec(shape, lambda i: (0, 0))

        kernel = functools.partial(_mlp_kernel,
                                   gelu_poly_dtype=gelu_poly_dtype)
        return pl.pallas_call(
            kernel,
            out_shape=jax.ShapeDtypeStruct((Mp, D), out_dtype),
            grid_spec=pltpu.PrefetchScalarGridSpec(
                num_scalar_prefetch=0,
                grid=(Mp // tm,),
                in_specs=[
                    pl.BlockSpec((tm, D), lambda i: (i, 0)),   # x row tile (f32)
                    resident((D, H)),                          # W1 (bf16)
                    resident((1, H)),                          # b1 (f32)
                    resident((H, D)),                          # W2 (bf16)
                    resident((1, D)),                          # b2 (f32)
                ],
                out_specs=pl.BlockSpec((tm, D), lambda i: (i, 0)),
            ),
            compiler_params=pltpu.CompilerParams(
                dimension_semantics=("parallel",),             # megacore rows
                vmem_limit_bytes=64 << 20,
            ),
        )(x2, w1_t, b1, w2_t, b2)

    # TODO(synk): for D >= ~1024 on v7x (64 MiB VMEM) add an H-chunk grid axis
    # ("arbitrary") + f32 accumulator scratch instead of fully-resident weights;
    # for decode-style tiny-M repeat calls, use cross-call weight residency.
    try:
        out = jax.block_until_ready(run(single_buffer_residents=True))
    except Exception:
        # pipeline_mode / pl.Buffered not supported on this jax build:
        # fall back to default double-buffered resident operands.
        out = jax.block_until_ready(run(single_buffer_residents=False))

    if Mp != M:
        out = out[:M]
    return out.reshape(B, S, D)


# --------------------------------------------------------------------------
# Params (PyTorch Linear default-style init) and pure-JAX reference
# --------------------------------------------------------------------------
def init_params(key, dim=256):
    h = 4 * dim
    k1, k2, k3, k4 = jax.random.split(key, 4)
    lim1 = 1.0 / (dim ** 0.5)
    lim2 = 1.0 / (h ** 0.5)
    return {
        "dense_1.weight": jax.random.uniform(k1, (h, dim), jnp.float32, -lim1, lim1),
        "dense_1.bias":   jax.random.uniform(k2, (h,),     jnp.float32, -lim1, lim1),
        "dense_2.weight": jax.random.uniform(k3, (dim, h), jnp.float32, -lim2, lim2),
        "dense_2.bias":   jax.random.uniform(k4, (dim,),   jnp.float32, -lim2, lim2),
    }


def reference_forward(x, params):
    h = jnp.einsum("bsd,hd->bsh", x, params["dense_1.weight"],
                   precision=jax.lax.Precision.HIGHEST) + params["dense_1.bias"]
    h = jax.nn.gelu(h, approximate=False)
    out = jnp.einsum("bsh,dh->bsd", h, params["dense_2.weight"],
                     precision=jax.lax.Precision.HIGHEST) + params["dense_2.bias"]
    return out   # Dropout is identity in eval mode


if __name__ == "__main__":
    key = jax.random.PRNGKey(0)
    kx, kp = jax.random.split(key)
    dim = 256                                              # module default
    x = jax.random.normal(kx, (2, 8, dim), jnp.float32)    # batch=2, seq=8
    params = init_params(kp, dim)
    prepared = jax.block_until_ready(prepare_params(params))   # one-time prep

    out = jax.block_until_ready(mlp_forward(x, prepared))
    assert out.shape == (2, 8, dim), out.shape
    out_f32 = out.astype(jnp.float32)
    assert bool(jnp.all(jnp.isfinite(out_f32)))

    ref = jax.block_until_ready(reference_forward(x, params))
    max_err = float(jnp.max(jnp.abs(out_f32 - ref)))
    assert jnp.allclose(out_f32, ref, rtol=5e-2, atol=5e-2), max_err

    print("KERNEL_OK")
</pallas_src>

<mosaic_0001>
module attributes {stable_mosaic.version = 11 : i64} {
  func.func @_mlp_kernel(%arg0: i32, %arg1: memref<16x256xf32, #tpu.memory_space<vmem>>, %arg2: memref<256x1024xbf16, #tpu.memory_space<vmem>>, %arg3: memref<1x1024xf32, #tpu.memory_space<vmem>>, %arg4: memref<1024x256xbf16, #tpu.memory_space<vmem>>, %arg5: memref<1x256xf32, #tpu.memory_space<vmem>>, %arg6: memref<16x256xbf16, #tpu.memory_space<vmem>>) attributes {dimension_semantics = [#tpu.dimension_semantics<parallel>], iteration_bounds = array<i64: 1>, scalar_prefetch = 0 : i64, scratch_operands = 0 : i64, tpu.core_type = #tpu.core_type<tc>, window_params = [{transform_indices = @transform_0, window_bounds = array<i64: 16, 256>}, {pipeline_mode = #tpu.pipeline_mode<synchronous>, transform_indices = @transform_1, window_bounds = array<i64: 256, 1024>}, {pipeline_mode = #tpu.pipeline_mode<synchronous>, transform_indices = @transform_2, window_bounds = array<i64: 1, 1024>}, {pipeline_mode = #tpu.pipeline_mode<synchronous>, transform_indices = @transform_3, window_bounds = array<i64: 1024, 256>}, {pipeline_mode = #tpu.pipeline_mode<synchronous>, transform_indices = @transform_4, window_bounds = array<i64: 1, 256>}, {transform_indices = @transform_5, window_bounds = array<i64: 16, 256>}]} {
    %c0 = arith.constant 0 : index
    %c0_0 = arith.constant 0 : index
    %0 = vector.load %arg1[%c0, %c0_0] : memref<16x256xf32, #tpu.memory_space<vmem>>, vector<16x256xf32>
    %1 = arith.truncf %0 : vector<16x256xf32> to vector<16x256xbf16>
    %c0_1 = arith.constant 0 : index
    %c0_2 = arith.constant 0 : index
    %2 = vector.load %arg2[%c0_1, %c0_2] : memref<256x1024xbf16, #tpu.memory_space<vmem>>, vector<256x1024xbf16>
    %cst = arith.constant dense<0.000000e+00> : vector<16x1024xf32>
    %3 = tpu.matmul %1, %2, %cst {dimension_numbers = #tpu.dot_dimension_numbers<[1], [0], [0], [1], [0, 0, 1, 1], [], []>} : vector<16x256xbf16>, vector<256x1024xbf16>, vector<16x1024xf32> -> vector<16x1024xf32>
    %c0_3 = arith.constant 0 : index
    %c0_4 = arith.constant 0 : index
    %4 = vector.load %arg3[%c0_3, %c0_4] : memref<1x1024xf32, #tpu.memory_space<vmem>>, vector<1x1024xf32>
    %5 = vector.broadcast %4 : vector<1x1024xf32> to vector<16x1024xf32>
    %6 = arith.addf %3, %5 : vector<16x1024xf32>
    %cst_5 = arith.constant 5.000000e-01 : f32
    %7 = vector.broadcast %cst_5 : f32 to vector<16x1024xf32>
    %8 = arith.mulf %7, %6 : vector<16x1024xf32>
    %cst_6 = arith.constant 0.707106769 : f32
    %9 = vector.broadcast %cst_6 : f32 to vector<16x1024xf32>
    %10 = arith.mulf %6, %9 : vector<16x1024xf32>
    %11 = math.absf %10 : vector<16x1024xf32>
    %cst_7 = arith.constant 0.327591091 : f32
    %12 = vector.broadcast %cst_7 : f32 to vector<16x1024xf32>
    %13 = arith.mulf %12, %11 : vector<16x1024xf32>
    %cst_8 = arith.constant 1.000000e+00 : f32
    %14 = vector.broadcast %cst_8 : f32 to vector<16x1024xf32>
    %15 = arith.addf %14, %13 : vector<16x1024xf32>
    %16 = tpu.reciprocal %15 {approx = true} : vector<16x1024xf32> -> vector<16x1024xf32>
    %cst_9 = arith.constant 0.000000e+00 : f32
    %17 = vector.broadcast %cst_9 : f32 to vector<16x1024xf32>
    %18 = arith.subf %17, %11 : vector<16x1024xf32>
    %19 = arith.mulf %18, %11 : vector<16x1024xf32>
    %20 = math.exp %19 : vector<16x1024xf32>
    %cst_10 = arith.constant 1.06140542 : f32
    %21 = vector.broadcast %cst_10 : f32 to vector<16x1024xf32>
    %22 = arith.mulf %21, %16 : vector<16x1024xf32>
    %cst_11 = arith.constant -1.45315206 : f32
    %23 = vector.broadcast %cst_11 : f32 to vector<16x1024xf32>
    %24 = arith.addf %22, %23 : vector<16x1024xf32>
    %25 = arith.mulf %24, %16 : vector<16x1024xf32>
    %cst_12 = arith.constant 1.42141378 : f32
    %26 = vector.broadcast %cst_12 : f32 to vector<16x1024xf32>
    %27 = arith.addf %25, %26 : vector<16x1024xf32>
    %28 = arith.mulf %27, %16 : vector<16x1024xf32>
    %cst_13 = arith.constant -0.284496725 : f32
    %29 = vector.broadcast %cst_13 : f32 to vector<16x1024xf32>
    %30 = arith.addf %28, %29 : vector<16x1024xf32>
    %31 = arith.mulf %30, %16 : vector<16x1024xf32>
    %cst_14 = arith.constant 0.254829586 : f32
    %32 = vector.broadcast %cst_14 : f32 to vector<16x1024xf32>
    %33 = arith.addf %31, %32 : vector<16x1024xf32>
    %34 = arith.mulf %33, %16 : vector<16x1024xf32>
    %35 = arith.mulf %34, %20 : vector<16x1024xf32>
    %cst_15 = arith.constant 1.000000e+00 : f32
    %36 = vector.broadcast %cst_15 : f32 to vector<16x1024xf32>
    %37 = arith.subf %36, %35 : vector<16x1024xf32>
    %cst_16 = arith.constant 0.000000e+00 : f32
    %38 = vector.broadcast %cst_16 : f32 to vector<16x1024xf32>
    %39 = arith.cmpf olt, %10, %38 : vector<16x1024xf32>
    %cst_17 = arith.constant 0.000000e+00 : f32
    %40 = vector.broadcast %cst_17 : f32 to vector<16x1024xf32>
    %41 = arith.subf %40, %37 : vector<16x1024xf32>
    %42 = arith.select %39, %41, %37 : vector<16x1024xi1>, vector<16x1024xf32>
    %cst_18 = arith.constant 1.000000e+00 : f32
    %43 = vector.broadcast %cst_18 : f32 to vector<16x1024xf32>
    %44 = arith.addf %43, %42 : vector<16x1024xf32>
    %45 = arith.mulf %8, %44 : vector<16x1024xf32>
    %46 = arith.truncf %45 : vector<16x1024xf32> to vector<16x1024xbf16>
    %c0_19 = arith.constant 0 : index
    %c0_20 = arith.constant 0 : index
    %47 = vector.load %arg4[%c0_19, %c0_20] : memref<1024x256xbf16, #tpu.memory_space<vmem>>, vector<1024x256xbf16>
    %cst_21 = arith.constant dense<0.000000e+00> : vector<16x256xf32>
    %48 = tpu.matmul %46, %47, %cst_21 {dimension_numbers = #tpu.dot_dimension_numbers<[1], [0], [0], [1], [0, 0, 1, 1], [], []>} : vector<16x1024xbf16>, vector<1024x256xbf16>, vector<16x256xf32> -> vector<16x256xf32>
    %c0_22 = arith.constant 0 : index
    %c0_23 = arith.constant 0 : index
    %49 = vector.load %arg5[%c0_22, %c0_23] : memref<1x256xf32, #tpu.memory_space<vmem>>, vector<1x256xf32>
    %50 = vector.broadcast %49 : vector<1x256xf32> to vector<16x256xf32>
    %51 = arith.addf %48, %50 : vector<16x256xf32>
    %52 = arith.truncf %51 : vector<16x256xf32> to vector<16x256xbf16>
    %c0_24 = arith.constant 0 : index
    %c0_25 = arith.constant 0 : index
    %53 = vector.load %arg6[%c0_24, %c0_25] : memref<16x256xbf16, #tpu.memory_space<vmem>>, vector<16x256xbf16>
    tpu.vector_store %arg6[%c0_24, %c0_25], %52 {strides = array<i32>} : memref<16x256xbf16, #tpu.memory_space<vmem>>, vector<16x256xbf16>,
    return
  }
  func.func @transform_0(%arg0: i32) -> (i32, i32) {
    %c0_i32 = arith.constant 0 : i32
    %c0_i32_0 = arith.constant 0 : i32
    return %arg0, %c0_i32 : i32, i32
  }
  func.func @transform_1(%arg0: i32) -> (i32, i32) {
    %c0_i32 = arith.constant 0 : i32
    %c0_i32_0 = arith.constant 0 : i32
    %c0_i32_1 = arith.constant 0 : i32
    return %c0_i32, %c0_i32_0 : i32, i32
  }
  func.func @transform_2(%arg0: i32) -> (i32, i32) {
    %c0_i32 = arith.constant 0 : i32
    %c0_i32_0 = arith.constant 0 : i32
    %c0_i32_1 = arith.constant 0 : i32
    return %c0_i32, %c0_i32_0 : i32, i32
  }
  func.func @transform_3(%arg0: i32) -> (i32, i32) {
    %c0_i32 = arith.constant 0 : i32
    %c0_i32_0 = arith.constant 0 : i32
    %c0_i32_1 = arith.constant 0 : i32
    return %c0_i32, %c0_i32_0 : i32, i32
  }
  func.func @transform_4(%arg0: i32) -> (i32, i32) {
    %c0_i32 = arith.constant 0 : i32
    %c0_i32_0 = arith.constant 0 : i32
    %c0_i32_1 = arith.constant 0 : i32
    return %c0_i32, %c0_i32_0 : i32, i32
  }
  func.func @transform_5(%arg0: i32) -> (i32, i32) {
    %c0_i32 = arith.constant 0 : i32
    %c0_i32_0 = arith.constant 0 : i32
    return %arg0, %c0_i32 : i32, i32
  }
}

module attributes {stable_mosaic.version = 11 : i64} {
  func.func @_mlp_kernel(%arg0: i32, %arg1: memref<16x256xf32, #tpu.memory_space<vmem>>, %arg2: memref<256x1024xbf16, #tpu.memory_space<vmem>>, %arg3: memref<1x1024xf32, #tpu.memory_space<vmem>>, %arg4: memref<1024x256xbf16, #tpu.memory_space<vmem>>, %arg5: memref<1x256xf32, #tpu.memory_space<vmem>>, %arg6: memref<16x256xbf16, #tpu.memory_space<vmem>>) attributes {dimension_semantics = [#tpu.dimension_semantics<parallel>], iteration_bounds = array<i64: 1>, scalar_prefetch = 0 : i64, scratch_operands = 0 : i64, tpu.core_type = #tpu.core_type<tc>, window_params = [{transform_indices = @transform_0, window_bounds = array<i64: 16, 256>}, {pipeline_mode = #tpu.pipeline_mode<synchronous>, transform_indices = @transform_1, window_bounds = array<i64: 256, 1024>}, {pipeline_mode = #tpu.pipeline_mode<synchronous>, transform_indices = @transform_2, window_bounds = array<i64: 1, 1024>}, {pipeline_mode = #tpu.pipeline_mode<synchronous>, transform_indices = @transform_3, window_bounds = array<i64: 1024, 256>}, {pipeline_mode = #tpu.pipeline_mode<synchronous>, transform_indices = @transform_4, window_bounds = array<i64: 1, 256>}, {transform_indices = @transform_5, window_bounds = array<i64: 16, 256>}]} {
    %c0 = arith.constant 0 : index
    %c0_0 = arith.constant 0 : index
    %0 = vector.load %arg1[%c0, %c0_0] : memref<16x256xf32, #tpu.memory_space<vmem>>, vector<16x256xf32>
    %1 = arith.truncf %0 : vector<16x256xf32> to vector<16x256xbf16>
    %c0_1 = arith.constant 0 : index
    %c0_2 = arith.constant 0 : index
    %2 = vector.load %arg2[%c0_1, %c0_2] : memref<256x1024xbf16, #tpu.memory_space<vmem>>, vector<256x1024xbf16>
    %cst = arith.constant dense<0.000000e+00> : vector<16x1024xf32>
    %3 = tpu.matmul %1, %2, %cst {dimension_numbers = #tpu.dot_dimension_numbers<[1], [0], [0], [1], [0, 0, 1, 1], [], []>} : vector<16x256xbf16>, vector<256x1024xbf16>, vector<16x1024xf32> -> vector<16x1024xf32>
    %c0_3 = arith.constant 0 : index
    %c0_4 = arith.constant 0 : index
    %4 = vector.load %arg3[%c0_3, %c0_4] : memref<1x1024xf32, #tpu.memory_space<vmem>>, vector<1x1024xf32>
    %5 = vector.broadcast %4 : vector<1x1024xf32> to vector<16x1024xf32>
    %6 = arith.addf %3, %5 : vector<16x1024xf32>
    %cst_5 = arith.constant 5.000000e-01 : f32
    %7 = vector.broadcast %cst_5 : f32 to vector<16x1024xf32>
    %8 = arith.mulf %7, %6 : vector<16x1024xf32>
    %cst_6 = arith.constant 0.707106769 : f32
    %9 = vector.broadcast %cst_6 : f32 to vector<16x1024xf32>
    %10 = arith.mulf %6, %9 : vector<16x1024xf32>
    %11 = math.absf %10 : vector<16x1024xf32>
    %cst_7 = arith.constant 0.327591091 : f32
    %12 = vector.broadcast %cst_7 : f32 to vector<16x1024xf32>
    %13 = arith.mulf %12, %11 : vector<16x1024xf32>
    %cst_8 = arith.constant 1.000000e+00 : f32
    %14 = vector.broadcast %cst_8 : f32 to vector<16x1024xf32>
    %15 = arith.addf %14, %13 : vector<16x1024xf32>
    %16 = tpu.reciprocal %15 {approx = true} : vector<16x1024xf32> -> vector<16x1024xf32>
    %cst_9 = arith.constant 0.000000e+00 : f32
    %17 = vector.broadcast %cst_9 : f32 to vector<16x1024xf32>
    %18 = arith.subf %17, %11 : vector<16x1024xf32>
    %19 = arith.mulf %18, %11 : vector<16x1024xf32>
    %20 = math.exp %19 : vector<16x1024xf32>
    %cst_10 = arith.constant 1.06140542 : f32
    %21 = vector.broadcast %cst_10 : f32 to vector<16x1024xf32>
    %22 = arith.mulf %21, %16 : vector<16x1024xf32>
    %cst_11 = arith.constant -1.45315206 : f32
    %23 = vector.broadcast %cst_11 : f32 to vector<16x1024xf32>
    %24 = arith.addf %22, %23 : vector<16x1024xf32>
    %25 = arith.mulf %24, %16 : vector<16x1024xf32>
    %cst_12 = arith.constant 1.42141378 : f32
    %26 = vector.broadcast %cst_12 : f32 to vector<16x1024xf32>
    %27 = arith.addf %25, %26 : vector<16x1024xf32>
    %28 = arith.mulf %27, %16 : vector<16x1024xf32>
    %cst_13 = arith.constant -0.284496725 : f32
    %29 = vector.broadcast %cst_13 : f32 to vector<16x1024xf32>
    %30 = arith.addf %28, %29 : vector<16x1024xf32>
    %31 = arith.mulf %30, %16 : vector<16x1024xf32>
    %cst_14 = arith.constant 0.254829586 : f32
    %32 = vector.broadcast %cst_14 : f32 to vector<16x1024xf32>
    %33 = arith.addf %31, %32 : vector<16x1024xf32>
    %34 = arith.mulf %33, %16 : vector<16x1024xf32>
    %35 = arith.mulf %34, %20 : vector<16x1024xf32>
    %cst_15 = arith.constant 1.000000e+00 : f32
    %36 = vector.broadcast %cst_15 : f32 to vector<16x1024xf32>
    %37 = arith.subf %36, %35 : vector<16x1024xf32>
    %cst_16 = arith.constant 0.000000e+00 : f32
    %38 = vector.broadcast %cst_16 : f32 to vector<16x1024xf32>
    %39 = arith.cmpf olt, %10, %38 : vector<16x1024xf32>
    %cst_17 = arith.constant 0.000000e+00 : f32
    %40 = vector.broadcast %cst_17 : f32 to vector<16x1024xf32>
    %41 = arith.subf %40, %37 : vector<16x1024xf32>
    %42 = arith.select %39, %41, %37 : vector<16x1024xi1>, vector<16x1024xf32>
    %cst_18 = arith.constant 1.000000e+00 : f32
    %43 = vector.broadcast %cst_18 : f32 to vector<16x1024xf32>
    %44 = arith.addf %43, %42 : vector<16x1024xf32>
    %45 = arith.mulf %8, %44 : vector<16x1024xf32>
    %46 = arith.truncf %45 : vector<16x1024xf32> to vector<16x1024xbf16>
    %c0_19 = arith.constant 0 : index
    %c0_20 = arith.constant 0 : index
    %47 = vector.load %arg4[%c0_19, %c0_20] : memref<1024x256xbf16, #tpu.memory_space<vmem>>, vector<1024x256xbf16>
    %cst_21 = arith.constant dense<0.000000e+00> : vector<16x256xf32>
    %48 = tpu.matmul %46, %47, %cst_21 {dimension_numbers = #tpu.dot_dimension_numbers<[1], [0], [0], [1], [0, 0, 1, 1], [], []>} : vector<16x1024xbf16>, vector<1024x256xbf16>, vector<16x256xf32> -> vector<16x256xf32>
    %c0_22 = arith.constant 0 : index
    %c0_23 = arith.constant 0 : index
    %49 = vector.load %arg5[%c0_22, %c0_23] : memref<1x256xf32, #tpu.memory_space<vmem>>, vector<1x256xf32>
    %50 = vector.broadcast %49 : vector<1x256xf32> to vector<16x256xf32>
    %51 = arith.addf %48, %50 : vector<16x256xf32>
    %52 = arith.truncf %51 : vector<16x256xf32> to vector<16x256xbf16>
    %c0_24 = arith.constant 0 : index
    %c0_25 = arith.constant 0 : index
    %53 = vector.load %arg6[%c0_24, %c0_25] : memref<16x256xbf16, #tpu.memory_space<vmem>>, vector<16x256xbf16>
    tpu.vector_store %arg6[%c0_24, %c0_25], %52 {strides = array<i32>} : memref<16x256xbf16, #tpu.memory_space<vmem>>, vector<16x256xbf16>,
    return
  }
  func.func @transform_0(%arg0: i32) -> (i32, i32) {
    %c0_i32 = arith.constant 0 : i32
    %c0_i32_0 = arith.constant 0 : i32
    return %arg0, %c0_i32 : i32, i32
  }
  func.func @transform_1(%arg0: i32) -> (i32, i32) {
    %c0_i32 = arith.constant 0 : i32
    %c0_i32_0 = arith.constant 0 : i32
    %c0_i32_1 = arith.constant 0 : i32
    return %c0_i32, %c0_i32_0 : i32, i32
  }
  func.func @transform_2(%arg0: i32) -> (i32, i32) {
    %c0_i32 = arith.constant 0 : i32
    %c0_i32_0 = arith.constant 0 : i32
    %c0_i32_1 = arith.constant 0 : i32
    return %c0_i32, %c0_i32_0 : i32, i32
  }
  func.func @transform_3(%arg0: i32) -> (i32, i32) {
    %c0_i32 = arith.constant 0 : i32
    %c0_i32_0 = arith.constant 0 : i32
    %c0_i32_1 = arith.constant 0 : i32
    return %c0_i32, %c0_i32_0 : i32, i32
  }
  func.func @transform_4(%arg0: i32) -> (i32, i32) {
    %c0_i32 = arith.constant 0 : i32
    %c0_i32_0 = arith.constant 0 : i32
    %c0_i32_1 = arith.constant 0 : i32
    return %c0_i32, %c0_i32_0 : i32, i32
  }
  func.func @transform_5(%arg0: i32) -> (i32, i32) {
    %c0_i32 = arith.constant 0 : i32
    %c0_i32_0 = arith.constant 0 : i32
    return %arg0, %c0_i32 : i32, i32
  }
}

</mosaic_0001>

<llo_original>
// kernel: tpu_custom_call.1
$region0: #{tpu_custom_call.1}
  #allocation0 [shape = 'u32[]', space=smem, size = 0x4, offset = 0x4, fixed_abs, tag = 'smem constant byte address 0x4 - core index']
  #allocation1 [shape = 'u32[144,128]{1,0:T(1,128)}', space=vmem, size = 0x12000, scoped, tag = 'internal scratch']
  %s0 = inlined_call_operand.hbm [shape: f32[16,256], index: 0, kind: input, shape index: {}]
  %s1 = inlined_call_operand.hbm [shape: bf16[256,1024], index: 1, kind: input, shape index: {}]
  %s2 = inlined_call_operand.hbm [shape: f32[1,1024], index: 2, kind: input, shape index: {}]
  %s3 = inlined_call_operand.hbm [shape: bf16[1024,256], index: 3, kind: input, shape index: {}]
  %s4 = inlined_call_operand.hbm [shape: f32[1,256], index: 4, kind: input, shape index: {}]
  %s5 = inlined_call_operand.hbm [shape: bf16[16,256], index: 5, kind: output, shape index: {}]
  %s6 = sld [smem:[#allocation0]]
  $region50: #{tpu_custom_call.1} parent=0
    _
  %s8 = ssub.s32 1, %s6
  %s9 = scalar_select 0, %s8, %s6
  $region1: #{tpu_custom_call.1} parent=0
    #allocation2 [shape = 'u8[16384]{0}', space=vmem, size = 0x4000, scoped, tag = 'input window, operand 0, single buffered']
    #allocation3 [shape = 's32[1]{0}', space=sflag, size = 0x4, scoped, tag = 'scoped memory for tpu_custom_call.1']
    #allocation4 [shape = 's32[1]{0}', space=sflag, size = 0x4, scoped, tag = 'scoped memory for tpu_custom_call.1']
    #allocation5 [shape = 'u8[524288]{0}', space=vmem, size = 0x80000, scoped, tag = 'input window, operand 1, single buffered']
    #allocation6 [shape = 's32[1]{0}', space=sflag, size = 0x4, scoped, tag = 'scoped memory for tpu_custom_call.1']
    #allocation7 [shape = 'u8[4096]{0}', space=vmem, size = 0x1000, scoped, tag = 'input window, operand 2, single buffered']
    #allocation8 [shape = 'u8[524288]{0}', space=vmem, size = 0x80000, scoped, tag = 'input window, operand 3, single buffered']
    #allocation9 [shape = 's32[1]{0}', space=sflag, size = 0x4, scoped, tag = 'scoped memory for tpu_custom_call.1']
    #allocation10 [shape = 'u8[1024]{0}', space=vmem, size = 0x400, scoped, tag = 'input window, operand 4, single buffered']
    #allocation11 [shape = 'u8[8192]{0}', space=vmem, size = 0x2000, scoped, tag = 'output window, operand 0, single buffered']
    %10 = vsyncpa [#allocation3], 0
    %11 = vsyncpa [#allocation6], 0
    %12 = vsyncpa [#allocation9], 0
    %13 = vsyncpa [#allocation4], 0
    // Predicated region
    $region2: #{tpu_custom_call.1} parent=1 // pred_check
      _
    $region3: #{tpu_custom_call.1} parent=1 // pred_check_branch
      %15 = sbr.rel (0) target = $region5
    $region4: #{tpu_custom_call.1} parent=1 // pred_region
      %s17 = ssub.s32 512, 512
      %18 = vsyncadd [#allocation3], %s17
      %s19 = sshll.u32 [#allocation2], 4
      %s20 = int_to_ptr.vmem [resolvable:$true] %s19
      %25 = dma.hbm_to_vmem [thread:$0]  %s0, 512, %s20, [#allocation3], 256, 256, 16
    $region5: #{tpu_custom_call.1} parent=1 // pred_fallthru
      _
    // Predicated region
    $region6: #{tpu_custom_call.1} parent=1 // pred_check
      _
    $region7: #{tpu_custom_call.1} parent=1 // pred_check_branch
      %27 = sbr.rel (0) target = $region9
    $region8: #{tpu_custom_call.1} parent=1 // pred_region
      %s29 = ssub.s32 16384, 16384
      %30 = vsyncadd [#allocation6], %s29
      %s31 = sshll.u32 [#allocation5], 4
      %s32 = int_to_ptr.vmem [resolvable:$true] %s31
      %37 = dma.hbm_to_vmem [thread:$0]  %s1, 16384, %s32, [#allocation6], 512, 512, 32
    $region9: #{tpu_custom_call.1} parent=1 // pred_fallthru
      _
    // Predicated region
    $region10: #{tpu_custom_call.1} parent=1 // pred_check
      _
    $region11: #{tpu_custom_call.1} parent=1 // pred_check_branch
      %39 = sbr.rel (0) target = $region13
    $region12: #{tpu_custom_call.1} parent=1 // pred_region
      %s41 = ssub.s32 128, 128
      %42 = vsyncadd [#allocation6], %s41
      %s44 = sshll.u32 [#allocation7], 4
      %s45 = int_to_ptr.vmem [resolvable:$true] %s44
      %47 = dma.hbm_to_vmem [thread:$0]  %s2, 128, %s45, [#allocation6]
    $region13: #{tpu_custom_call.1} parent=1 // pred_fallthru
      _
    // Predicated region
    $region14: #{tpu_custom_call.1} parent=1 // pred_check
      _
    $region15: #{tpu_custom_call.1} parent=1 // pred_check_branch
      %49 = sbr.rel (0) target = $region17
    $region16: #{tpu_custom_call.1} parent=1 // pred_region
      %s51 = ssub.s32 16384, 16384
      %52 = vsyncadd [#allocation9], %s51
      %s53 = sshll.u32 [#allocation8], 4
      %s54 = int_to_ptr.vmem [resolvable:$true] %s53
      %59 = dma.hbm_to_vmem [thread:$0]  %s3, 16384, %s54, [#allocation9], 128, 128, 8
    $region17: #{tpu_custom_call.1} parent=1 // pred_fallthru
      _
    // Predicated region
    $region18: #{tpu_custom_call.1} parent=1 // pred_check
      _
    $region19: #{tpu_custom_call.1} parent=1 // pred_check_branch
      %61 = sbr.rel (0) target = $region21
    $region20: #{tpu_custom_call.1} parent=1 // pred_region
      %s63 = ssub.s32 32, 32
      %64 = vsyncadd [#allocation9], %s63
      %s66 = sshll.u32 [#allocation10], 4
      %s67 = int_to_ptr.vmem [resolvable:$true] %s66
      %69 = dma.hbm_to_vmem [thread:$0]  %s4, 32, %s67, [#allocation9]
    $region21: #{tpu_custom_call.1} parent=1 // pred_fallthru
      _
    // Predicated region
    $region22: #{tpu_custom_call.1} parent=1 // pred_check
      _
    $region23: #{tpu_custom_call.1} parent=1 // pred_check_branch
      %71 = sbr.rel (0) target = $region25
    $region24: #{tpu_custom_call.1} parent=1 // pred_region
      %72 = dma.done [#allocation3], 512
    $region25: #{tpu_custom_call.1} parent=1 // pred_fallthru
      _
    // Predicated region
    $region26: #{tpu_custom_call.1} parent=1 // pred_check
      _
    $region27: #{tpu_custom_call.1} parent=1 // pred_check_branch
      %74 = sbr.rel (0) target = $region29
    $region28: #{tpu_custom_call.1} parent=1 // pred_region
      %75 = dma.done [#allocation6], 16384
    $region29: #{tpu_custom_call.1} parent=1 // pred_fallthru
      _
    // Predicated region
    $region30: #{tpu_custom_call.1} parent=1 // pred_check
      _
    $region31: #{tpu_custom_call.1} parent=1 // pred_check_branch
      %77 = sbr.rel (0) target = $region33
    $region32: #{tpu_custom_call.1} parent=1 // pred_region
      %78 = dma.done [#allocation6], 128
    $region33: #{tpu_custom_call.1} parent=1 // pred_fallthru
      _
    // Predicated region
    $region34: #{tpu_custom_call.1} parent=1 // pred_check
      _
    $region35: #{tpu_custom_call.1} parent=1 // pred_check_branch
      %80 = sbr.rel (0) target = $region37
    $region36: #{tpu_custom_call.1} parent=1 // pred_region
      %81 = dma.done [#allocation9], 16384
    $region37: #{tpu_custom_call.1} parent=1 // pred_fallthru
      _
    // Predicated region
    $region38: #{tpu_custom_call.1} parent=1 // pred_check
      _
    $region39: #{tpu_custom_call.1} parent=1 // pred_check_branch
      %83 = sbr.rel (0) target = $region41
    $region40: #{tpu_custom_call.1} parent=1 // pred_region
      %84 = dma.done [#allocation9], 32
    $region41: #{tpu_custom_call.1} parent=1 // pred_fallthru
      _
    %v85 = vld [vmem:[#allocation2] sm:$0xff]
    %v86 = vld [vmem:[#allocation2 + $0x8] sm:$0xff]
    %v87 = vld [vmem:[#allocation2 + $0x10] sm:$0xff]
    %v88 = vld [vmem:[#allocation2 + $0x18] sm:$0xff]
    %v89 = vpack.c.bf16 %v87, %v85
    %v90 = vpack.c.bf16 %v88, %v86
    %v91 = vld [vmem:[#allocation5] sm:$0xff]
    %v92 = vld [vmem:[#allocation5 + $0x8] sm:$0xff]
    %v93 = vld [vmem:[#allocation5 + $0x10] sm:$0xff]
    %v94 = vld [vmem:[#allocation5 + $0x18] sm:$0xff]
    %v95 = vld [vmem:[#allocation5 + $0x20] sm:$0xff]
    %v96 = vld [vmem:[#allocation5 + $0x28] sm:$0xff]
    %v97 = vld [vmem:[#allocation5 + $0x30] sm:$0xff]
    %v98 = vld [vmem:[#allocation5 + $0x38] sm:$0xff]
    %v99 = vld [vmem:[#allocation5 + $0x40] sm:$0xff]
    %v100 = vld [vmem:[#allocation5 + $0x48] sm:$0xff]
    %v101 = vld [vmem:[#allocation5 + $0x50] sm:$0xff]
    %v102 = vld [vmem:[#allocation5 + $0x58] sm:$0xff]
    %v103 = vld [vmem:[#allocation5 + $0x60] sm:$0xff]
    %v104 = vld [vmem:[#allocation5 + $0x68] sm:$0xff]
    %v105 = vld [vmem:[#allocation5 + $0x70] sm:$0xff]
    %v106 = vld [vmem:[#allocation5 + $0x78] sm:$0xff]
    %v107 = vld [vmem:[#allocation5 + $0x80] sm:$0xff]
    %v108 = vld [vmem:[#allocation5 + $0x88] sm:$0xff]
    %v109 = vld [vmem:[#allocation5 + $0x90] sm:$0xff]
    %v110 = vld [vmem:[#allocation5 + $0x98] sm:$0xff]
    %v111 = vld [vmem:[#allocation5 + $0xa0] sm:$0xff]
    %v112 = vld [vmem:[#allocation5 + $0xa8] sm:$0xff]
    %v113 = vld [vmem:[#allocation5 + $0xb0] sm:$0xff]
    %v114 = vld [vmem:[#allocation5 + $0xb8] sm:$0xff]
    %v115 = vld [vmem:[#allocation5 + $0xc0] sm:$0xff]
    %v116 = vld [vmem:[#allocation5 + $0xc8] sm:$0xff]
    %v117 = vld [vmem:[#allocation5 + $0xd0] sm:$0xff]
    %v118 = vld [vmem:[#allocation5 + $0xd8] sm:$0xff]
    %v119 = vld [vmem:[#allocation5 + $0xe0] sm:$0xff]
    %v120 = vld [vmem:[#allocation5 + $0xe8] sm:$0xff]
    %v121 = vld [vmem:[#allocation5 + $0xf0] sm:$0xff]
    %v122 = vld [vmem:[#allocation5 + $0xf8] sm:$0xff]
    %v123 = vld [vmem:[#allocation5 + $0x100] sm:$0xff]
    %v124 = vld [vmem:[#allocation5 + $0x108] sm:$0xff]
    %v125 = vld [vmem:[#allocation5 + $0x110] sm:$0xff]
    %v126 = vld [vmem:[#allocation5 + $0x118] sm:$0xff]
    %v127 = vld [vmem:[#allocation5 + $0x120] sm:$0xff]
    %v128 = vld [vmem:[#allocation5 + $0x128] sm:$0xff]
    %v129 = vld [vmem:[#allocation5 + $0x130] sm:$0xff]
    %v130 = vld [vmem:[#allocation5 + $0x138] sm:$0xff]
    %v131 = vld [vmem:[#allocation5 + $0x140] sm:$0xff]
    %v132 = vld [vmem:[#allocation5 + $0x148] sm:$0xff]
    %v133 = vld [vmem:[#allocation5 + $0x150] sm:$0xff]
    %v134 = vld [vmem:[#allocation5 + $0x158] sm:$0xff]
    %v135 = vld [vmem:[#allocation5 + $0x160] sm:$0xff]
    %v136 = vld [vmem:[#allocation5 + $0x168] sm:$0xff]
    %v137 = vld [vmem:[#allocation5 + $0x170] sm:$0xff]
    %v138 = vld [vmem:[#allocation5 + $0x178] sm:$0xff]
    %v139 = vld [vmem:[#allocation5 + $0x180] sm:$0xff]
    %v140 = vld [vmem:[#allocation5 + $0x188] sm:$0xff]
    %v141 = vld [vmem:[#allocation5 + $0x190] sm:$0xff]
    %v142 = vld [vmem:[#allocation5 + $0x198] sm:$0xff]
    %v143 = vld [vmem:[#allocation5 + $0x1a0] sm:$0xff]
    %v144 = vld [vmem:[#allocation5 + $0x1a8] sm:$0xff]
    %v145 = vld [vmem:[#allocation5 + $0x1b0] sm:$0xff]
    %v146 = vld [vmem:[#allocation5 + $0x1b8] sm:$0xff]
    %v147 = vld [vmem:[#allocation5 + $0x1c0] sm:$0xff]
    %v148 = vld [vmem:[#allocation5 + $0x1c8] sm:$0xff]
    %v149 = vld [vmem:[#allocation5 + $0x1d0] sm:$0xff]
    %v150 = vld [vmem:[#allocation5 + $0x1d8] sm:$0xff]
    %v151 = vld [vmem:[#allocation5 + $0x1e0] sm:$0xff]
    %v152 = vld [vmem:[#allocation5 + $0x1e8] sm:$0xff]
    %v153 = vld [vmem:[#allocation5 + $0x1f0] sm:$0xff]
    %v154 = vld [vmem:[#allocation5 + $0x1f8] sm:$0xff]
    %v155 = vld [vmem:[#allocation5 + $0x200] sm:$0xff]
    %v156 = vld [vmem:[#allocation5 + $0x208] sm:$0xff]
    %v157 = vld [vmem:[#allocation5 + $0x210] sm:$0xff]
    %v158 = vld [vmem:[#allocation5 + $0x218] sm:$0xff]
    %v159 = vld [vmem:[#allocation5 + $0x220] sm:$0xff]
    %v160 = vld [vmem:[#allocation5 + $0x228] sm:$0xff]
    %v161 = vld [vmem:[#allocation5 + $0x230] sm:$0xff]
    %v162 = vld [vmem:[#allocation5 + $0x238] sm:$0xff]
    %v163 = vld [vmem:[#allocation5 + $0x240] sm:$0xff]
    %v164 = vld [vmem:[#allocation5 + $0x248] sm:$0xff]
    %v165 = vld [vmem:[#allocation5 + $0x250] sm:$0xff]
    %v166 = vld [vmem:[#allocation5 + $0x258] sm:$0xff]
    %v167 = vld [vmem:[#allocation5 + $0x260] sm:$0xff]
    %v168 = vld [vmem:[#allocation5 + $0x268] sm:$0xff]
    %v169 = vld [vmem:[#allocation5 + $0x270] sm:$0xff]
    %v170 = vld [vmem:[#allocation5 + $0x278] sm:$0xff]
    %v171 = vld [vmem:[#allocation5 + $0x280] sm:$0xff]
    %v172 = vld [vmem:[#allocation5 + $0x288] sm:$0xff]
    %v173 = vld [vmem:[#allocation5 + $0x290] sm:$0xff]
    %v174 = vld [vmem:[#allocation5 + $0x298] sm:$0xff]
    %v175 = vld [vmem:[#allocation5 + $0x2a0] sm:$0xff]
    %v176 = vld [vmem:[#allocation5 + $0x2a8] sm:$0xff]
    %v177 = vld [vmem:[#allocation5 + $0x2b0] sm:$0xff]
    %v178 = vld [vmem:[#allocation5 + $0x2b8] sm:$0xff]
    %v179 = vld [vmem:[#allocation5 + $0x2c0] sm:$0xff]
    %v180 = vld [vmem:[#allocation5 + $0x2c8] sm:$0xff]
    %v181 = vld [vmem:[#allocation5 + $0x2d0] sm:$0xff]
    %v182 = vld [vmem:[#allocation5 + $0x2d8] sm:$0xff]
    %v183 = vld [vmem:[#allocation5 + $0x2e0] sm:$0xff]
    %v184 = vld [vmem:[#allocation5 + $0x2e8] sm:$0xff]
    %v185 = vld [vmem:[#allocation5 + $0x2f0] sm:$0xff]
    %v186 = vld [vmem:[#allocation5 + $0x2f8] sm:$0xff]
    %v187 = vld [vmem:[#allocation5 + $0x300] sm:$0xff]
    %v188 = vld [vmem:[#allocation5 + $0x308] sm:$0xff]
    %v189 = vld [vmem:[#allocation5 + $0x310] sm:$0xff]
    %v190 = vld [vmem:[#allocation5 + $0x318] sm:$0xff]
    %v191 = vld [vmem:[#allocation5 + $0x320] sm:$0xff]
    %v192 = vld [vmem:[#allocation5 + $0x328] sm:$0xff]
    %v193 = vld [vmem:[#allocation5 + $0x330] sm:$0xff]
    %v194 = vld [vmem:[#allocation5 + $0x338] sm:$0xff]
    %v195 = vld [vmem:[#allocation5 + $0x340] sm:$0xff]
    %v196 = vld [vmem:[#allocation5 + $0x348] sm:$0xff]
    %v197 = vld [vmem:[#allocation5 + $0x350] sm:$0xff]
    %v198 = vld [vmem:[#allocation5 + $0x358] sm:$0xff]
    %v199 = vld [vmem:[#allocation5 + $0x360] sm:$0xff]
    %v200 = vld [vmem:[#allocation5 + $0x368] sm:$0xff]
    %v201 = vld [vmem:[#allocation5 + $0x370] sm:$0xff]
    %v202 = vld [vmem:[#allocation5 + $0x378] sm:$0xff]
    %v203 = vld [vmem:[#allocation5 + $0x380] sm:$0xff]
    %v204 = vld [vmem:[#allocation5 + $0x388] sm:$0xff]
    %v205 = vld [vmem:[#allocation5 + $0x390] sm:$0xff]
    %v206 = vld [vmem:[#allocation5 + $0x398] sm:$0xff]
    %v207 = vld [vmem:[#allocation5 + $0x3a0] sm:$0xff]
    %v208 = vld [vmem:[#allocation5 + $0x3a8] sm:$0xff]
    %v209 = vld [vmem:[#allocation5 + $0x3b0] sm:$0xff]
    %v210 = vld [vmem:[#allocation5 + $0x3b8] sm:$0xff]
    %v211 = vld [vmem:[#allocation5 + $0x3c0] sm:$0xff]
    %v212 = vld [vmem:[#allocation5 + $0x3c8] sm:$0xff]
    %v213 = vld [vmem:[#allocation5 + $0x3d0] sm:$0xff]
    %v214 = vld [vmem:[#allocation5 + $0x3d8] sm:$0xff]
    %v215 = vld [vmem:[#allocation5 + $0x3e0] sm:$0xff]
    %v216 = vld [vmem:[#allocation5 + $0x3e8] sm:$0xff]
    %v217 = vld [vmem:[#allocation5 + $0x3f0] sm:$0xff]
    %v218 = vld [vmem:[#allocation5 + $0x3f8] sm:$0xff]
    %v219 = vld [vmem:[#allocation7] sm:$0xff]
    %v221 = vlaneseq
    %v222 = vshrl.u32 %v221, 7
    %v223 = vsub.s32 0, %v222
    %v224 = vrot.slane %v219, %v223
    %v225 = vlaneseq
    %v226 = vshrl.u32 %v225, 7
    %v227 = vsub.s32 1, %v226
    %v228 = vrot.slane %v219, %v227
    %v229 = vlaneseq
    %v230 = vshrl.u32 %v229, 7
    %v231 = vsub.s32 2, %v230
    %v232 = vrot.slane %v219, %v231
    %v233 = vlaneseq
    %v234 = vshrl.u32 %v233, 7
    %v235 = vsub.s32 3, %v234
    %v236 = vrot.slane %v219, %v235
    %v237 = vlaneseq
    %v238 = vshrl.u32 %v237, 7
    %v239 = vsub.s32 4, %v238
    %v240 = vrot.slane %v219, %v239
    %v241 = vlaneseq
    %v242 = vshrl.u32 %v241, 7
    %v243 = vsub.s32 5, %v242
    %v244 = vrot.slane %v219, %v243
    %v245 = vlaneseq
    %v246 = vshrl.u32 %v245, 7
    %v247 = vsub.s32 6, %v246
    %v248 = vrot.slane %v219, %v247
    %v249 = vlaneseq
    %v250 = vshrl.u32 %v249, 7
    %v251 = vsub.s32 7, %v250
    %v252 = vrot.slane %v219, %v251
    %v389 = vunpack.c.l.b16 %v91
    %v390 = vunpack.c.h.b16 %v91
    %v391 = vunpack.c.l.b16 %v92
    %v392 = vunpack.c.h.b16 %v92
    %v393 = vunpack.c.l.b16 %v93
    %v394 = vunpack.c.h.b16 %v93
    %v395 = vunpack.c.l.b16 %v94
    %v396 = vunpack.c.h.b16 %v94
    %v397 = vunpack.c.l.b16 %v95
    %v398 = vunpack.c.h.b16 %v95
    %v399 = vunpack.c.l.b16 %v96
    %v400 = vunpack.c.h.b16 %v96
    %v401 = vunpack.c.l.b16 %v97
    %v402 = vunpack.c.h.b16 %v97
    %v403 = vunpack.c.l.b16 %v98
    %v404 = vunpack.c.h.b16 %v98
    %v405 = vunpack.c.l.b16 %v99
    %v406 = vunpack.c.h.b16 %v99
    %v407 = vunpack.c.l.b16 %v100
    %v408 = vunpack.c.h.b16 %v100
    %v409 = vunpack.c.l.b16 %v101
    %v410 = vunpack.c.h.b16 %v101
    %v411 = vunpack.c.l.b16 %v102
    %v412 = vunpack.c.h.b16 %v102
    %v413 = vunpack.c.l.b16 %v103
    %v414 = vunpack.c.h.b16 %v103
    %v415 = vunpack.c.l.b16 %v104
    %v416 = vunpack.c.h.b16 %v104
    %v417 = vunpack.c.l.b16 %v105
    %v418 = vunpack.c.h.b16 %v105
    %v419 = vunpack.c.l.b16 %v106
    %v420 = vunpack.c.h.b16 %v106
    %v421 = vunpack.c.l.b16 %v107
    %v422 = vunpack.c.h.b16 %v107
    %v423 = vunpack.c.l.b16 %v108
    %v424 = vunpack.c.h.b16 %v108
    %v425 = vunpack.c.l.b16 %v109
    %v426 = vunpack.c.h.b16 %v109
    %v427 = vunpack.c.l.b16 %v110
    %v428 = vunpack.c.h.b16 %v110
    %v429 = vunpack.c.l.b16 %v111
    %v430 = vunpack.c.h.b16 %v111
    %v431 = vunpack.c.l.b16 %v112
    %v432 = vunpack.c.h.b16 %v112
    %v433 = vunpack.c.l.b16 %v113
    %v434 = vunpack.c.h.b16 %v113
    %v435 = vunpack.c.l.b16 %v114
    %v436 = vunpack.c.h.b16 %v114
    %v437 = vunpack.c.l.b16 %v115
    %v438 = vunpack.c.h.b16 %v115
    %v439 = vunpack.c.l.b16 %v116
    %v440 = vunpack.c.h.b16 %v116
    %v441 = vunpack.c.l.b16 %v117
    %v442 = vunpack.c.h.b16 %v117
    %v443 = vunpack.c.l.b16 %v118
    %v444 = vunpack.c.h.b16 %v118
    %v445 = vunpack.c.l.b16 %v119
    %v446 = vunpack.c.h.b16 %v119
    %v447 = vunpack.c.l.b16 %v120
    %v448 = vunpack.c.h.b16 %v120
    %v449 = vunpack.c.l.b16 %v121
    %v450 = vunpack.c.h.b16 %v121
    %v451 = vunpack.c.l.b16 %v122
    %v452 = vunpack.c.h.b16 %v122
    %v453 = vunpack.c.l.b16 %v123
    %v454 = vunpack.c.h.b16 %v123
    %v455 = vunpack.c.l.b16 %v124
    %v456 = vunpack.c.h.b16 %v124
    %v457 = vunpack.c.l.b16 %v125
    %v458 = vunpack.c.h.b16 %v125
    %v459 = vunpack.c.l.b16 %v126
    %v460 = vunpack.c.h.b16 %v126
    %v461 = vunpack.c.l.b16 %v127
    %v462 = vunpack.c.h.b16 %v127
    %v463 = vunpack.c.l.b16 %v128
    %v464 = vunpack.c.h.b16 %v128
    %v465 = vunpack.c.l.b16 %v129
    %v466 = vunpack.c.h.b16 %v129
    %v467 = vunpack.c.l.b16 %v130
    %v468 = vunpack.c.h.b16 %v130
    %v469 = vunpack.c.l.b16 %v131
    %v470 = vunpack.c.h.b16 %v131
    %v471 = vunpack.c.l.b16 %v132
    %v472 = vunpack.c.h.b16 %v132
    %v473 = vunpack.c.l.b16 %v133
    %v474 = vunpack.c.h.b16 %v133
    %v475 = vunpack.c.l.b16 %v134
    %v476 = vunpack.c.h.b16 %v134
    %v477 = vunpack.c.l.b16 %v135
    %v478 = vunpack.c.h.b16 %v135
    %v479 = vunpack.c.l.b16 %v136
    %v480 = vunpack.c.h.b16 %v136
    %v481 = vunpack.c.l.b16 %v137
    %v482 = vunpack.c.h.b16 %v137
    %v483 = vunpack.c.l.b16 %v138
    %v484 = vunpack.c.h.b16 %v138
    %v485 = vunpack.c.l.b16 %v139
    %v486 = vunpack.c.h.b16 %v139
    %v487 = vunpack.c.l.b16 %v140
    %v488 = vunpack.c.h.b16 %v140
    %v489 = vunpack.c.l.b16 %v141
    %v490 = vunpack.c.h.b16 %v141
    %v491 = vunpack.c.l.b16 %v142
    %v492 = vunpack.c.h.b16 %v142
    %v493 = vunpack.c.l.b16 %v143
    %v494 = vunpack.c.h.b16 %v143
    %v495 = vunpack.c.l.b16 %v144
    %v496 = vunpack.c.h.b16 %v144
    %v497 = vunpack.c.l.b16 %v145
    %v498 = vunpack.c.h.b16 %v145
    %v499 = vunpack.c.l.b16 %v146
    %v500 = vunpack.c.h.b16 %v146
    %v501 = vunpack.c.l.b16 %v147
    %v502 = vunpack.c.h.b16 %v147
    %v503 = vunpack.c.l.b16 %v148
    %v504 = vunpack.c.h.b16 %v148
    %v505 = vunpack.c.l.b16 %v149
    %v506 = vunpack.c.h.b16 %v149
    %v507 = vunpack.c.l.b16 %v150
    %v508 = vunpack.c.h.b16 %v150
    %v509 = vunpack.c.l.b16 %v151
    %v510 = vunpack.c.h.b16 %v151
    %v511 = vunpack.c.l.b16 %v152
    %v512 = vunpack.c.h.b16 %v152
    %v513 = vunpack.c.l.b16 %v153
    %v514 = vunpack.c.h.b16 %v153
    %v515 = vunpack.c.l.b16 %v154
    %v516 = vunpack.c.h.b16 %v154
    %v517 = vunpack.c.l.b16 %v155
    %v518 = vunpack.c.h.b16 %v155
    %v519 = vunpack.c.l.b16 %v156
    %v520 = vunpack.c.h.b16 %v156
    %v521 = vunpack.c.l.b16 %v157
    %v522 = vunpack.c.h.b16 %v157
    %v523 = vunpack.c.l.b16 %v158
    %v524 = vunpack.c.h.b16 %v158
    %v525 = vunpack.c.l.b16 %v159
    %v526 = vunpack.c.h.b16 %v159
    %v527 = vunpack.c.l.b16 %v160
    %v528 = vunpack.c.h.b16 %v160
    %v529 = vunpack.c.l.b16 %v161
    %v530 = vunpack.c.h.b16 %v161
    %v531 = vunpack.c.l.b16 %v162
    %v532 = vunpack.c.h.b16 %v162
    %v533 = vunpack.c.l.b16 %v163
    %v534 = vunpack.c.h.b16 %v163
    %v535 = vunpack.c.l.b16 %v164
    %v536 = vunpack.c.h.b16 %v164
    %v537 = vunpack.c.l.b16 %v165
    %v538 = vunpack.c.h.b16 %v165
    %v539 = vunpack.c.l.b16 %v166
    %v540 = vunpack.c.h.b16 %v166
    %v541 = vunpack.c.l.b16 %v167
    %v542 = vunpack.c.h.b16 %v167
    %v543 = vunpack.c.l.b16 %v168
    %v544 = vunpack.c.h.b16 %v168
    %v545 = vunpack.c.l.b16 %v169
    %v546 = vunpack.c.h.b16 %v169
    %v547 = vunpack.c.l.b16 %v170
    %v548 = vunpack.c.h.b16 %v170
    %v549 = vunpack.c.l.b16 %v171
    %v550 = vunpack.c.h.b16 %v171
    %v551 = vunpack.c.l.b16 %v172
    %v552 = vunpack.c.h.b16 %v172
    %v553 = vunpack.c.l.b16 %v173
    %v554 = vunpack.c.h.b16 %v173
    %v555 = vunpack.c.l.b16 %v174
    %v556 = vunpack.c.h.b16 %v174
    %v557 = vunpack.c.l.b16 %v175
    %v558 = vunpack.c.h.b16 %v175
    %v559 = vunpack.c.l.b16 %v176
    %v560 = vunpack.c.h.b16 %v176
    %v561 = vunpack.c.l.b16 %v177
    %v562 = vunpack.c.h.b16 %v177
    %v563 = vunpack.c.l.b16 %v178
    %v564 = vunpack.c.h.b16 %v178
    %v565 = vunpack.c.l.b16 %v179
    %v566 = vunpack.c.h.b16 %v179
    %v567 = vunpack.c.l.b16 %v180
    %v568 = vunpack.c.h.b16 %v180
    %v569 = vunpack.c.l.b16 %v181
    %v570 = vunpack.c.h.b16 %v181
    %v571 = vunpack.c.l.b16 %v182
    %v572 = vunpack.c.h.b16 %v182
    %v573 = vunpack.c.l.b16 %v183
    %v574 = vunpack.c.h.b16 %v183
    %v575 = vunpack.c.l.b16 %v184
    %v576 = vunpack.c.h.b16 %v184
    %v577 = vunpack.c.l.b16 %v185
    %v578 = vunpack.c.h.b16 %v185
    %v579 = vunpack.c.l.b16 %v186
    %v580 = vunpack.c.h.b16 %v186
    %v581 = vunpack.c.l.b16 %v187
    %v582 = vunpack.c.h.b16 %v187
    %v583 = vunpack.c.l.b16 %v188
    %v584 = vunpack.c.h.b16 %v188
    %v585 = vunpack.c.l.b16 %v189
    %v586 = vunpack.c.h.b16 %v189
    %v587 = vunpack.c.l.b16 %v190
    %v588 = vunpack.c.h.b16 %v190
    %v589 = vunpack.c.l.b16 %v191
    %v590 = vunpack.c.h.b16 %v191
    %v591 = vunpack.c.l.b16 %v192
    %v592 = vunpack.c.h.b16 %v192
    %v593 = vunpack.c.l.b16 %v193
    %v594 = vunpack.c.h.b16 %v193
    %v595 = vunpack.c.l.b16 %v194
    %v596 = vunpack.c.h.b16 %v194
    %v597 = vunpack.c.l.b16 %v195
    %v598 = vunpack.c.h.b16 %v195
    %v599 = vunpack.c.l.b16 %v196
    %v600 = vunpack.c.h.b16 %v196
    %v601 = vunpack.c.l.b16 %v197
    %v602 = vunpack.c.h.b16 %v197
    %v603 = vunpack.c.l.b16 %v198
    %v604 = vunpack.c.h.b16 %v198
    %v605 = vunpack.c.l.b16 %v199
    %v606 = vunpack.c.h.b16 %v199
    %v607 = vunpack.c.l.b16 %v200
    %v608 = vunpack.c.h.b16 %v200
    %v609 = vunpack.c.l.b16 %v201
    %v610 = vunpack.c.h.b16 %v201
    %v611 = vunpack.c.l.b16 %v202
    %v612 = vunpack.c.h.b16 %v202
    %v613 = vunpack.c.l.b16 %v203
    %v614 = vunpack.c.h.b16 %v203
    %v615 = vunpack.c.l.b16 %v204
    %v616 = vunpack.c.h.b16 %v204
    %v617 = vunpack.c.l.b16 %v205
    %v618 = vunpack.c.h.b16 %v205
    %v619 = vunpack.c.l.b16 %v206
    %v620 = vunpack.c.h.b16 %v206
    %v621 = vunpack.c.l.b16 %v207
    %v622 = vunpack.c.h.b16 %v207
    %v623 = vunpack.c.l.b16 %v208
    %v624 = vunpack.c.h.b16 %v208
    %v625 = vunpack.c.l.b16 %v209
    %v626 = vunpack.c.h.b16 %v209
    %v627 = vunpack.c.l.b16 %v210
    %v628 = vunpack.c.h.b16 %v210
    %v629 = vunpack.c.l.b16 %v211
    %v630 = vunpack.c.h.b16 %v211
    %v631 = vunpack.c.l.b16 %v212
    %v632 = vunpack.c.h.b16 %v212
    %v633 = vunpack.c.l.b16 %v213
    %v634 = vunpack.c.h.b16 %v213
    %v635 = vunpack.c.l.b16 %v214
    %v636 = vunpack.c.h.b16 %v214
    %v637 = vunpack.c.l.b16 %v215
    %v638 = vunpack.c.h.b16 %v215
    %v639 = vunpack.c.l.b16 %v216
    %v640 = vunpack.c.h.b16 %v216
    %v641 = vunpack.c.l.b16 %v217
    %v642 = vunpack.c.h.b16 %v217
    %v643 = vunpack.c.l.b16 %v218
    %v644 = vunpack.c.h.b16 %v218
    %v645 = vpack.c.b16 %v397, %v389
    %v646 = vpack.c.b16 %v398, %v390
    %v647 = vpack.c.b16 %v399, %v391
    %v648 = vpack.c.b16 %v400, %v392
    %v649 = vpack.c.b16 %v401, %v393
    %v650 = vpack.c.b16 %v402, %v394
    %v651 = vpack.c.b16 %v403, %v395
    %v652 = vpack.c.b16 %v404, %v396
    %v653 = vpack.c.b16 %v413, %v405
    %v654 = vpack.c.b16 %v414, %v406
    %v655 = vpack.c.b16 %v415, %v407
    %v656 = vpack.c.b16 %v416, %v408
    %v657 = vpack.c.b16 %v417, %v409
    %v658 = vpack.c.b16 %v418, %v410
    %v659 = vpack.c.b16 %v419, %v411
    %v660 = vpack.c.b16 %v420, %v412
    %v661 = vpack.c.b16 %v429, %v421
    %v662 = vpack.c.b16 %v430, %v422
    %v663 = vpack.c.b16 %v431, %v423
    %v664 = vpack.c.b16 %v432, %v424
    %v665 = vpack.c.b16 %v433, %v425
    %v666 = vpack.c.b16 %v434, %v426
    %v667 = vpack.c.b16 %v435, %v427
    %v668 = vpack.c.b16 %v436, %v428
    %v669 = vpack.c.b16 %v445, %v437
    %v670 = vpack.c.b16 %v446, %v438
    %v671 = vpack.c.b16 %v447, %v439
    %v672 = vpack.c.b16 %v448, %v440
    %v673 = vpack.c.b16 %v449, %v441
    %v674 = vpack.c.b16 %v450, %v442
    %v675 = vpack.c.b16 %v451, %v443
    %v676 = vpack.c.b16 %v452, %v444
    %v677 = vpack.c.b16 %v461, %v453
    %v678 = vpack.c.b16 %v462, %v454
    %v679 = vpack.c.b16 %v463, %v455
    %v680 = vpack.c.b16 %v464, %v456
    %v681 = vpack.c.b16 %v465, %v457
    %v682 = vpack.c.b16 %v466, %v458
    %v683 = vpack.c.b16 %v467, %v459
    %v684 = vpack.c.b16 %v468, %v460
    %v685 = vpack.c.b16 %v477, %v469
    %v686 = vpack.c.b16 %v478, %v470
    %v687 = vpack.c.b16 %v479, %v471
    %v688 = vpack.c.b16 %v480, %v472
    %v689 = vpack.c.b16 %v481, %v473
    %v690 = vpack.c.b16 %v482, %v474
    %v691 = vpack.c.b16 %v483, %v475
    %v692 = vpack.c.b16 %v484, %v476
    %v693 = vpack.c.b16 %v493, %v485
    %v694 = vpack.c.b16 %v494, %v486
    %v695 = vpack.c.b16 %v495, %v487
    %v696 = vpack.c.b16 %v496, %v488
    %v697 = vpack.c.b16 %v497, %v489
    %v698 = vpack.c.b16 %v498, %v490
    %v699 = vpack.c.b16 %v499, %v491
    %v700 = vpack.c.b16 %v500, %v492
    %v701 = vpack.c.b16 %v509, %v501
    %v702 = vpack.c.b16 %v510, %v502
    %v703 = vpack.c.b16 %v511, %v503
    %v704 = vpack.c.b16 %v512, %v504
    %v705 = vpack.c.b16 %v513, %v505
    %v706 = vpack.c.b16 %v514, %v506
    %v707 = vpack.c.b16 %v515, %v507
    %v708 = vpack.c.b16 %v516, %v508
    %v709 = vpack.c.b16 %v525, %v517
    %v710 = vpack.c.b16 %v526, %v518
    %v711 = vpack.c.b16 %v527, %v519
    %v712 = vpack.c.b16 %v528, %v520
    %v713 = vpack.c.b16 %v529, %v521
    %v714 = vpack.c.b16 %v530, %v522
    %v715 = vpack.c.b16 %v531, %v523
    %v716 = vpack.c.b16 %v532, %v524
    %v717 = vpack.c.b16 %v541, %v533
    %v718 = vpack.c.b16 %v542, %v534
    %v719 = vpack.c.b16 %v543, %v535
    %v720 = vpack.c.b16 %v544, %v536
    %v721 = vpack.c.b16 %v545, %v537
    %v722 = vpack.c.b16 %v546, %v538
    %v723 = vpack.c.b16 %v547, %v539
    %v724 = vpack.c.b16 %v548, %v540
    %v725 = vpack.c.b16 %v557, %v549
    %v726 = vpack.c.b16 %v558, %v550
    %v727 = vpack.c.b16 %v559, %v551
    %v728 = vpack.c.b16 %v560, %v552
    %v729 = vpack.c.b16 %v561, %v553
    %v730 = vpack.c.b16 %v562, %v554
    %v731 = vpack.c.b16 %v563, %v555
    %v732 = vpack.c.b16 %v564, %v556
    %v733 = vpack.c.b16 %v573, %v565
    %v734 = vpack.c.b16 %v574, %v566
    %v735 = vpack.c.b16 %v575, %v567
    %v736 = vpack.c.b16 %v576, %v568
    %v737 = vpack.c.b16 %v577, %v569
    %v738 = vpack.c.b16 %v578, %v570
    %v739 = vpack.c.b16 %v579, %v571
    %v740 = vpack.c.b16 %v580, %v572
    %v741 = vpack.c.b16 %v589, %v581
    %v742 = vpack.c.b16 %v590, %v582
    %v743 = vpack.c.b16 %v591, %v583
    %v744 = vpack.c.b16 %v592, %v584
    %v745 = vpack.c.b16 %v593, %v585
    %v746 = vpack.c.b16 %v594, %v586
    %v747 = vpack.c.b16 %v595, %v587
    %v748 = vpack.c.b16 %v596, %v588
    %v749 = vpack.c.b16 %v605, %v597
    %v750 = vpack.c.b16 %v606, %v598
    %v751 = vpack.c.b16 %v607, %v599
    %v752 = vpack.c.b16 %v608, %v600
    %v753 = vpack.c.b16 %v609, %v601
    %v754 = vpack.c.b16 %v610, %v602
    %v755 = vpack.c.b16 %v611, %v603
    %v756 = vpack.c.b16 %v612, %v604
    %v757 = vpack.c.b16 %v621, %v613
    %v758 = vpack.c.b16 %v622, %v614
    %v759 = vpack.c.b16 %v623, %v615
    %v760 = vpack.c.b16 %v624, %v616
    %v761 = vpack.c.b16 %v625, %v617
    %v762 = vpack.c.b16 %v626, %v618
    %v763 = vpack.c.b16 %v627, %v619
    %v764 = vpack.c.b16 %v628, %v620
    %v765 = vpack.c.b16 %v637, %v629
    %v766 = vpack.c.b16 %v638, %v630
    %v767 = vpack.c.b16 %v639, %v631
    %v768 = vpack.c.b16 %v640, %v632
    %v769 = vpack.c.b16 %v641, %v633
    %v770 = vpack.c.b16 %v642, %v634
    %v771 = vpack.c.b16 %v643, %v635
    %v772 = vpack.c.b16 %v644, %v636
    %901 = vmatprep.subr.bf16.mxu0 %v646
    %902 = vmatpush1.bf16.msra.mxu0 %v645
    %903 = vmatprep.subr.bf16.mxu0 %v654
    %904 = vmatpush1.bf16.msra.mxu0 %v653
    %905 = vmatprep.subr.bf16.mxu0 %v662
    %906 = vmatpush1.bf16.msra.mxu0 %v661
    %907 = vmatprep.subr.bf16.mxu0 %v670
    %908 = vmatpush1.bf16.msra.mxu0 %v669
    %909 = vmatprep.subr.bf16.mxu0 %v678
    %910 = vmatpush1.bf16.msra.mxu0 %v677
    %911 = vmatprep.subr.bf16.mxu0 %v686
    %912 = vmatpush1.bf16.msra.mxu0 %v685
    %913 = vmatprep.subr.bf16.mxu0 %v694
    %914 = vmatpush1.bf16.msra.mxu0 %v693
    %915 = vmatprep.subr.bf16.mxu0 %v702
    %916 = vmatpush1.bf16.msra.mxu0 %v701
    %917 = vmatprep.subr.bf16.mxu0 %v710
    %918 = vmatpush1.bf16.msra.mxu0 %v709
    %919 = vmatprep.subr.bf16.mxu0 %v718
    %920 = vmatpush1.bf16.msra.mxu0 %v717
    %921 = vmatprep.subr.bf16.mxu0 %v726
    %922 = vmatpush1.bf16.msra.mxu0 %v725
    %923 = vmatprep.subr.bf16.mxu0 %v734
    %924 = vmatpush1.bf16.msra.mxu0 %v733
    %925 = vmatprep.subr.bf16.mxu0 %v742
    %926 = vmatpush1.bf16.msra.mxu0 %v741
    %927 = vmatprep.subr.bf16.mxu0 %v750
    %928 = vmatpush1.bf16.msra.mxu0 %v749
    %929 = vmatprep.subr.bf16.mxu0 %v758
    %930 = vmatpush1.bf16.msra.mxu0 %v757
    %931 = vmatprep.subr.bf16.mxu0 %v766
    %932 = vmatpush1.bf16.msra.mxu0 %v765
    %933 = vmatprep.mubr.bf16.mxu0 %v90
    %934 = vmatmul.mubr.bf16.gmra.mrb[0].mxu0 %v89
    %v935 = vpop.f32.mrb[0].mxu0
    %v936 = vadd.f32 %v224, %v935
    %v937 = vpop.f32.mrb[0].mxu0
    %v938 = vadd.f32 %v228, %v937
    %v939 = vpop.f32.mrb[0].mxu0
    %v940 = vadd.f32 %v224, %v939
    %v941 = vpop.f32.mrb[0].mxu0
    %v942 = vadd.f32 %v228, %v941
    %943 = vdwg.mxu0
    %944 = vmatprep.subr.bf16.mxu0 %v648
    %945 = vmatpush1.bf16.msra.mxu0 %v647
    %946 = vmatprep.subr.bf16.mxu0 %v656
    %947 = vmatpush1.bf16.msra.mxu0 %v655
    %948 = vmatprep.subr.bf16.mxu0 %v664
    %949 = vmatpush1.bf16.msra.mxu0 %v663
    %950 = vmatprep.subr.bf16.mxu0 %v672
    %951 = vmatpush1.bf16.msra.mxu0 %v671
    %952 = vmatprep.subr.bf16.mxu0 %v680
    %953 = vmatpush1.bf16.msra.mxu0 %v679
    %954 = vmatprep.subr.bf16.mxu0 %v688
    %955 = vmatpush1.bf16.msra.mxu0 %v687
    %956 = vmatprep.subr.bf16.mxu0 %v696
    %957 = vmatpush1.bf16.msra.mxu0 %v695
    %958 = vmatprep.subr.bf16.mxu0 %v704
    %959 = vmatpush1.bf16.msra.mxu0 %v703
    %960 = vmatprep.subr.bf16.mxu0 %v712
    %961 = vmatpush1.bf16.msra.mxu0 %v711
    %962 = vmatprep.subr.bf16.mxu0 %v720
    %963 = vmatpush1.bf16.msra.mxu0 %v719
    %964 = vmatprep.subr.bf16.mxu0 %v728
    %965 = vmatpush1.bf16.msra.mxu0 %v727
    %966 = vmatprep.subr.bf16.mxu0 %v736
    %967 = vmatpush1.bf16.msra.mxu0 %v735
    %968 = vmatprep.subr.bf16.mxu0 %v744
    %969 = vmatpush1.bf16.msra.mxu0 %v743
    %970 = vmatprep.subr.bf16.mxu0 %v752
    %971 = vmatpush1.bf16.msra.mxu0 %v751
    %972 = vmatprep.subr.bf16.mxu0 %v760
    %973 = vmatpush1.bf16.msra.mxu0 %v759
    %974 = vmatprep.subr.bf16.mxu0 %v768
    %975 = vmatpush1.bf16.msra.mxu0 %v767
    %976 = vmatprep.mubr.bf16.mxu0 %v90
    %977 = vmatmul.mubr.bf16.gmra.mrb[0].mxu0 %v89
    %v978 = vpop.f32.mrb[0].mxu0
    %v979 = vadd.f32 %v232, %v978
    %v980 = vpop.f32.mrb[0].mxu0
    %v981 = vadd.f32 %v236, %v980
    %v982 = vpop.f32.mrb[0].mxu0
    %v983 = vadd.f32 %v232, %v982
    %v984 = vpop.f32.mrb[0].mxu0
    %v985 = vadd.f32 %v236, %v984
    %986 = vdwg.mxu0
    %987 = vmatprep.subr.bf16.mxu0 %v650
    %988 = vmatpush1.bf16.msra.mxu0 %v649
    %989 = vmatprep.subr.bf16.mxu0 %v658
    %990 = vmatpush1.bf16.msra.mxu0 %v657
    %991 = vmatprep.subr.bf16.mxu0 %v666
    %992 = vmatpush1.bf16.msra.mxu0 %v665
    %993 = vmatprep.subr.bf16.mxu0 %v674
    %994 = vmatpush1.bf16.msra.mxu0 %v673
    %995 = vmatprep.subr.bf16.mxu0 %v682
    %996 = vmatpush1.bf16.msra.mxu0 %v681
    %997 = vmatprep.subr.bf16.mxu0 %v690
    %998 = vmatpush1.bf16.msra.mxu0 %v689
    %999 = vmatprep.subr.bf16.mxu0 %v698
    %1000 = vmatpush1.bf16.msra.mxu0 %v697
    %1001 = vmatprep.subr.bf16.mxu0 %v706
    %1002 = vmatpush1.bf16.msra.mxu0 %v705
    %1003 = vmatprep.subr.bf16.mxu0 %v714
    %1004 = vmatpush1.bf16.msra.mxu0 %v713
    %1005 = vmatprep.subr.bf16.mxu0 %v722
    %1006 = vmatpush1.bf16.msra.mxu0 %v721
    %1007 = vmatprep.subr.bf16.mxu0 %v730
    %1008 = vmatpush1.bf16.msra.mxu0 %v729
    %1009 = vmatprep.subr.bf16.mxu0 %v738
    %1010 = vmatpush1.bf16.msra.mxu0 %v737
    %1011 = vmatprep.subr.bf16.mxu0 %v746
    %1012 = vmatpush1.bf16.msra.mxu0 %v745
    %1013 = vmatprep.subr.bf16.mxu0 %v754
    %1014 = vmatpush1.bf16.msra.mxu0 %v753
    %1015 = vmatprep.subr.bf16.mxu0 %v762
    %1016 = vmatpush1.bf16.msra.mxu0 %v761
    %1017 = vmatprep.subr.bf16.mxu0 %v770
    %1018 = vmatpush1.bf16.msra.mxu0 %v769
    %1019 = vmatprep.mubr.bf16.mxu0 %v90
    %1020 = vmatmul.mubr.bf16.gmra.mrb[0].mxu0 %v89
    %v1021 = vpop.f32.mrb[0].mxu0
    %v1022 = vadd.f32 %v240, %v1021
    %v1023 = vpop.f32.mrb[0].mxu0
    %v1024 = vadd.f32 %v244, %v1023
    %v1025 = vpop.f32.mrb[0].mxu0
    %v1026 = vadd.f32 %v240, %v1025
    %v1027 = vpop.f32.mrb[0].mxu0
    %v1028 = vadd.f32 %v244, %v1027
    %1029 = vdwg.mxu0
    %1030 = vmatprep.subr.bf16.mxu0 %v652
    %1031 = vmatpush1.bf16.msra.mxu0 %v651
    %1032 = vmatprep.subr.bf16.mxu0 %v660
    %1033 = vmatpush1.bf16.msra.mxu0 %v659
    %1034 = vmatprep.subr.bf16.mxu0 %v668
    %1035 = vmatpush1.bf16.msra.mxu0 %v667
    %1036 = vmatprep.subr.bf16.mxu0 %v676
    %1037 = vmatpush1.bf16.msra.mxu0 %v675
    %1038 = vmatprep.subr.bf16.mxu0 %v684
    %1039 = vmatpush1.bf16.msra.mxu0 %v683
    %1040 = vmatprep.subr.bf16.mxu0 %v692
    %1041 = vmatpush1.bf16.msra.mxu0 %v691
    %1042 = vmatprep.subr.bf16.mxu0 %v700
    %1043 = vmatpush1.bf16.msra.mxu0 %v699
    %1044 = vmatprep.subr.bf16.mxu0 %v708
    %1045 = vmatpush1.bf16.msra.mxu0 %v707
    %1046 = vmatprep.subr.bf16.mxu0 %v716
    %1047 = vmatpush1.bf16.msra.mxu0 %v715
    %1048 = vmatprep.subr.bf16.mxu0 %v724
    %1049 = vmatpush1.bf16.msra.mxu0 %v723
    %1050 = vmatprep.subr.bf16.mxu0 %v732
    %1051 = vmatpush1.bf16.msra.mxu0 %v731
    %1052 = vmatprep.subr.bf16.mxu0 %v740
    %1053 = vmatpush1.bf16.msra.mxu0 %v739
    %1054 = vmatprep.subr.bf16.mxu0 %v748
    %1055 = vmatpush1.bf16.msra.mxu0 %v747
    %1056 = vmatprep.subr.bf16.mxu0 %v756
    %1057 = vmatpush1.bf16.msra.mxu0 %v755
    %1058 = vmatprep.subr.bf16.mxu0 %v764
    %1059 = vmatpush1.bf16.msra.mxu0 %v763
    %1060 = vmatprep.subr.bf16.mxu0 %v772
    %1061 = vmatpush1.bf16.msra.mxu0 %v771
    %1062 = vmatprep.mubr.bf16.mxu0 %v90
    %1063 = vmatmul.mubr.bf16.gmra.mrb[0].mxu0 %v89
    %v1064 = vpop.f32.mrb[0].mxu0
    %v1065 = vadd.f32 %v248, %v1064
    %v1066 = vpop.f32.mrb[0].mxu0
    %v1067 = vadd.f32 %v252, %v1066
    %v1068 = vpop.f32.mrb[0].mxu0
    %v1069 = vadd.f32 %v248, %v1068
    %v1070 = vpop.f32.mrb[0].mxu0
    %v1071 = vadd.f32 %v252, %v1070
    %1072 = vdwg.mxu0
    %v1073 = vmul.f32 %v936, 0.5
    %v1074 = vmul.f32 %v938, 0.5
    %v1075 = vmul.f32 %v979, 0.5
    %v1076 = vmul.f32 %v981, 0.5
    %v1077 = vmul.f32 %v1022, 0.5
    %v1078 = vmul.f32 %v1024, 0.5
    %v1079 = vmul.f32 %v1065, 0.5
    %v1080 = vmul.f32 %v1067, 0.5
    %v1081 = vmul.f32 %v940, 0.5
    %v1082 = vmul.f32 %v942, 0.5
    %v1083 = vmul.f32 %v983, 0.5
    %v1084 = vmul.f32 %v985, 0.5
    %v1085 = vmul.f32 %v1026, 0.5
    %v1086 = vmul.f32 %v1028, 0.5
    %v1087 = vmul.f32 %v1069, 0.5
    %v1088 = vmul.f32 %v1071, 0.5
    %v1089 = vmul.f32 %v936, 0.70710677
    %v1090 = vmul.f32 %v938, 0.70710677
    %v1091 = vmul.f32 %v979, 0.70710677
    %v1092 = vmul.f32 %v981, 0.70710677
    %v1093 = vmul.f32 %v1022, 0.70710677
    %v1094 = vmul.f32 %v1024, 0.70710677
    %v1095 = vmul.f32 %v1065, 0.70710677
    %v1096 = vmul.f32 %v1067, 0.70710677
    %v1097 = vmul.f32 %v940, 0.70710677
    %v1098 = vmul.f32 %v942, 0.70710677
    %v1099 = vmul.f32 %v983, 0.70710677
    %v1100 = vmul.f32 %v985, 0.70710677
    %v1101 = vmul.f32 %v1026, 0.70710677
    %v1102 = vmul.f32 %v1028, 0.70710677
    %v1103 = vmul.f32 %v1069, 0.70710677
    %v1104 = vmul.f32 %v1071, 0.70710677
    %v1105 = vand.u32 2147483647, %v1089
    %v1106 = vand.u32 2147483647, %v1090
    %v1107 = vand.u32 2147483647, %v1091
    %v1108 = vand.u32 2147483647, %v1092
    %v1109 = vand.u32 2147483647, %v1093
    %v1110 = vand.u32 2147483647, %v1094
    %v1111 = vand.u32 2147483647, %v1095
    %v1112 = vand.u32 2147483647, %v1096
    %v1113 = vand.u32 2147483647, %v1097
    %v1114 = vand.u32 2147483647, %v1098
    %v1115 = vand.u32 2147483647, %v1099
    %v1116 = vand.u32 2147483647, %v1100
    %v1117 = vand.u32 2147483647, %v1101
    %v1118 = vand.u32 2147483647, %v1102
    %v1119 = vand.u32 2147483647, %v1103
    %v1120 = vand.u32 2147483647, %v1104
    %v1121 = vmul.f32 %v1105, 0.3275911
    %v1122 = vmul.f32 %v1106, 0.3275911
    %v1123 = vmul.f32 %v1107, 0.3275911
    %v1124 = vmul.f32 %v1108, 0.3275911
    %v1125 = vmul.f32 %v1109, 0.3275911
    %v1126 = vmul.f32 %v1110, 0.3275911
    %v1127 = vmul.f32 %v1111, 0.3275911
    %v1128 = vmul.f32 %v1112, 0.3275911
    %v1129 = vmul.f32 %v1113, 0.3275911
    %v1130 = vmul.f32 %v1114, 0.3275911
    %v1131 = vmul.f32 %v1115, 0.3275911
    %v1132 = vmul.f32 %v1116, 0.3275911
    %v1133 = vmul.f32 %v1117, 0.3275911
    %v1134 = vmul.f32 %v1118, 0.3275911
    %v1135 = vmul.f32 %v1119, 0.3275911
    %v1136 = vmul.f32 %v1120, 0.3275911
    %v1137 = vadd.f32 %v1121, 1.0
    %v1138 = vadd.f32 %v1122, 1.0
    %v1139 = vadd.f32 %v1123, 1.0
    %v1140 = vadd.f32 %v1124, 1.0
    %v1141 = vadd.f32 %v1125, 1.0
    %v1142 = vadd.f32 %v1126, 1.0
    %v1143 = vadd.f32 %v1127, 1.0
    %v1144 = vadd.f32 %v1128, 1.0
    %v1145 = vadd.f32 %v1129, 1.0
    %v1146 = vadd.f32 %v1130, 1.0
    %v1147 = vadd.f32 %v1131, 1.0
    %v1148 = vadd.f32 %v1132, 1.0
    %v1149 = vadd.f32 %v1133, 1.0
    %v1150 = vadd.f32 %v1134, 1.0
    %v1151 = vadd.f32 %v1135, 1.0
    %v1152 = vadd.f32 %v1136, 1.0
    %v1153 = vrcp.pop %v1137
    %v1154 = vrcp.pop %v1138
    %v1155 = vrcp.pop %v1139
    %v1156 = vrcp.pop %v1140
    %v1157 = vrcp.pop %v1141
    %v1158 = vrcp.pop %v1142
    %v1159 = vrcp.pop %v1143
    %v1160 = vrcp.pop %v1144
    %v1161 = vrcp.pop %v1145
    %v1162 = vrcp.pop %v1146
    %v1163 = vrcp.pop %v1147
    %v1164 = vrcp.pop %v1148
    %v1165 = vrcp.pop %v1149
    %v1166 = vrcp.pop %v1150
    %v1167 = vrcp.pop %v1151
    %v1168 = vrcp.pop %v1152
    %v1169 = vsub.f32 0.0, %v1105
    %v1170 = vsub.f32 0.0, %v1106
    %v1171 = vsub.f32 0.0, %v1107
    %v1172 = vsub.f32 0.0, %v1108
    %v1173 = vsub.f32 0.0, %v1109
    %v1174 = vsub.f32 0.0, %v1110
    %v1175 = vsub.f32 0.0, %v1111
    %v1176 = vsub.f32 0.0, %v1112
    %v1177 = vsub.f32 0.0, %v1113
    %v1178 = vsub.f32 0.0, %v1114
    %v1179 = vsub.f32 0.0, %v1115
    %v1180 = vsub.f32 0.0, %v1116
    %v1181 = vsub.f32 0.0, %v1117
    %v1182 = vsub.f32 0.0, %v1118
    %v1183 = vsub.f32 0.0, %v1119
    %v1184 = vsub.f32 0.0, %v1120
    %v1185 = vmul.f32 %v1169, %v1105
    %v1186 = vmul.f32 %v1170, %v1106
    %v1187 = vmul.f32 %v1171, %v1107
    %v1188 = vmul.f32 %v1172, %v1108
    %v1189 = vmul.f32 %v1173, %v1109
    %v1190 = vmul.f32 %v1174, %v1110
    %v1191 = vmul.f32 %v1175, %v1111
    %v1192 = vmul.f32 %v1176, %v1112
    %v1193 = vmul.f32 %v1177, %v1113
    %v1194 = vmul.f32 %v1178, %v1114
    %v1195 = vmul.f32 %v1179, %v1115
    %v1196 = vmul.f32 %v1180, %v1116
    %v1197 = vmul.f32 %v1181, %v1117
    %v1198 = vmul.f32 %v1182, %v1118
    %v1199 = vmul.f32 %v1183, %v1119
    %v1200 = vmul.f32 %v1184, %v1120
    %v1201 = vmul.f32 %v1185, 1.442695
    %v1202 = vpow.pop %v1201
    %v1203 = vmul.f32 %v1186, 1.442695
    %v1204 = vpow.pop %v1203
    %v1205 = vmul.f32 %v1187, 1.442695
    %v1206 = vpow.pop %v1205
    %v1207 = vmul.f32 %v1188, 1.442695
    %v1208 = vpow.pop %v1207
    %v1209 = vmul.f32 %v1189, 1.442695
    %v1210 = vpow.pop %v1209
    %v1211 = vmul.f32 %v1190, 1.442695
    %v1212 = vpow.pop %v1211
    %v1213 = vmul.f32 %v1191, 1.442695
    %v1214 = vpow.pop %v1213
    %v1215 = vmul.f32 %v1192, 1.442695
    %v1216 = vpow.pop %v1215
    %v1217 = vmul.f32 %v1193, 1.442695
    %v1218 = vpow.pop %v1217
    %v1219 = vmul.f32 %v1194, 1.442695
    %v1220 = vpow.pop %v1219
    %v1221 = vmul.f32 %v1195, 1.442695
    %v1222 = vpow.pop %v1221
    %v1223 = vmul.f32 %v1196, 1.442695
    %v1224 = vpow.pop %v1223
    %v1225 = vmul.f32 %v1197, 1.442695
    %v1226 = vpow.pop %v1225
    %v1227 = vmul.f32 %v1198, 1.442695
    %v1228 = vpow.pop %v1227
    %v1229 = vmul.f32 %v1199, 1.442695
    %v1230 = vpow.pop %v1229
    %v1231 = vmul.f32 %v1200, 1.442695
    %v1232 = vpow.pop %v1231
    %v1233 = vmul.f32 %v1153, 1.0614054
    %v1234 = vmul.f32 %v1154, 1.0614054
    %v1235 = vmul.f32 %v1155, 1.0614054
    %v1236 = vmul.f32 %v1156, 1.0614054
    %v1237 = vmul.f32 %v1157, 1.0614054
    %v1238 = vmul.f32 %v1158, 1.0614054
    %v1239 = vmul.f32 %v1159, 1.0614054
    %v1240 = vmul.f32 %v1160, 1.0614054
    %v1241 = vmul.f32 %v1161, 1.0614054
    %v1242 = vmul.f32 %v1162, 1.0614054
    %v1243 = vmul.f32 %v1163, 1.0614054
    %v1244 = vmul.f32 %v1164, 1.0614054
    %v1245 = vmul.f32 %v1165, 1.0614054
    %v1246 = vmul.f32 %v1166, 1.0614054
    %v1247 = vmul.f32 %v1167, 1.0614054
    %v1248 = vmul.f32 %v1168, 1.0614054
    %v1249 = vadd.f32 %v1233, -1.4531521
    %v1250 = vadd.f32 %v1234, -1.4531521
    %v1251 = vadd.f32 %v1235, -1.4531521
    %v1252 = vadd.f32 %v1236, -1.4531521
    %v1253 = vadd.f32 %v1237, -1.4531521
    %v1254 = vadd.f32 %v1238, -1.4531521
    %v1255 = vadd.f32 %v1239, -1.4531521
    %v1256 = vadd.f32 %v1240, -1.4531521
    %v1257 = vadd.f32 %v1241, -1.4531521
    %v1258 = vadd.f32 %v1242, -1.4531521
    %v1259 = vadd.f32 %v1243, -1.4531521
    %v1260 = vadd.f32 %v1244, -1.4531521
    %v1261 = vadd.f32 %v1245, -1.4531521
    %v1262 = vadd.f32 %v1246, -1.4531521
    %v1263 = vadd.f32 %v1247, -1.4531521
    %v1264 = vadd.f32 %v1248, -1.4531521
    %v1265 = vmul.f32 %v1249, %v1153
    %v1266 = vmul.f32 %v1250, %v1154
    %v1267 = vmul.f32 %v1251, %v1155
    %v1268 = vmul.f32 %v1252, %v1156
    %v1269 = vmul.f32 %v1253, %v1157
    %v1270 = vmul.f32 %v1254, %v1158
    %v1271 = vmul.f32 %v1255, %v1159
    %v1272 = vmul.f32 %v1256, %v1160
    %v1273 = vmul.f32 %v1257, %v1161
    %v1274 = vmul.f32 %v1258, %v1162
    %v1275 = vmul.f32 %v1259, %v1163
    %v1276 = vmul.f32 %v1260, %v1164
    %v1277 = vmul.f32 %v1261, %v1165
    %v1278 = vmul.f32 %v1262, %v1166
    %v1279 = vmul.f32 %v1263, %v1167
    %v1280 = vmul.f32 %v1264, %v1168
    %v1281 = vadd.f32 %v1265, 1.4214138
    %v1282 = vadd.f32 %v1266, 1.4214138
    %v1283 = vadd.f32 %v1267, 1.4214138
    %v1284 = vadd.f32 %v1268, 1.4214138
    %v1285 = vadd.f32 %v1269, 1.4214138
    %v1286 = vadd.f32 %v1270, 1.4214138
    %v1287 = vadd.f32 %v1271, 1.4214138
    %v1288 = vadd.f32 %v1272, 1.4214138
    %v1289 = vadd.f32 %v1273, 1.4214138
    %v1290 = vadd.f32 %v1274, 1.4214138
    %v1291 = vadd.f32 %v1275, 1.4214138
    %v1292 = vadd.f32 %v1276, 1.4214138
    %v1293 = vadd.f32 %v1277, 1.4214138
    %v1294 = vadd.f32 %v1278, 1.4214138
    %v1295 = vadd.f32 %v1279, 1.4214138
    %v1296 = vadd.f32 %v1280, 1.4214138
    %v1297 = vmul.f32 %v1281, %v1153
    %v1298 = vmul.f32 %v1282, %v1154
    %v1299 = vmul.f32 %v1283, %v1155
    %v1300 = vmul.f32 %v1284, %v1156
    %v1301 = vmul.f32 %v1285, %v1157
    %v1302 = vmul.f32 %v1286, %v1158
    %v1303 = vmul.f32 %v1287, %v1159
    %v1304 = vmul.f32 %v1288, %v1160
    %v1305 = vmul.f32 %v1289, %v1161
    %v1306 = vmul.f32 %v1290, %v1162
    %v1307 = vmul.f32 %v1291, %v1163
    %v1308 = vmul.f32 %v1292, %v1164
    %v1309 = vmul.f32 %v1293, %v1165
    %v1310 = vmul.f32 %v1294, %v1166
    %v1311 = vmul.f32 %v1295, %v1167
    %v1312 = vmul.f32 %v1296, %v1168
    %v1313 = vadd.f32 %v1297, -0.28449672
    %v1314 = vadd.f32 %v1298, -0.28449672
    %v1315 = vadd.f32 %v1299, -0.28449672
    %v1316 = vadd.f32 %v1300, -0.28449672
    %v1317 = vadd.f32 %v1301, -0.28449672
    %v1318 = vadd.f32 %v1302, -0.28449672
    %v1319 = vadd.f32 %v1303, -0.28449672
    %v1320 = vadd.f32 %v1304, -0.28449672
    %v1321 = vadd.f32 %v1305, -0.28449672
    %v1322 = vadd.f32 %v1306, -0.28449672
    %v1323 = vadd.f32 %v1307, -0.28449672
    %v1324 = vadd.f32 %v1308, -0.28449672
    %v1325 = vadd.f32 %v1309, -0.28449672
    %v1326 = vadd.f32 %v1310, -0.28449672
    %v1327 = vadd.f32 %v1311, -0.28449672
    %v1328 = vadd.f32 %v1312, -0.28449672
    %v1329 = vmul.f32 %v1313, %v1153
    %v1330 = vmul.f32 %v1314, %v1154
    %v1331 = vmul.f32 %v1315, %v1155
    %v1332 = vmul.f32 %v1316, %v1156
    %v1333 = vmul.f32 %v1317, %v1157
    %v1334 = vmul.f32 %v1318, %v1158
    %v1335 = vmul.f32 %v1319, %v1159
    %v1336 = vmul.f32 %v1320, %v1160
    %v1337 = vmul.f32 %v1321, %v1161
    %v1338 = vmul.f32 %v1322, %v1162
    %v1339 = vmul.f32 %v1323, %v1163
    %v1340 = vmul.f32 %v1324, %v1164
    %v1341 = vmul.f32 %v1325, %v1165
    %v1342 = vmul.f32 %v1326, %v1166
    %v1343 = vmul.f32 %v1327, %v1167
    %v1344 = vmul.f32 %v1328, %v1168
    %v1345 = vadd.f32 %v1329, 0.2548296
    %v1346 = vadd.f32 %v1330, 0.2548296
    %v1347 = vadd.f32 %v1331, 0.2548296
    %v1348 = vadd.f32 %v1332, 0.2548296
    %v1349 = vadd.f32 %v1333, 0.2548296
    %v1350 = vadd.f32 %v1334, 0.2548296
    %v1351 = vadd.f32 %v1335, 0.2548296
    %v1352 = vadd.f32 %v1336, 0.2548296
    %v1353 = vadd.f32 %v1337, 0.2548296
    %v1354 = vadd.f32 %v1338, 0.2548296
    %v1355 = vadd.f32 %v1339, 0.2548296
    %v1356 = vadd.f32 %v1340, 0.2548296
    %v1357 = vadd.f32 %v1341, 0.2548296
    %v1358 = vadd.f32 %v1342, 0.2548296
    %v1359 = vadd.f32 %v1343, 0.2548296
    %v1360 = vadd.f32 %v1344, 0.2548296
    %v1361 = vmul.f32 %v1345, %v1153
    %v1362 = vmul.f32 %v1346, %v1154
    %v1363 = vmul.f32 %v1347, %v1155
    %v1364 = vmul.f32 %v1348, %v1156
    %v1365 = vmul.f32 %v1349, %v1157
    %v1366 = vmul.f32 %v1350, %v1158
    %v1367 = vmul.f32 %v1351, %v1159
    %v1368 = vmul.f32 %v1352, %v1160
    %v1369 = vmul.f32 %v1353, %v1161
    %v1370 = vmul.f32 %v1354, %v1162
    %v1371 = vmul.f32 %v1355, %v1163
    %v1372 = vmul.f32 %v1356, %v1164
    %v1373 = vmul.f32 %v1357, %v1165
    %v1374 = vmul.f32 %v1358, %v1166
    %v1375 = vmul.f32 %v1359, %v1167
    %v1376 = vmul.f32 %v1360, %v1168
    %v1377 = vmul.f32 %v1361, %v1202
    %v1378 = vmul.f32 %v1362, %v1204
    %v1379 = vmul.f32 %v1363, %v1206
    %v1380 = vmul.f32 %v1364, %v1208
    %v1381 = vmul.f32 %v1365, %v1210
    %v1382 = vmul.f32 %v1366, %v1212
    %v1383 = vmul.f32 %v1367, %v1214
    %v1384 = vmul.f32 %v1368, %v1216
    %v1385 = vmul.f32 %v1369, %v1218
    %v1386 = vmul.f32 %v1370, %v1220
    %v1387 = vmul.f32 %v1371, %v1222
    %v1388 = vmul.f32 %v1372, %v1224
    %v1389 = vmul.f32 %v1373, %v1226
    %v1390 = vmul.f32 %v1374, %v1228
    %v1391 = vmul.f32 %v1375, %v1230
    %v1392 = vmul.f32 %v1376, %v1232
    %v1393 = vsub.f32 1.0, %v1377
    %v1394 = vsub.f32 1.0, %v1378
    %v1395 = vsub.f32 1.0, %v1379
    %v1396 = vsub.f32 1.0, %v1380
    %v1397 = vsub.f32 1.0, %v1381
    %v1398 = vsub.f32 1.0, %v1382
    %v1399 = vsub.f32 1.0, %v1383
    %v1400 = vsub.f32 1.0, %v1384
    %v1401 = vsub.f32 1.0, %v1385
    %v1402 = vsub.f32 1.0, %v1386
    %v1403 = vsub.f32 1.0, %v1387
    %v1404 = vsub.f32 1.0, %v1388
    %v1405 = vsub.f32 1.0, %v1389
    %v1406 = vsub.f32 1.0, %v1390
    %v1407 = vsub.f32 1.0, %v1391
    %v1408 = vsub.f32 1.0, %v1392
    %vm1409 = vcmp.lt.f32.partialorder %v1089, 0.0
    %vm1410 = vcmp.lt.f32.partialorder %v1090, 0.0
    %vm1411 = vcmp.lt.f32.partialorder %v1091, 0.0
    %vm1412 = vcmp.lt.f32.partialorder %v1092, 0.0
    %vm1413 = vcmp.lt.f32.partialorder %v1093, 0.0
    %vm1414 = vcmp.lt.f32.partialorder %v1094, 0.0
    %vm1415 = vcmp.lt.f32.partialorder %v1095, 0.0
    %vm1416 = vcmp.lt.f32.partialorder %v1096, 0.0
    %vm1417 = vcmp.lt.f32.partialorder %v1097, 0.0
    %vm1418 = vcmp.lt.f32.partialorder %v1098, 0.0
    %vm1419 = vcmp.lt.f32.partialorder %v1099, 0.0
    %vm1420 = vcmp.lt.f32.partialorder %v1100, 0.0
    %vm1421 = vcmp.lt.f32.partialorder %v1101, 0.0
    %vm1422 = vcmp.lt.f32.partialorder %v1102, 0.0
    %vm1423 = vcmp.lt.f32.partialorder %v1103, 0.0
    %vm1424 = vcmp.lt.f32.partialorder %v1104, 0.0
    %v1425 = vsub.f32 0.0, %v1393
    %v1426 = vsub.f32 0.0, %v1394
    %v1427 = vsub.f32 0.0, %v1395
    %v1428 = vsub.f32 0.0, %v1396
    %v1429 = vsub.f32 0.0, %v1397
    %v1430 = vsub.f32 0.0, %v1398
    %v1431 = vsub.f32 0.0, %v1399
    %v1432 = vsub.f32 0.0, %v1400
    %v1433 = vsub.f32 0.0, %v1401
    %v1434 = vsub.f32 0.0, %v1402
    %v1435 = vsub.f32 0.0, %v1403
    %v1436 = vsub.f32 0.0, %v1404
    %v1437 = vsub.f32 0.0, %v1405
    %v1438 = vsub.f32 0.0, %v1406
    %v1439 = vsub.f32 0.0, %v1407
    %v1440 = vsub.f32 0.0, %v1408
    %v1441 = vsel %vm1409, %v1425, %v1393
    %v1442 = vsel %vm1410, %v1426, %v1394
    %v1443 = vsel %vm1411, %v1427, %v1395
    %v1444 = vsel %vm1412, %v1428, %v1396
    %v1445 = vsel %vm1413, %v1429, %v1397
    %v1446 = vsel %vm1414, %v1430, %v1398
    %v1447 = vsel %vm1415, %v1431, %v1399
    %v1448 = vsel %vm1416, %v1432, %v1400
    %v1449 = vsel %vm1417, %v1433, %v1401
    %v1450 = vsel %vm1418, %v1434, %v1402
    %v1451 = vsel %vm1419, %v1435, %v1403
    %v1452 = vsel %vm1420, %v1436, %v1404
    %v1453 = vsel %vm1421, %v1437, %v1405
    %v1454 = vsel %vm1422, %v1438, %v1406
    %v1455 = vsel %vm1423, %v1439, %v1407
    %v1456 = vsel %vm1424, %v1440, %v1408
    %v1457 = vadd.f32 %v1441, 1.0
    %v1458 = vadd.f32 %v1442, 1.0
    %v1459 = vadd.f32 %v1443, 1.0
    %v1460 = vadd.f32 %v1444, 1.0
    %v1461 = vadd.f32 %v1445, 1.0
    %v1462 = vadd.f32 %v1446, 1.0
    %v1463 = vadd.f32 %v1447, 1.0
    %v1464 = vadd.f32 %v1448, 1.0
    %v1465 = vadd.f32 %v1449, 1.0
    %v1466 = vadd.f32 %v1450, 1.0
    %v1467 = vadd.f32 %v1451, 1.0
    %v1468 = vadd.f32 %v1452, 1.0
    %v1469 = vadd.f32 %v1453, 1.0
    %v1470 = vadd.f32 %v1454, 1.0
    %v1471 = vadd.f32 %v1455, 1.0
    %v1472 = vadd.f32 %v1456, 1.0
    %v1473 = vmul.f32 %v1073, %v1457
    %v1474 = vmul.f32 %v1074, %v1458
    %v1475 = vmul.f32 %v1075, %v1459
    %v1476 = vmul.f32 %v1076, %v1460
    %v1477 = vmul.f32 %v1077, %v1461
    %v1478 = vmul.f32 %v1078, %v1462
    %v1479 = vmul.f32 %v1079, %v1463
    %v1480 = vmul.f32 %v1080, %v1464
    %v1481 = vmul.f32 %v1081, %v1465
    %v1482 = vmul.f32 %v1082, %v1466
    %v1483 = vmul.f32 %v1083, %v1467
    %v1484 = vmul.f32 %v1084, %v1468
    %v1485 = vmul.f32 %v1085, %v1469
    %v1486 = vmul.f32 %v1086, %v1470
    %v1487 = vmul.f32 %v1087, %v1471
    %v1488 = vmul.f32 %v1088, %v1472
    %v1489 = vpack.c.bf16 %v1481, %v1473
    %v1490 = vpack.c.bf16 %v1482, %v1474
    %v1491 = vpack.c.bf16 %v1483, %v1475
    %v1492 = vpack.c.bf16 %v1484, %v1476
    %v1493 = vpack.c.bf16 %v1485, %v1477
    %v1494 = vpack.c.bf16 %v1486, %v1478
    %v1495 = vpack.c.bf16 %v1487, %v1479
    %v1496 = vpack.c.bf16 %v1488, %v1480
    %v1497 = vld [vmem:[#allocation8] sm:$0xff]
    %v1498 = vld [vmem:[#allocation8 + $0x8] sm:$0xff]
    %v1499 = vld [vmem:[#allocation8 + $0x10] sm:$0xff]
    %v1500 = vld [vmem:[#allocation8 + $0x18] sm:$0xff]
    %v1501 = vld [vmem:[#allocation8 + $0x20] sm:$0xff]
    %v1502 = vld [vmem:[#allocation8 + $0x28] sm:$0xff]
    %v1503 = vld [vmem:[#allocation8 + $0x30] sm:$0xff]
    %v1504 = vld [vmem:[#allocation8 + $0x38] sm:$0xff]
    %v1505 = vld [vmem:[#allocation8 + $0x40] sm:$0xff]
    %v1506 = vld [vmem:[#allocation8 + $0x48] sm:$0xff]
    %v1507 = vld [vmem:[#allocation8 + $0x50] sm:$0xff]
    %v1508 = vld [vmem:[#allocation8 + $0x58] sm:$0xff]
    %v1509 = vld [vmem:[#allocation8 + $0x60] sm:$0xff]
    %v1510 = vld [vmem:[#allocation8 + $0x68] sm:$0xff]
    %v1511 = vld [vmem:[#allocation8 + $0x70] sm:$0xff]
    %v1512 = vld [vmem:[#allocation8 + $0x78] sm:$0xff]
    %v1513 = vld [vmem:[#allocation8 + $0x80] sm:$0xff]
    %v1514 = vld [vmem:[#allocation8 + $0x88] sm:$0xff]
    %v1515 = vld [vmem:[#allocation8 + $0x90] sm:$0xff]
    %v1516 = vld [vmem:[#allocation8 + $0x98] sm:$0xff]
    %v1517 = vld [vmem:[#allocation8 + $0xa0] sm:$0xff]
    %v1518 = vld [vmem:[#allocation8 + $0xa8] sm:$0xff]
    %v1519 = vld [vmem:[#allocation8 + $0xb0] sm:$0xff]
    %v1520 = vld [vmem:[#allocation8 + $0xb8] sm:$0xff]
    %v1521 = vld [vmem:[#allocation8 + $0xc0] sm:$0xff]
    %v1522 = vld [vmem:[#allocation8 + $0xc8] sm:$0xff]
    %v1523 = vld [vmem:[#allocation8 + $0xd0] sm:$0xff]
    %v1524 = vld [vmem:[#allocation8 + $0xd8] sm:$0xff]
    %v1525 = vld [vmem:[#allocation8 + $0xe0] sm:$0xff]
    %v1526 = vld [vmem:[#allocation8 + $0xe8] sm:$0xff]
    %v1527 = vld [vmem:[#allocation8 + $0xf0] sm:$0xff]
    %v1528 = vld [vmem:[#allocation8 + $0xf8] sm:$0xff]
    %v1529 = vld [vmem:[#allocation8 + $0x100] sm:$0xff]
    %v1530 = vld [vmem:[#allocation8 + $0x108] sm:$0xff]
    %v1531 = vld [vmem:[#allocation8 + $0x110] sm:$0xff]
    %v1532 = vld [vmem:[#allocation8 + $0x118] sm:$0xff]
    %v1533 = vld [vmem:[#allocation8 + $0x120] sm:$0xff]
    %v1534 = vld [vmem:[#allocation8 + $0x128] sm:$0xff]
    %v1535 = vld [vmem:[#allocation8 + $0x130] sm:$0xff]
    %v1536 = vld [vmem:[#allocation8 + $0x138] sm:$0xff]
    %v1537 = vld [vmem:[#allocation8 + $0x140] sm:$0xff]
    %v1538 = vld [vmem:[#allocation8 + $0x148] sm:$0xff]
    %v1539 = vld [vmem:[#allocation8 + $0x150] sm:$0xff]
    %v1540 = vld [vmem:[#allocation8 + $0x158] sm:$0xff]
    %v1541 = vld [vmem:[#allocation8 + $0x160] sm:$0xff]
    %v1542 = vld [vmem:[#allocation8 + $0x168] sm:$0xff]
    %v1543 = vld [vmem:[#allocation8 + $0x170] sm:$0xff]
    %v1544 = vld [vmem:[#allocation8 + $0x178] sm:$0xff]
    %v1545 = vld [vmem:[#allocation8 + $0x180] sm:$0xff]
    %v1546 = vld [vmem:[#allocation8 + $0x188] sm:$0xff]
    %v1547 = vld [vmem:[#allocation8 + $0x190] sm:$0xff]
    %v1548 = vld [vmem:[#allocation8 + $0x198] sm:$0xff]
    %v1549 = vld [vmem:[#allocation8 + $0x1a0] sm:$0xff]
    %v1550 = vld [vmem:[#allocation8 + $0x1a8] sm:$0xff]
    %v1551 = vld [vmem:[#allocation8 + $0x1b0] sm:$0xff]
    %v1552 = vld [vmem:[#allocation8 + $0x1b8] sm:$0xff]
    %v1553 = vld [vmem:[#allocation8 + $0x1c0] sm:$0xff]
    %v1554 = vld [vmem:[#allocation8 + $0x1c8] sm:$0xff]
    %v1555 = vld [vmem:[#allocation8 + $0x1d0] sm:$0xff]
    %v1556 = vld [vmem:[#allocation8 + $0x1d8] sm:$0xff]
    %v1557 = vld [vmem:[#allocation8 + $0x1e0] sm:$0xff]
    %v1558 = vld [vmem:[#allocation8 + $0x1e8] sm:$0xff]
    %v1559 = vld [vmem:[#allocation8 + $0x1f0] sm:$0xff]
    %v1560 = vld [vmem:[#allocation8 + $0x1f8] sm:$0xff]
    %v1561 = vld [vmem:[#allocation8 + $0x200] sm:$0xff]
    %v1562 = vld [vmem:[#allocation8 + $0x208] sm:$0xff]
    %v1563 = vld [vmem:[#allocation8 + $0x210] sm:$0xff]
    %v1564 = vld [vmem:[#allocation8 + $0x218] sm:$0xff]
    %v1565 = vld [vmem:[#allocation8 + $0x220] sm:$0xff]
    %v1566 = vld [vmem:[#allocation8 + $0x228] sm:$0xff]
    %v1567 = vld [vmem:[#allocation8 + $0x230] sm:$0xff]
    %v1568 = vld [vmem:[#allocation8 + $0x238] sm:$0xff]
    %v1569 = vld [vmem:[#allocation8 + $0x240] sm:$0xff]
    %v1570 = vld [vmem:[#allocation8 + $0x248] sm:$0xff]
    %v1571 = vld [vmem:[#allocation8 + $0x250] sm:$0xff]
    %v1572 = vld [vmem:[#allocation8 + $0x258] sm:$0xff]
    %v1573 = vld [vmem:[#allocation8 + $0x260] sm:$0xff]
    %v1574 = vld [vmem:[#allocation8 + $0x268] sm:$0xff]
    %v1575 = vld [vmem:[#allocation8 + $0x270] sm:$0xff]
    %v1576 = vld [vmem:[#allocation8 + $0x278] sm:$0xff]
    %v1577 = vld [vmem:[#allocation8 + $0x280] sm:$0xff]
    %v1578 = vld [vmem:[#allocation8 + $0x288] sm:$0xff]
    %v1579 = vld [vmem:[#allocation8 + $0x290] sm:$0xff]
    %v1580 = vld [vmem:[#allocation8 + $0x298] sm:$0xff]
    %v1581 = vld [vmem:[#allocation8 + $0x2a0] sm:$0xff]
    %v1582 = vld [vmem:[#allocation8 + $0x2a8] sm:$0xff]
    %v1583 = vld [vmem:[#allocation8 + $0x2b0] sm:$0xff]
    %v1584 = vld [vmem:[#allocation8 + $0x2b8] sm:$0xff]
    %v1585 = vld [vmem:[#allocation8 + $0x2c0] sm:$0xff]
    %v1586 = vld [vmem:[#allocation8 + $0x2c8] sm:$0xff]
    %v1587 = vld [vmem:[#allocation8 + $0x2d0] sm:$0xff]
    %v1588 = vld [vmem:[#allocation8 + $0x2d8] sm:$0xff]
    %v1589 = vld [vmem:[#allocation8 + $0x2e0] sm:$0xff]
    %v1590 = vld [vmem:[#allocation8 + $0x2e8] sm:$0xff]
    %v1591 = vld [vmem:[#allocation8 + $0x2f0] sm:$0xff]
    %v1592 = vld [vmem:[#allocation8 + $0x2f8] sm:$0xff]
    %v1593 = vld [vmem:[#allocation8 + $0x300] sm:$0xff]
    %v1594 = vld [vmem:[#allocation8 + $0x308] sm:$0xff]
    %v1595 = vld [vmem:[#allocation8 + $0x310] sm:$0xff]
    %v1596 = vld [vmem:[#allocation8 + $0x318] sm:$0xff]
    %v1597 = vld [vmem:[#allocation8 + $0x320] sm:$0xff]
    %v1598 = vld [vmem:[#allocation8 + $0x328] sm:$0xff]
    %v1599 = vld [vmem:[#allocation8 + $0x330] sm:$0xff]
    %v1600 = vld [vmem:[#allocation8 + $0x338] sm:$0xff]
    %v1601 = vld [vmem:[#allocation8 + $0x340] sm:$0xff]
    %v1602 = vld [vmem:[#allocation8 + $0x348] sm:$0xff]
    %v1603 = vld [vmem:[#allocation8 + $0x350] sm:$0xff]
    %v1604 = vld [vmem:[#allocation8 + $0x358] sm:$0xff]
    %v1605 = vld [vmem:[#allocation8 + $0x360] sm:$0xff]
    %v1606 = vld [vmem:[#allocation8 + $0x368] sm:$0xff]
    %v1607 = vld [vmem:[#allocation8 + $0x370] sm:$0xff]
    %v1608 = vld [vmem:[#allocation8 + $0x378] sm:$0xff]
    %v1609 = vld [vmem:[#allocation8 + $0x380] sm:$0xff]
    %v1610 = vld [vmem:[#allocation8 + $0x388] sm:$0xff]
    %v1611 = vld [vmem:[#allocation8 + $0x390] sm:$0xff]
    %v1612 = vld [vmem:[#allocation8 + $0x398] sm:$0xff]
    %v1613 = vld [vmem:[#allocation8 + $0x3a0] sm:$0xff]
    %v1614 = vld [vmem:[#allocation8 + $0x3a8] sm:$0xff]
    %v1615 = vld [vmem:[#allocation8 + $0x3b0] sm:$0xff]
    %v1616 = vld [vmem:[#allocation8 + $0x3b8] sm:$0xff]
    %v1617 = vld [vmem:[#allocation8 + $0x3c0] sm:$0xff]
    %v1618 = vld [vmem:[#allocation8 + $0x3c8] sm:$0xff]
    %v1619 = vld [vmem:[#allocation8 + $0x3d0] sm:$0xff]
    %v1620 = vld [vmem:[#allocation8 + $0x3d8] sm:$0xff]
    %v1621 = vld [vmem:[#allocation8 + $0x3e0] sm:$0xff]
    %v1622 = vld [vmem:[#allocation8 + $0x3e8] sm:$0xff]
    %v1623 = vld [vmem:[#allocation8 + $0x3f0] sm:$0xff]
    %v1624 = vld [vmem:[#allocation8 + $0x3f8] sm:$0xff]
    %v1625 = vld [vmem:[#allocation10] sm:$0x3]
    %v1627 = vlaneseq
    %v1628 = vshrl.u32 %v1627, 7
    %v1629 = vsub.s32 0, %v1628
    %v1630 = vrot.slane %v1625, %v1629
    %v1631 = vlaneseq
    %v1632 = vshrl.u32 %v1631, 7
    %v1633 = vsub.s32 1, %v1632
    %v1634 = vrot.slane %v1625, %v1633
    %v1765 = vunpack.c.l.b16 %v1497
    %v1766 = vunpack.c.h.b16 %v1497
    %v1767 = vunpack.c.l.b16 %v1498
    %v1768 = vunpack.c.h.b16 %v1498
    %v1769 = vunpack.c.l.b16 %v1499
    %v1770 = vunpack.c.h.b16 %v1499
    %v1771 = vunpack.c.l.b16 %v1500
    %v1772 = vunpack.c.h.b16 %v1500
    %v1773 = vunpack.c.l.b16 %v1501
    %v1774 = vunpack.c.h.b16 %v1501
    %v1775 = vunpack.c.l.b16 %v1502
    %v1776 = vunpack.c.h.b16 %v1502
    %v1777 = vunpack.c.l.b16 %v1503
    %v1778 = vunpack.c.h.b16 %v1503
    %v1779 = vunpack.c.l.b16 %v1504
    %v1780 = vunpack.c.h.b16 %v1504
    %v1781 = vunpack.c.l.b16 %v1505
    %v1782 = vunpack.c.h.b16 %v1505
    %v1783 = vunpack.c.l.b16 %v1506
    %v1784 = vunpack.c.h.b16 %v1506
    %v1785 = vunpack.c.l.b16 %v1507
    %v1786 = vunpack.c.h.b16 %v1507
    %v1787 = vunpack.c.l.b16 %v1508
    %v1788 = vunpack.c.h.b16 %v1508
    %v1789 = vunpack.c.l.b16 %v1509
    %v1790 = vunpack.c.h.b16 %v1509
    %v1791 = vunpack.c.l.b16 %v1510
    %v1792 = vunpack.c.h.b16 %v1510
    %v1793 = vunpack.c.l.b16 %v1511
    %v1794 = vunpack.c.h.b16 %v1511
    %v1795 = vunpack.c.l.b16 %v1512
    %v1796 = vunpack.c.h.b16 %v1512
    %v1797 = vunpack.c.l.b16 %v1513
    %v1798 = vunpack.c.h.b16 %v1513
    %v1799 = vunpack.c.l.b16 %v1514
    %v1800 = vunpack.c.h.b16 %v1514
    %v1801 = vunpack.c.l.b16 %v1515
    %v1802 = vunpack.c.h.b16 %v1515
    %v1803 = vunpack.c.l.b16 %v1516
    %v1804 = vunpack.c.h.b16 %v1516
    %v1805 = vunpack.c.l.b16 %v1517
    %v1806 = vunpack.c.h.b16 %v1517
    %v1807 = vunpack.c.l.b16 %v1518
    %v1808 = vunpack.c.h.b16 %v1518
    %v1809 = vunpack.c.l.b16 %v1519
    %v1810 = vunpack.c.h.b16 %v1519
    %v1811 = vunpack.c.l.b16 %v1520
    %v1812 = vunpack.c.h.b16 %v1520
    %v1813 = vunpack.c.l.b16 %v1521
    %v1814 = vunpack.c.h.b16 %v1521
    %v1815 = vunpack.c.l.b16 %v1522
    %v1816 = vunpack.c.h.b16 %v1522
    %v1817 = vunpack.c.l.b16 %v1523
    %v1818 = vunpack.c.h.b16 %v1523
    %v1819 = vunpack.c.l.b16 %v1524
    %v1820 = vunpack.c.h.b16 %v1524
    %v1821 = vunpack.c.l.b16 %v1525
    %v1822 = vunpack.c.h.b16 %v1525
    %v1823 = vunpack.c.l.b16 %v1526
    %v1824 = vunpack.c.h.b16 %v1526
    %v1825 = vunpack.c.l.b16 %v1527
    %v1826 = vunpack.c.h.b16 %v1527
    %v1827 = vunpack.c.l.b16 %v1528
    %v1828 = vunpack.c.h.b16 %v1528
    %v1829 = vunpack.c.l.b16 %v1529
    %v1830 = vunpack.c.h.b16 %v1529
    %v1831 = vunpack.c.l.b16 %v1530
    %v1832 = vunpack.c.h.b16 %v1530
    %v1833 = vunpack.c.l.b16 %v1531
    %v1834 = vunpack.c.h.b16 %v1531
    %v1835 = vunpack.c.l.b16 %v1532
    %v1836 = vunpack.c.h.b16 %v1532
    %v1837 = vunpack.c.l.b16 %v1533
    %v1838 = vunpack.c.h.b16 %v1533
    %v1839 = vunpack.c.l.b16 %v1534
    %v1840 = vunpack.c.h.b16 %v1534
    %v1841 = vunpack.c.l.b16 %v1535
    %v1842 = vunpack.c.h.b16 %v1535
    %v1843 = vunpack.c.l.b16 %v1536
    %v1844 = vunpack.c.h.b16 %v1536
    %v1845 = vunpack.c.l.b16 %v1537
    %v1846 = vunpack.c.h.b16 %v1537
    %v1847 = vunpack.c.l.b16 %v1538
    %v1848 = vunpack.c.h.b16 %v1538
    %v1849 = vunpack.c.l.b16 %v1539
    %v1850 = vunpack.c.h.b16 %v1539
    %v1851 = vunpack.c.l.b16 %v1540
    %v1852 = vunpack.c.h.b16 %v1540
    %v1853 = vunpack.c.l.b16 %v1541
    %v1854 = vunpack.c.h.b16 %v1541
    %v1855 = vunpack.c.l.b16 %v1542
    %v1856 = vunpack.c.h.b16 %v1542
    %v1857 = vunpack.c.l.b16 %v1543
    %v1858 = vunpack.c.h.b16 %v1543
    %v1859 = vunpack.c.l.b16 %v1544
    %v1860 = vunpack.c.h.b16 %v1544
    %v1861 = vunpack.c.l.b16 %v1545
    %v1862 = vunpack.c.h.b16 %v1545
    %v1863 = vunpack.c.l.b16 %v1546
    %v1864 = vunpack.c.h.b16 %v1546
    %v1865 = vunpack.c.l.b16 %v1547
    %v1866 = vunpack.c.h.b16 %v1547
    %v1867 = vunpack.c.l.b16 %v1548
    %v1868 = vunpack.c.h.b16 %v1548
    %v1869 = vunpack.c.l.b16 %v1549
    %v1870 = vunpack.c.h.b16 %v1549
    %v1871 = vunpack.c.l.b16 %v1550
    %v1872 = vunpack.c.h.b16 %v1550
    %v1873 = vunpack.c.l.b16 %v1551
    %v1874 = vunpack.c.h.b16 %v1551
    %v1875 = vunpack.c.l.b16 %v1552
    %v1876 = vunpack.c.h.b16 %v1552
    %v1877 = vunpack.c.l.b16 %v1553
    %v1878 = vunpack.c.h.b16 %v1553
    %v1879 = vunpack.c.l.b16 %v1554
    %v1880 = vunpack.c.h.b16 %v1554
    %v1881 = vunpack.c.l.b16 %v1555
    %v1882 = vunpack.c.h.b16 %v1555
    %v1883 = vunpack.c.l.b16 %v1556
    %v1884 = vunpack.c.h.b16 %v1556
    %v1885 = vunpack.c.l.b16 %v1557
    %v1886 = vunpack.c.h.b16 %v1557
    %v1887 = vunpack.c.l.b16 %v1558
    %v1888 = vunpack.c.h.b16 %v1558
    %v1889 = vunpack.c.l.b16 %v1559
    %v1890 = vunpack.c.h.b16 %v1559
    %v1891 = vunpack.c.l.b16 %v1560
    %v1892 = vunpack.c.h.b16 %v1560
    %v1893 = vunpack.c.l.b16 %v1561
    %v1894 = vunpack.c.h.b16 %v1561
    %v1895 = vunpack.c.l.b16 %v1562
    %v1896 = vunpack.c.h.b16 %v1562
    %v1897 = vunpack.c.l.b16 %v1563
    %v1898 = vunpack.c.h.b16 %v1563
    %v1899 = vunpack.c.l.b16 %v1564
    %v1900 = vunpack.c.h.b16 %v1564
    %v1901 = vunpack.c.l.b16 %v1565
    %v1902 = vunpack.c.h.b16 %v1565
    %v1903 = vunpack.c.l.b16 %v1566
    %v1904 = vunpack.c.h.b16 %v1566
    %v1905 = vunpack.c.l.b16 %v1567
    %v1906 = vunpack.c.h.b16 %v1567
    %v1907 = vunpack.c.l.b16 %v1568
    %v1908 = vunpack.c.h.b16 %v1568
    %v1909 = vunpack.c.l.b16 %v1569
    %v1910 = vunpack.c.h.b16 %v1569
    %v1911 = vunpack.c.l.b16 %v1570
    %v1912 = vunpack.c.h.b16 %v1570
    %v1913 = vunpack.c.l.b16 %v1571
    %v1914 = vunpack.c.h.b16 %v1571
    %v1915 = vunpack.c.l.b16 %v1572
    %v1916 = vunpack.c.h.b16 %v1572
    %v1917 = vunpack.c.l.b16 %v1573
    %v1918 = vunpack.c.h.b16 %v1573
    %v1919 = vunpack.c.l.b16 %v1574
    %v1920 = vunpack.c.h.b16 %v1574
    %v1921 = vunpack.c.l.b16 %v1575
    %v1922 = vunpack.c.h.b16 %v1575
    %v1923 = vunpack.c.l.b16 %v1576
    %v1924 = vunpack.c.h.b16 %v1576
    %v1925 = vunpack.c.l.b16 %v1577
    %v1926 = vunpack.c.h.b16 %v1577
    %v1927 = vunpack.c.l.b16 %v1578
    %v1928 = vunpack.c.h.b16 %v1578
    %v1929 = vunpack.c.l.b16 %v1579
    %v1930 = vunpack.c.h.b16 %v1579
    %v1931 = vunpack.c.l.b16 %v1580
    %v1932 = vunpack.c.h.b16 %v1580
    %v1933 = vunpack.c.l.b16 %v1581
    %v1934 = vunpack.c.h.b16 %v1581
    %v1935 = vunpack.c.l.b16 %v1582
    %v1936 = vunpack.c.h.b16 %v1582
    %v1937 = vunpack.c.l.b16 %v1583
    %v1938 = vunpack.c.h.b16 %v1583
    %v1939 = vunpack.c.l.b16 %v1584
    %v1940 = vunpack.c.h.b16 %v1584
    %v1941 = vunpack.c.l.b16 %v1585
    %v1942 = vunpack.c.h.b16 %v1585
    %v1943 = vunpack.c.l.b16 %v1586
    %v1944 = vunpack.c.h.b16 %v1586
    %v1945 = vunpack.c.l.b16 %v1587
    %v1946 = vunpack.c.h.b16 %v1587
    %v1947 = vunpack.c.l.b16 %v1588
    %v1948 = vunpack.c.h.b16 %v1588
    %v1949 = vunpack.c.l.b16 %v1589
    %v1950 = vunpack.c.h.b16 %v1589
    %v1951 = vunpack.c.l.b16 %v1590
    %v1952 = vunpack.c.h.b16 %v1590
    %v1953 = vunpack.c.l.b16 %v1591
    %v1954 = vunpack.c.h.b16 %v1591
    %v1955 = vunpack.c.l.b16 %v1592
    %v1956 = vunpack.c.h.b16 %v1592
    %v1957 = vunpack.c.l.b16 %v1593
    %v1958 = vunpack.c.h.b16 %v1593
    %v1959 = vunpack.c.l.b16 %v1594
    %v1960 = vunpack.c.h.b16 %v1594
    %v1961 = vunpack.c.l.b16 %v1595
    %v1962 = vunpack.c.h.b16 %v1595
    %v1963 = vunpack.c.l.b16 %v1596
    %v1964 = vunpack.c.h.b16 %v1596
    %v1965 = vunpack.c.l.b16 %v1597
    %v1966 = vunpack.c.h.b16 %v1597
    %v1967 = vunpack.c.l.b16 %v1598
    %v1968 = vunpack.c.h.b16 %v1598
    %v1969 = vunpack.c.l.b16 %v1599
    %v1970 = vunpack.c.h.b16 %v1599
    %v1971 = vunpack.c.l.b16 %v1600
    %v1972 = vunpack.c.h.b16 %v1600
    %v1973 = vunpack.c.l.b16 %v1601
    %v1974 = vunpack.c.h.b16 %v1601
    %v1975 = vunpack.c.l.b16 %v1602
    %v1976 = vunpack.c.h.b16 %v1602
    %v1977 = vunpack.c.l.b16 %v1603
    %v1978 = vunpack.c.h.b16 %v1603
    %v1979 = vunpack.c.l.b16 %v1604
    %v1980 = vunpack.c.h.b16 %v1604
    %v1981 = vunpack.c.l.b16 %v1605
    %v1982 = vunpack.c.h.b16 %v1605
    %v1983 = vunpack.c.l.b16 %v1606
    %v1984 = vunpack.c.h.b16 %v1606
    %v1985 = vunpack.c.l.b16 %v1607
    %v1986 = vunpack.c.h.b16 %v1607
    %v1987 = vunpack.c.l.b16 %v1608
    %v1988 = vunpack.c.h.b16 %v1608
    %v1989 = vunpack.c.l.b16 %v1609
    %v1990 = vunpack.c.h.b16 %v1609
    %v1991 = vunpack.c.l.b16 %v1610
    %v1992 = vunpack.c.h.b16 %v1610
    %v1993 = vunpack.c.l.b16 %v1611
    %v1994 = vunpack.c.h.b16 %v1611
    %v1995 = vunpack.c.l.b16 %v1612
    %v1996 = vunpack.c.h.b16 %v1612
    %v1997 = vunpack.c.l.b16 %v1613
    %v1998 = vunpack.c.h.b16 %v1613
    %v1999 = vunpack.c.l.b16 %v1614
    %v2000 = vunpack.c.h.b16 %v1614
    %v2001 = vunpack.c.l.b16 %v1615
    %v2002 = vunpack.c.h.b16 %v1615
    %v2003 = vunpack.c.l.b16 %v1616
    %v2004 = vunpack.c.h.b16 %v1616
    %v2005 = vunpack.c.l.b16 %v1617
    %v2006 = vunpack.c.h.b16 %v1617
    %v2007 = vunpack.c.l.b16 %v1618
    %v2008 = vunpack.c.h.b16 %v1618
    %v2009 = vunpack.c.l.b16 %v1619
    %v2010 = vunpack.c.h.b16 %v1619
    %v2011 = vunpack.c.l.b16 %v1620
    %v2012 = vunpack.c.h.b16 %v1620
    %v2013 = vunpack.c.l.b16 %v1621
    %v2014 = vunpack.c.h.b16 %v1621
    %v2015 = vunpack.c.l.b16 %v1622
    %v2016 = vunpack.c.h.b16 %v1622
    %v2017 = vunpack.c.l.b16 %v1623
    %v2018 = vunpack.c.h.b16 %v1623
    %v2019 = vunpack.c.l.b16 %v1624
    %v2020 = vunpack.c.h.b16 %v1624
    %v2021 = vpack.c.b16 %v1767, %v1765
    %v2022 = vpack.c.b16 %v1768, %v1766
    %v2023 = vpack.c.b16 %v1771, %v1769
    %v2024 = vpack.c.b16 %v1772, %v1770
    %v2025 = vpack.c.b16 %v1775, %v1773
    %v2026 = vpack.c.b16 %v1776, %v1774
    %v2027 = vpack.c.b16 %v1779, %v1777
    %v2028 = vpack.c.b16 %v1780, %v1778
    %v2029 = vpack.c.b16 %v1783, %v1781
    %v2030 = vpack.c.b16 %v1784, %v1782
    %v2031 = vpack.c.b16 %v1787, %v1785
    %v2032 = vpack.c.b16 %v1788, %v1786
    %v2033 = vpack.c.b16 %v1791, %v1789
    %v2034 = vpack.c.b16 %v1792, %v1790
    %v2035 = vpack.c.b16 %v1795, %v1793
    %v2036 = vpack.c.b16 %v1796, %v1794
    %v2037 = vpack.c.b16 %v1799, %v1797
    %v2038 = vpack.c.b16 %v1800, %v1798
    %v2039 = vpack.c.b16 %v1803, %v1801
    %v2040 = vpack.c.b16 %v1804, %v1802
    %v2041 = vpack.c.b16 %v1807, %v1805
    %v2042 = vpack.c.b16 %v1808, %v1806
    %v2043 = vpack.c.b16 %v1811, %v1809
    %v2044 = vpack.c.b16 %v1812, %v1810
    %v2045 = vpack.c.b16 %v1815, %v1813
    %v2046 = vpack.c.b16 %v1816, %v1814
    %v2047 = vpack.c.b16 %v1819, %v1817
    %v2048 = vpack.c.b16 %v1820, %v1818
    %v2049 = vpack.c.b16 %v1823, %v1821
    %v2050 = vpack.c.b16 %v1824, %v1822
    %v2051 = vpack.c.b16 %v1827, %v1825
    %v2052 = vpack.c.b16 %v1828, %v1826
    %v2053 = vpack.c.b16 %v1831, %v1829
    %v2054 = vpack.c.b16 %v1832, %v1830
    %v2055 = vpack.c.b16 %v1835, %v1833
    %v2056 = vpack.c.b16 %v1836, %v1834
    %v2057 = vpack.c.b16 %v1839, %v1837
    %v2058 = vpack.c.b16 %v1840, %v1838
    %v2059 = vpack.c.b16 %v1843, %v1841
    %v2060 = vpack.c.b16 %v1844, %v1842
    %v2061 = vpack.c.b16 %v1847, %v1845
    %v2062 = vpack.c.b16 %v1848, %v1846
    %v2063 = vpack.c.b16 %v1851, %v1849
    %v2064 = vpack.c.b16 %v1852, %v1850
    %v2065 = vpack.c.b16 %v1855, %v1853
    %v2066 = vpack.c.b16 %v1856, %v1854
    %v2067 = vpack.c.b16 %v1859, %v1857
    %v2068 = vpack.c.b16 %v1860, %v1858
    %v2069 = vpack.c.b16 %v1863, %v1861
    %v2070 = vpack.c.b16 %v1864, %v1862
    %v2071 = vpack.c.b16 %v1867, %v1865
    %v2072 = vpack.c.b16 %v1868, %v1866
    %v2073 = vpack.c.b16 %v1871, %v1869
    %v2074 = vpack.c.b16 %v1872, %v1870
    %v2075 = vpack.c.b16 %v1875, %v1873
    %v2076 = vpack.c.b16 %v1876, %v1874
    %v2077 = vpack.c.b16 %v1879, %v1877
    %v2078 = vpack.c.b16 %v1880, %v1878
    %v2079 = vpack.c.b16 %v1883, %v1881
    %v2080 = vpack.c.b16 %v1884, %v1882
    %v2081 = vpack.c.b16 %v1887, %v1885
    %v2082 = vpack.c.b16 %v1888, %v1886
    %v2083 = vpack.c.b16 %v1891, %v1889
    %v2084 = vpack.c.b16 %v1892, %v1890
    %v2085 = vpack.c.b16 %v1895, %v1893
    %v2086 = vpack.c.b16 %v1896, %v1894
    %v2087 = vpack.c.b16 %v1899, %v1897
    %v2088 = vpack.c.b16 %v1900, %v1898
    %v2089 = vpack.c.b16 %v1903, %v1901
    %v2090 = vpack.c.b16 %v1904, %v1902
    %v2091 = vpack.c.b16 %v1907, %v1905
    %v2092 = vpack.c.b16 %v1908, %v1906
    %v2093 = vpack.c.b16 %v1911, %v1909
    %v2094 = vpack.c.b16 %v1912, %v1910
    %v2095 = vpack.c.b16 %v1915, %v1913
    %v2096 = vpack.c.b16 %v1916, %v1914
    %v2097 = vpack.c.b16 %v1919, %v1917
    %v2098 = vpack.c.b16 %v1920, %v1918
    %v2099 = vpack.c.b16 %v1923, %v1921
    %v2100 = vpack.c.b16 %v1924, %v1922
    %v2101 = vpack.c.b16 %v1927, %v1925
    %v2102 = vpack.c.b16 %v1928, %v1926
    %v2103 = vpack.c.b16 %v1931, %v1929
    %v2104 = vpack.c.b16 %v1932, %v1930
    %v2105 = vpack.c.b16 %v1935, %v1933
    %v2106 = vpack.c.b16 %v1936, %v1934
    %v2107 = vpack.c.b16 %v1939, %v1937
    %v2108 = vpack.c.b16 %v1940, %v1938
    %v2109 = vpack.c.b16 %v1943, %v1941
    %v2110 = vpack.c.b16 %v1944, %v1942
    %v2111 = vpack.c.b16 %v1947, %v1945
    %v2112 = vpack.c.b16 %v1948, %v1946
    %v2113 = vpack.c.b16 %v1951, %v1949
    %v2114 = vpack.c.b16 %v1952, %v1950
    %v2115 = vpack.c.b16 %v1955, %v1953
    %v2116 = vpack.c.b16 %v1956, %v1954
    %v2117 = vpack.c.b16 %v1959, %v1957
    %v2118 = vpack.c.b16 %v1960, %v1958
    %v2119 = vpack.c.b16 %v1963, %v1961
    %v2120 = vpack.c.b16 %v1964, %v1962
    %v2121 = vpack.c.b16 %v1967, %v1965
    %v2122 = vpack.c.b16 %v1968, %v1966
    %v2123 = vpack.c.b16 %v1971, %v1969
    %v2124 = vpack.c.b16 %v1972, %v1970
    %v2125 = vpack.c.b16 %v1975, %v1973
    %v2126 = vpack.c.b16 %v1976, %v1974
    %v2127 = vpack.c.b16 %v1979, %v1977
    %v2128 = vpack.c.b16 %v1980, %v1978
    %v2129 = vpack.c.b16 %v1983, %v1981
    %v2130 = vpack.c.b16 %v1984, %v1982
    %v2131 = vpack.c.b16 %v1987, %v1985
    %v2132 = vpack.c.b16 %v1988, %v1986
    %v2133 = vpack.c.b16 %v1991, %v1989
    %v2134 = vpack.c.b16 %v1992, %v1990
    %v2135 = vpack.c.b16 %v1995, %v1993
    %v2136 = vpack.c.b16 %v1996, %v1994
    %v2137 = vpack.c.b16 %v1999, %v1997
    %v2138 = vpack.c.b16 %v2000, %v1998
    %v2139 = vpack.c.b16 %v2003, %v2001
    %v2140 = vpack.c.b16 %v2004, %v2002
    %v2141 = vpack.c.b16 %v2007, %v2005
    %v2142 = vpack.c.b16 %v2008, %v2006
    %v2143 = vpack.c.b16 %v2011, %v2009
    %v2144 = vpack.c.b16 %v2012, %v2010
    %v2145 = vpack.c.b16 %v2015, %v2013
    %v2146 = vpack.c.b16 %v2016, %v2014
    %v2147 = vpack.c.b16 %v2019, %v2017
    %v2148 = vpack.c.b16 %v2020, %v2018
    %2277 = vmatprep.subr.bf16.mxu0 %v2022
    %2278 = vmatpush1.bf16.msra.mxu0 %v2021
    %2279 = vmatprep.subr.bf16.mxu0 %v2024
    %2280 = vmatpush1.bf16.msra.mxu0 %v2023
    %2281 = vmatprep.subr.bf16.mxu0 %v2026
    %2282 = vmatpush1.bf16.msra.mxu0 %v2025
    %2283 = vmatprep.subr.bf16.mxu0 %v2028
    %2284 = vmatpush1.bf16.msra.mxu0 %v2027
    %2285 = vmatprep.subr.bf16.mxu0 %v2030
    %2286 = vmatpush1.bf16.msra.mxu0 %v2029
    %2287 = vmatprep.subr.bf16.mxu0 %v2032
    %2288 = vmatpush1.bf16.msra.mxu0 %v2031
    %2289 = vmatprep.subr.bf16.mxu0 %v2034
    %2290 = vmatpush1.bf16.msra.mxu0 %v2033
    %2291 = vmatprep.subr.bf16.mxu0 %v2036
    %2292 = vmatpush1.bf16.msra.mxu0 %v2035
    %2293 = vmatprep.subr.bf16.mxu0 %v2038
    %2294 = vmatpush1.bf16.msra.mxu0 %v2037
    %2295 = vmatprep.subr.bf16.mxu0 %v2040
    %2296 = vmatpush1.bf16.msra.mxu0 %v2039
    %2297 = vmatprep.subr.bf16.mxu0 %v2042
    %2298 = vmatpush1.bf16.msra.mxu0 %v2041
    %2299 = vmatprep.subr.bf16.mxu0 %v2044
    %2300 = vmatpush1.bf16.msra.mxu0 %v2043
    %2301 = vmatprep.subr.bf16.mxu0 %v2046
    %2302 = vmatpush1.bf16.msra.mxu0 %v2045
    %2303 = vmatprep.subr.bf16.mxu0 %v2048
    %2304 = vmatpush1.bf16.msra.mxu0 %v2047
    %2305 = vmatprep.subr.bf16.mxu0 %v2050
    %2306 = vmatpush1.bf16.msra.mxu0 %v2049
    %2307 = vmatprep.subr.bf16.mxu0 %v2052
    %2308 = vmatpush1.bf16.msra.mxu0 %v2051
    %2309 = vmatprep.mubr.bf16.mxu0 %v1490
    %2310 = vmatmul.mubr.bf16.gmra.mrb[0].mxu0 %v1489
    %v2311 = vpop.f32.mrb[0].mxu0
    %v2312 = vadd.f32 %v1630, %v2311
    %v2313 = vpop.f32.mrb[0].mxu0
    %v2314 = vadd.f32 %v1634, %v2313
    %v2315 = vpop.f32.mrb[0].mxu0
    %v2316 = vadd.f32 %v1630, %v2315
    %v2317 = vpop.f32.mrb[0].mxu0
    %v2318 = vadd.f32 %v1634, %v2317
    %2319 = vdwg.mxu0
    %2320 = vmatprep.subr.bf16.mxu0 %v2054
    %2321 = vmatpush1.bf16.msra.mxu0 %v2053
    %2322 = vmatprep.subr.bf16.mxu0 %v2056
    %2323 = vmatpush1.bf16.msra.mxu0 %v2055
    %2324 = vmatprep.subr.bf16.mxu0 %v2058
    %2325 = vmatpush1.bf16.msra.mxu0 %v2057
    %2326 = vmatprep.subr.bf16.mxu0 %v2060
    %2327 = vmatpush1.bf16.msra.mxu0 %v2059
    %2328 = vmatprep.subr.bf16.mxu0 %v2062
    %2329 = vmatpush1.bf16.msra.mxu0 %v2061
    %2330 = vmatprep.subr.bf16.mxu0 %v2064
    %2331 = vmatpush1.bf16.msra.mxu0 %v2063
    %2332 = vmatprep.subr.bf16.mxu0 %v2066
    %2333 = vmatpush1.bf16.msra.mxu0 %v2065
    %2334 = vmatprep.subr.bf16.mxu0 %v2068
    %2335 = vmatpush1.bf16.msra.mxu0 %v2067
    %2336 = vmatprep.subr.bf16.mxu0 %v2070
    %2337 = vmatpush1.bf16.msra.mxu0 %v2069
    %2338 = vmatprep.subr.bf16.mxu0 %v2072
    %2339 = vmatpush1.bf16.msra.mxu0 %v2071
    %2340 = vmatprep.subr.bf16.mxu0 %v2074
    %2341 = vmatpush1.bf16.msra.mxu0 %v2073
    %2342 = vmatprep.subr.bf16.mxu0 %v2076
    %2343 = vmatpush1.bf16.msra.mxu0 %v2075
    %2344 = vmatprep.subr.bf16.mxu0 %v2078
    %2345 = vmatpush1.bf16.msra.mxu0 %v2077
    %2346 = vmatprep.subr.bf16.mxu0 %v2080
    %2347 = vmatpush1.bf16.msra.mxu0 %v2079
    %2348 = vmatprep.subr.bf16.mxu0 %v2082
    %2349 = vmatpush1.bf16.msra.mxu0 %v2081
    %2350 = vmatprep.subr.bf16.mxu0 %v2084
    %2351 = vmatpush1.bf16.msra.mxu0 %v2083
    %2352 = vmatprep.mubr.bf16.mxu0 %v1492
    %2353 = vmatmul.mubr.bf16.gmra.mrb[0].mxu0 %v1491
    %v2354 = vpop.f32.mrb[0].mxu0
    %v2355 = vadd.f32 %v2312, %v2354
    %v2356 = vpop.f32.mrb[0].mxu0
    %v2357 = vadd.f32 %v2314, %v2356
    %v2358 = vpop.f32.mrb[0].mxu0
    %v2359 = vadd.f32 %v2316, %v2358
    %v2360 = vpop.f32.mrb[0].mxu0
    %v2361 = vadd.f32 %v2318, %v2360
    %2362 = vdwg.mxu0
    %2363 = vmatprep.subr.bf16.mxu0 %v2086
    %2364 = vmatpush1.bf16.msra.mxu0 %v2085
    %2365 = vmatprep.subr.bf16.mxu0 %v2088
    %2366 = vmatpush1.bf16.msra.mxu0 %v2087
    %2367 = vmatprep.subr.bf16.mxu0 %v2090
    %2368 = vmatpush1.bf16.msra.mxu0 %v2089
    %2369 = vmatprep.subr.bf16.mxu0 %v2092
    %2370 = vmatpush1.bf16.msra.mxu0 %v2091
    %2371 = vmatprep.subr.bf16.mxu0 %v2094
    %2372 = vmatpush1.bf16.msra.mxu0 %v2093
    %2373 = vmatprep.subr.bf16.mxu0 %v2096
    %2374 = vmatpush1.bf16.msra.mxu0 %v2095
    %2375 = vmatprep.subr.bf16.mxu0 %v2098
    %2376 = vmatpush1.bf16.msra.mxu0 %v2097
    %2377 = vmatprep.subr.bf16.mxu0 %v2100
    %2378 = vmatpush1.bf16.msra.mxu0 %v2099
    %2379 = vmatprep.subr.bf16.mxu0 %v2102
    %2380 = vmatpush1.bf16.msra.mxu0 %v2101
    %2381 = vmatprep.subr.bf16.mxu0 %v2104
    %2382 = vmatpush1.bf16.msra.mxu0 %v2103
    %2383 = vmatprep.subr.bf16.mxu0 %v2106
    %2384 = vmatpush1.bf16.msra.mxu0 %v2105
    %2385 = vmatprep.subr.bf16.mxu0 %v2108
    %2386 = vmatpush1.bf16.msra.mxu0 %v2107
    %2387 = vmatprep.subr.bf16.mxu0 %v2110
    %2388 = vmatpush1.bf16.msra.mxu0 %v2109
    %2389 = vmatprep.subr.bf16.mxu0 %v2112
    %2390 = vmatpush1.bf16.msra.mxu0 %v2111
    %2391 = vmatprep.subr.bf16.mxu0 %v2114
    %2392 = vmatpush1.bf16.msra.mxu0 %v2113
    %2393 = vmatprep.subr.bf16.mxu0 %v2116
    %2394 = vmatpush1.bf16.msra.mxu0 %v2115
    %2395 = vmatprep.mubr.bf16.mxu0 %v1494
    %2396 = vmatmul.mubr.bf16.gmra.mrb[0].mxu0 %v1493
    %v2397 = vpop.f32.mrb[0].mxu0
    %v2398 = vadd.f32 %v2355, %v2397
    %v2399 = vpop.f32.mrb[0].mxu0
    %v2400 = vadd.f32 %v2357, %v2399
    %v2401 = vpop.f32.mrb[0].mxu0
    %v2402 = vadd.f32 %v2359, %v2401
    %v2403 = vpop.f32.mrb[0].mxu0
    %v2404 = vadd.f32 %v2361, %v2403
    %2405 = vdwg.mxu0
    %2406 = vmatprep.subr.bf16.mxu0 %v2118
    %2407 = vmatpush1.bf16.msra.mxu0 %v2117
    %2408 = vmatprep.subr.bf16.mxu0 %v2120
    %2409 = vmatpush1.bf16.msra.mxu0 %v2119
    %2410 = vmatprep.subr.bf16.mxu0 %v2122
    %2411 = vmatpush1.bf16.msra.mxu0 %v2121
    %2412 = vmatprep.subr.bf16.mxu0 %v2124
    %2413 = vmatpush1.bf16.msra.mxu0 %v2123
    %2414 = vmatprep.subr.bf16.mxu0 %v2126
    %2415 = vmatpush1.bf16.msra.mxu0 %v2125
    %2416 = vmatprep.subr.bf16.mxu0 %v2128
    %2417 = vmatpush1.bf16.msra.mxu0 %v2127
    %2418 = vmatprep.subr.bf16.mxu0 %v2130
    %2419 = vmatpush1.bf16.msra.mxu0 %v2129
    %2420 = vmatprep.subr.bf16.mxu0 %v2132
    %2421 = vmatpush1.bf16.msra.mxu0 %v2131
    %2422 = vmatprep.subr.bf16.mxu0 %v2134
    %2423 = vmatpush1.bf16.msra.mxu0 %v2133
    %2424 = vmatprep.subr.bf16.mxu0 %v2136
    %2425 = vmatpush1.bf16.msra.mxu0 %v2135
    %2426 = vmatprep.subr.bf16.mxu0 %v2138
    %2427 = vmatpush1.bf16.msra.mxu0 %v2137
    %2428 = vmatprep.subr.bf16.mxu0 %v2140
    %2429 = vmatpush1.bf16.msra.mxu0 %v2139
    %2430 = vmatprep.subr.bf16.mxu0 %v2142
    %2431 = vmatpush1.bf16.msra.mxu0 %v2141
    %2432 = vmatprep.subr.bf16.mxu0 %v2144
    %2433 = vmatpush1.bf16.msra.mxu0 %v2143
    %2434 = vmatprep.subr.bf16.mxu0 %v2146
    %2435 = vmatpush1.bf16.msra.mxu0 %v2145
    %2436 = vmatprep.subr.bf16.mxu0 %v2148
    %2437 = vmatpush1.bf16.msra.mxu0 %v2147
    %2438 = vmatprep.mubr.bf16.mxu0 %v1496
    %2439 = vmatmul.mubr.bf16.gmra.mrb[0].mxu0 %v1495
    %v2440 = vpop.f32.mrb[0].mxu0
    %v2441 = vadd.f32 %v2398, %v2440
    %v2442 = vpop.f32.mrb[0].mxu0
    %v2443 = vadd.f32 %v2400, %v2442
    %v2444 = vpop.f32.mrb[0].mxu0
    %v2445 = vadd.f32 %v2402, %v2444
    %v2446 = vpop.f32.mrb[0].mxu0
    %v2447 = vadd.f32 %v2404, %v2446
    %2448 = vdwg.mxu0
    %v2449 = vpack.c.bf16 %v2445, %v2441
    %v2450 = vpack.c.bf16 %v2447, %v2443
    %v2453 = vunpack.c.l.b16 %v2449
    %v2454 = vunpack.c.l.b16 %v2450
    %v2455 = vunpack.c.h.b16 %v2449
    %v2456 = vunpack.c.h.b16 %v2450
    %v2457 = vpack.c.b16 %v2454, %v2453
    %v2458 = vpack.c.b16 %v2456, %v2455
    %2461 = vst [vmem:[#allocation11] sm:$0xff] %v2457
    %2462 = vst [vmem:[#allocation11 + $0x8] sm:$0xff] %v2458
    // Predicated region
    $region42: #{tpu_custom_call.1} parent=1 // pred_check
      _
    $region43: #{tpu_custom_call.1} parent=1 // pred_check_branch
      %2464 = sbr.rel (0) target = $region45
    $region44: #{tpu_custom_call.1} parent=1 // pred_region
      %s2466 = ssub.s32 256, 256
      %2467 = vsyncadd [#allocation4], %s2466
      %s2468 = sshll.u32 [#allocation11], 4
      %s2469 = int_to_ptr.vmem [resolvable:$true] %s2468
      %2474 = dma.vmem_to_hbm [thread:$0]  %s2469, 256, %s5, [#allocation4], 128, 128, 8
    $region45: #{tpu_custom_call.1} parent=1 // pred_fallthru
      _
    // Predicated region
    $region46: #{tpu_custom_call.1} parent=1 // pred_check
      _
    $region47: #{tpu_custom_call.1} parent=1 // pred_check_branch
      %2476 = sbr.rel (0) target = $region49
    $region48: #{tpu_custom_call.1} parent=1 // pred_region
      %2477 = dma.done [#allocation4], 256
    $region49: #{tpu_custom_call.1} parent=1 // pred_fallthru
      _
    %2478 = vsyncpa [#allocation3], 1
    %2479 = vsyncpa [#allocation6], 1
    %2480 = vsyncpa [#allocation9], 1
    %2481 = vsyncpa [#allocation4], 1

// kernel: tpu_custom_call.1
$region0: #{tpu_custom_call.1}
  #allocation0 [shape = 'u32[]', space=smem, size = 0x4, offset = 0x4, fixed_abs, tag = 'smem constant byte address 0x4 - core index']
  #allocation1 [shape = 'u32[144,128]{1,0:T(1,128)}', space=vmem, size = 0x12000, scoped, tag = 'internal scratch']
  %s0 = inlined_call_operand.hbm [shape: f32[16,256], index: 0, kind: input, shape index: {}]
  %s1 = inlined_call_operand.hbm [shape: bf16[256,1024], index: 1, kind: input, shape index: {}]
  %s2 = inlined_call_operand.hbm [shape: f32[1,1024], index: 2, kind: input, shape index: {}]
  %s3 = inlined_call_operand.hbm [shape: bf16[1024,256], index: 3, kind: input, shape index: {}]
  %s4 = inlined_call_operand.hbm [shape: f32[1,256], index: 4, kind: input, shape index: {}]
  %s5 = inlined_call_operand.hbm [shape: bf16[16,256], index: 5, kind: output, shape index: {}]
  %s6 = sld [smem:[#allocation0]]
  $region50: #{tpu_custom_call.1} parent=0
    _
  %s8 = ssub.s32 1, %s6
  %s9 = scalar_select 0, %s8, %s6
  $region1: #{tpu_custom_call.1} parent=0
    #allocation2 [shape = 'u8[16384]{0}', space=vmem, size = 0x4000, scoped, tag = 'input window, operand 0, single buffered']
    #allocation3 [shape = 's32[1]{0}', space=sflag, size = 0x4, scoped, tag = 'scoped memory for tpu_custom_call.1']
    #allocation4 [shape = 's32[1]{0}', space=sflag, size = 0x4, scoped, tag = 'scoped memory for tpu_custom_call.1']
    #allocation5 [shape = 'u8[524288]{0}', space=vmem, size = 0x80000, scoped, tag = 'input window, operand 1, single buffered']
    #allocation6 [shape = 's32[1]{0}', space=sflag, size = 0x4, scoped, tag = 'scoped memory for tpu_custom_call.1']
    #allocation7 [shape = 'u8[4096]{0}', space=vmem, size = 0x1000, scoped, tag = 'input window, operand 2, single buffered']
    #allocation8 [shape = 'u8[524288]{0}', space=vmem, size = 0x80000, scoped, tag = 'input window, operand 3, single buffered']
    #allocation9 [shape = 's32[1]{0}', space=sflag, size = 0x4, scoped, tag = 'scoped memory for tpu_custom_call.1']
    #allocation10 [shape = 'u8[1024]{0}', space=vmem, size = 0x400, scoped, tag = 'input window, operand 4, single buffered']
    #allocation11 [shape = 'u8[8192]{0}', space=vmem, size = 0x2000, scoped, tag = 'output window, operand 0, single buffered']
    %10 = vsyncpa [#allocation3], 0
    %11 = vsyncpa [#allocation6], 0
    %12 = vsyncpa [#allocation9], 0
    %13 = vsyncpa [#allocation4], 0
    // Predicated region
    $region2: #{tpu_custom_call.1} parent=1 // pred_check
      _
    $region3: #{tpu_custom_call.1} parent=1 // pred_check_branch
      %15 = sbr.rel (0) target = $region5
    $region4: #{tpu_custom_call.1} parent=1 // pred_region
      %s17 = ssub.s32 512, 512
      %18 = vsyncadd [#allocation3], %s17
      %s19 = sshll.u32 [#allocation2], 4
      %s20 = int_to_ptr.vmem [resolvable:$true] %s19
      %25 = dma.hbm_to_vmem [thread:$0]  %s0, 512, %s20, [#allocation3], 256, 256, 16
    $region5: #{tpu_custom_call.1} parent=1 // pred_fallthru
      _
    // Predicated region
    $region6: #{tpu_custom_call.1} parent=1 // pred_check
      _
    $region7: #{tpu_custom_call.1} parent=1 // pred_check_branch
      %27 = sbr.rel (0) target = $region9
    $region8: #{tpu_custom_call.1} parent=1 // pred_region
      %s29 = ssub.s32 16384, 16384
      %30 = vsyncadd [#allocation6], %s29
      %s31 = sshll.u32 [#allocation5], 4
      %s32 = int_to_ptr.vmem [resolvable:$true] %s31
      %37 = dma.hbm_to_vmem [thread:$0]  %s1, 16384, %s32, [#allocation6], 512, 512, 32
    $region9: #{tpu_custom_call.1} parent=1 // pred_fallthru
      _
    // Predicated region
    $region10: #{tpu_custom_call.1} parent=1 // pred_check
      _
    $region11: #{tpu_custom_call.1} parent=1 // pred_check_branch
      %39 = sbr.rel (0) target = $region13
    $region12: #{tpu_custom_call.1} parent=1 // pred_region
      %s41 = ssub.s32 128, 128
      %42 = vsyncadd [#allocation6], %s41
      %s44 = sshll.u32 [#allocation7], 4
      %s45 = int_to_ptr.vmem [resolvable:$true] %s44
      %47 = dma.hbm_to_vmem [thread:$0]  %s2, 128, %s45, [#allocation6]
    $region13: #{tpu_custom_call.1} parent=1 // pred_fallthru
      _
    // Predicated region
    $region14: #{tpu_custom_call.1} parent=1 // pred_check
      _
    $region15: #{tpu_custom_call.1} parent=1 // pred_check_branch
      %49 = sbr.rel (0) target = $region17
    $region16: #{tpu_custom_call.1} parent=1 // pred_region
      %s51 = ssub.s32 16384, 16384
      %52 = vsyncadd [#allocation9], %s51
      %s53 = sshll.u32 [#allocation8], 4
      %s54 = int_to_ptr.vmem [resolvable:$true] %s53
      %59 = dma.hbm_to_vmem [thread:$0]  %s3, 16384, %s54, [#allocation9], 128, 128, 8
    $region17: #{tpu_custom_call.1} parent=1 // pred_fallthru
      _
    // Predicated region
    $region18: #{tpu_custom_call.1} parent=1 // pred_check
      _
    $region19: #{tpu_custom_call.1} parent=1 // pred_check_branch
      %61 = sbr.rel (0) target = $region21
    $region20: #{tpu_custom_call.1} parent=1 // pred_region
      %s63 = ssub.s32 32, 32
      %64 = vsyncadd [#allocation9], %s63
      %s66 = sshll.u32 [#allocation10], 4
      %s67 = int_to_ptr.vmem [resolvable:$true] %s66
      %69 = dma.hbm_to_vmem [thread:$0]  %s4, 32, %s67, [#allocation9]
    $region21: #{tpu_custom_call.1} parent=1 // pred_fallthru
      _
    // Predicated region
    $region22: #{tpu_custom_call.1} parent=1 // pred_check
      _
    $region23: #{tpu_custom_call.1} parent=1 // pred_check_branch
      %71 = sbr.rel (0) target = $region25
    $region24: #{tpu_custom_call.1} parent=1 // pred_region
      %72 = dma.done [#allocation3], 512
    $region25: #{tpu_custom_call.1} parent=1 // pred_fallthru
      _
    // Predicated region
    $region26: #{tpu_custom_call.1} parent=1 // pred_check
      _
    $region27: #{tpu_custom_call.1} parent=1 // pred_check_branch
      %74 = sbr.rel (0) target = $region29
    $region28: #{tpu_custom_call.1} parent=1 // pred_region
      %75 = dma.done [#allocation6], 16384
    $region29: #{tpu_custom_call.1} parent=1 // pred_fallthru
      _
    // Predicated region
    $region30: #{tpu_custom_call.1} parent=1 // pred_check
      _
    $region31: #{tpu_custom_call.1} parent=1 // pred_check_branch
      %77 = sbr.rel (0) target = $region33
    $region32: #{tpu_custom_call.1} parent=1 // pred_region
      %78 = dma.done [#allocation6], 128
    $region33: #{tpu_custom_call.1} parent=1 // pred_fallthru
      _
    // Predicated region
    $region34: #{tpu_custom_call.1} parent=1 // pred_check
      _
    $region35: #{tpu_custom_call.1} parent=1 // pred_check_branch
      %80 = sbr.rel (0) target = $region37
    $region36: #{tpu_custom_call.1} parent=1 // pred_region
      %81 = dma.done [#allocation9], 16384
    $region37: #{tpu_custom_call.1} parent=1 // pred_fallthru
      _
    // Predicated region
    $region38: #{tpu_custom_call.1} parent=1 // pred_check
      _
    $region39: #{tpu_custom_call.1} parent=1 // pred_check_branch
      %83 = sbr.rel (0) target = $region41
    $region40: #{tpu_custom_call.1} parent=1 // pred_region
      %84 = dma.done [#allocation9], 32
    $region41: #{tpu_custom_call.1} parent=1 // pred_fallthru
      _
    %v85 = vld [vmem:[#allocation2] sm:$0xff]
    %v86 = vld [vmem:[#allocation2 + $0x8] sm:$0xff]
    %v87 = vld [vmem:[#allocation2 + $0x10] sm:$0xff]
    %v88 = vld [vmem:[#allocation2 + $0x18] sm:$0xff]
    %v89 = vpack.c.bf16 %v87, %v85
    %v90 = vpack.c.bf16 %v88, %v86
    %v91 = vld [vmem:[#allocation5] sm:$0xff]
    %v92 = vld [vmem:[#allocation5 + $0x8] sm:$0xff]
    %v93 = vld [vmem:[#allocation5 + $0x10] sm:$0xff]
    %v94 = vld [vmem:[#allocation5 + $0x18] sm:$0xff]
    %v95 = vld [vmem:[#allocation5 + $0x20] sm:$0xff]
    %v96 = vld [vmem:[#allocation5 + $0x28] sm:$0xff]
    %v97 = vld [vmem:[#allocation5 + $0x30] sm:$0xff]
    %v98 = vld [vmem:[#allocation5 + $0x38] sm:$0xff]
    %v99 = vld [vmem:[#allocation5 + $0x40] sm:$0xff]
    %v100 = vld [vmem:[#allocation5 + $0x48] sm:$0xff]
    %v101 = vld [vmem:[#allocation5 + $0x50] sm:$0xff]
    %v102 = vld [vmem:[#allocation5 + $0x58] sm:$0xff]
    %v103 = vld [vmem:[#allocation5 + $0x60] sm:$0xff]
    %v104 = vld [vmem:[#allocation5 + $0x68] sm:$0xff]
    %v105 = vld [vmem:[#allocation5 + $0x70] sm:$0xff]
    %v106 = vld [vmem:[#allocation5 + $0x78] sm:$0xff]
    %v107 = vld [vmem:[#allocation5 + $0x80] sm:$0xff]
    %v108 = vld [vmem:[#allocation5 + $0x88] sm:$0xff]
    %v109 = vld [vmem:[#allocation5 + $0x90] sm:$0xff]
    %v110 = vld [vmem:[#allocation5 + $0x98] sm:$0xff]
    %v111 = vld [vmem:[#allocation5 + $0xa0] sm:$0xff]
    %v112 = vld [vmem:[#allocation5 + $0xa8] sm:$0xff]
    %v113 = vld [vmem:[#allocation5 + $0xb0] sm:$0xff]
    %v114 = vld [vmem:[#allocation5 + $0xb8] sm:$0xff]
    %v115 = vld [vmem:[#allocation5 + $0xc0] sm:$0xff]
    %v116 = vld [vmem:[#allocation5 + $0xc8] sm:$0xff]
    %v117 = vld [vmem:[#allocation5 + $0xd0] sm:$0xff]
    %v118 = vld [vmem:[#allocation5 + $0xd8] sm:$0xff]
    %v119 = vld [vmem:[#allocation5 + $0xe0] sm:$0xff]
    %v120 = vld [vmem:[#allocation5 + $0xe8] sm:$0xff]
    %v121 = vld [vmem:[#allocation5 + $0xf0] sm:$0xff]
    %v122 = vld [vmem:[#allocation5 + $0xf8] sm:$0xff]
    %v123 = vld [vmem:[#allocation5 + $0x100] sm:$0xff]
    %v124 = vld [vmem:[#allocation5 + $0x108] sm:$0xff]
    %v125 = vld [vmem:[#allocation5 + $0x110] sm:$0xff]
    %v126 = vld [vmem:[#allocation5 + $0x118] sm:$0xff]
    %v127 = vld [vmem:[#allocation5 + $0x120] sm:$0xff]
    %v128 = vld [vmem:[#allocation5 + $0x128] sm:$0xff]
    %v129 = vld [vmem:[#allocation5 + $0x130] sm:$0xff]
    %v130 = vld [vmem:[#allocation5 + $0x138] sm:$0xff]
    %v131 = vld [vmem:[#allocation5 + $0x140] sm:$0xff]
    %v132 = vld [vmem:[#allocation5 + $0x148] sm:$0xff]
    %v133 = vld [vmem:[#allocation5 + $0x150] sm:$0xff]
    %v134 = vld [vmem:[#allocation5 + $0x158] sm:$0xff]
    %v135 = vld [vmem:[#allocation5 + $0x160] sm:$0xff]
    %v136 = vld [vmem:[#allocation5 + $0x168] sm:$0xff]
    %v137 = vld [vmem:[#allocation5 + $0x170] sm:$0xff]
    %v138 = vld [vmem:[#allocation5 + $0x178] sm:$0xff]
    %v139 = vld [vmem:[#allocation5 + $0x180] sm:$0xff]
    %v140 = vld [vmem:[#allocation5 + $0x188] sm:$0xff]
    %v141 = vld [vmem:[#allocation5 + $0x190] sm:$0xff]
    %v142 = vld [vmem:[#allocation5 + $0x198] sm:$0xff]
    %v143 = vld [vmem:[#allocation5 + $0x1a0] sm:$0xff]
    %v144 = vld [vmem:[#allocation5 + $0x1a8] sm:$0xff]
    %v145 = vld [vmem:[#allocation5 + $0x1b0] sm:$0xff]
    %v146 = vld [vmem:[#allocation5 + $0x1b8] sm:$0xff]
    %v147 = vld [vmem:[#allocation5 + $0x1c0] sm:$0xff]
    %v148 = vld [vmem:[#allocation5 + $0x1c8] sm:$0xff]
    %v149 = vld [vmem:[#allocation5 + $0x1d0] sm:$0xff]
    %v150 = vld [vmem:[#allocation5 + $0x1d8] sm:$0xff]
    %v151 = vld [vmem:[#allocation5 + $0x1e0] sm:$0xff]
    %v152 = vld [vmem:[#allocation5 + $0x1e8] sm:$0xff]
    %v153 = vld [vmem:[#allocation5 + $0x1f0] sm:$0xff]
    %v154 = vld [vmem:[#allocation5 + $0x1f8] sm:$0xff]
    %v155 = vld [vmem:[#allocation5 + $0x200] sm:$0xff]
    %v156 = vld [vmem:[#allocation5 + $0x208] sm:$0xff]
    %v157 = vld [vmem:[#allocation5 + $0x210] sm:$0xff]
    %v158 = vld [vmem:[#allocation5 + $0x218] sm:$0xff]
    %v159 = vld [vmem:[#allocation5 + $0x220] sm:$0xff]
    %v160 = vld [vmem:[#allocation5 + $0x228] sm:$0xff]
    %v161 = vld [vmem:[#allocation5 + $0x230] sm:$0xff]
    %v162 = vld [vmem:[#allocation5 + $0x238] sm:$0xff]
    %v163 = vld [vmem:[#allocation5 + $0x240] sm:$0xff]
    %v164 = vld [vmem:[#allocation5 + $0x248] sm:$0xff]
    %v165 = vld [vmem:[#allocation5 + $0x250] sm:$0xff]
    %v166 = vld [vmem:[#allocation5 + $0x258] sm:$0xff]
    %v167 = vld [vmem:[#allocation5 + $0x260] sm:$0xff]
    %v168 = vld [vmem:[#allocation5 + $0x268] sm:$0xff]
    %v169 = vld [vmem:[#allocation5 + $0x270] sm:$0xff]
    %v170 = vld [vmem:[#allocation5 + $0x278] sm:$0xff]
    %v171 = vld [vmem:[#allocation5 + $0x280] sm:$0xff]
    %v172 = vld [vmem:[#allocation5 + $0x288] sm:$0xff]
    %v173 = vld [vmem:[#allocation5 + $0x290] sm:$0xff]
    %v174 = vld [vmem:[#allocation5 + $0x298] sm:$0xff]
    %v175 = vld [vmem:[#allocation5 + $0x2a0] sm:$0xff]
    %v176 = vld [vmem:[#allocation5 + $0x2a8] sm:$0xff]
    %v177 = vld [vmem:[#allocation5 + $0x2b0] sm:$0xff]
    %v178 = vld [vmem:[#allocation5 + $0x2b8] sm:$0xff]
    %v179 = vld [vmem:[#allocation5 + $0x2c0] sm:$0xff]
    %v180 = vld [vmem:[#allocation5 + $0x2c8] sm:$0xff]
    %v181 = vld [vmem:[#allocation5 + $0x2d0] sm:$0xff]
    %v182 = vld [vmem:[#allocation5 + $0x2d8] sm:$0xff]
    %v183 = vld [vmem:[#allocation5 + $0x2e0] sm:$0xff]
    %v184 = vld [vmem:[#allocation5 + $0x2e8] sm:$0xff]
    %v185 = vld [vmem:[#allocation5 + $0x2f0] sm:$0xff]
    %v186 = vld [vmem:[#allocation5 + $0x2f8] sm:$0xff]
    %v187 = vld [vmem:[#allocation5 + $0x300] sm:$0xff]
    %v188 = vld [vmem:[#allocation5 + $0x308] sm:$0xff]
    %v189 = vld [vmem:[#allocation5 + $0x310] sm:$0xff]
    %v190 = vld [vmem:[#allocation5 + $0x318] sm:$0xff]
    %v191 = vld [vmem:[#allocation5 + $0x320] sm:$0xff]
    %v192 = vld [vmem:[#allocation5 + $0x328] sm:$0xff]
    %v193 = vld [vmem:[#allocation5 + $0x330] sm:$0xff]
    %v194 = vld [vmem:[#allocation5 + $0x338] sm:$0xff]
    %v195 = vld [vmem:[#allocation5 + $0x340] sm:$0xff]
    %v196 = vld [vmem:[#allocation5 + $0x348] sm:$0xff]
    %v197 = vld [vmem:[#allocation5 + $0x350] sm:$0xff]
    %v198 = vld [vmem:[#allocation5 + $0x358] sm:$0xff]
    %v199 = vld [vmem:[#allocation5 + $0x360] sm:$0xff]
    %v200 = vld [vmem:[#allocation5 + $0x368] sm:$0xff]
    %v201 = vld [vmem:[#allocation5 + $0x370] sm:$0xff]
    %v202 = vld [vmem:[#allocation5 + $0x378] sm:$0xff]
    %v203 = vld [vmem:[#allocation5 + $0x380] sm:$0xff]
    %v204 = vld [vmem:[#allocation5 + $0x388] sm:$0xff]
    %v205 = vld [vmem:[#allocation5 + $0x390] sm:$0xff]
    %v206 = vld [vmem:[#allocation5 + $0x398] sm:$0xff]
    %v207 = vld [vmem:[#allocation5 + $0x3a0] sm:$0xff]
    %v208 = vld [vmem:[#allocation5 + $0x3a8] sm:$0xff]
    %v209 = vld [vmem:[#allocation5 + $0x3b0] sm:$0xff]
    %v210 = vld [vmem:[#allocation5 + $0x3b8] sm:$0xff]
    %v211 = vld [vmem:[#allocation5 + $0x3c0] sm:$0xff]
    %v212 = vld [vmem:[#allocation5 + $0x3c8] sm:$0xff]
    %v213 = vld [vmem:[#allocation5 + $0x3d0] sm:$0xff]
    %v214 = vld [vmem:[#allocation5 + $0x3d8] sm:$0xff]
    %v215 = vld [vmem:[#allocation5 + $0x3e0] sm:$0xff]
    %v216 = vld [vmem:[#allocation5 + $0x3e8] sm:$0xff]
    %v217 = vld [vmem:[#allocation5 + $0x3f0] sm:$0xff]
    %v218 = vld [vmem:[#allocation5 + $0x3f8] sm:$0xff]
    %v219 = vld [vmem:[#allocation7] sm:$0xff]
    %v221 = vlaneseq
    %v222 = vshrl.u32 %v221, 7
    %v223 = vsub.s32 0, %v222
    %v224 = vrot.slane %v219, %v223
    %v225 = vlaneseq
    %v226 = vshrl.u32 %v225, 7
    %v227 = vsub.s32 1, %v226
    %v228 = vrot.slane %v219, %v227
    %v229 = vlaneseq
    %v230 = vshrl.u32 %v229, 7
    %v231 = vsub.s32 2, %v230
    %v232 = vrot.slane %v219, %v231
    %v233 = vlaneseq
    %v234 = vshrl.u32 %v233, 7
    %v235 = vsub.s32 3, %v234
    %v236 = vrot.slane %v219, %v235
    %v237 = vlaneseq
    %v238 = vshrl.u32 %v237, 7
    %v239 = vsub.s32 4, %v238
    %v240 = vrot.slane %v219, %v239
    %v241 = vlaneseq
    %v242 = vshrl.u32 %v241, 7
    %v243 = vsub.s32 5, %v242
    %v244 = vrot.slane %v219, %v243
    %v245 = vlaneseq
    %v246 = vshrl.u32 %v245, 7
    %v247 = vsub.s32 6, %v246
    %v248 = vrot.slane %v219, %v247
    %v249 = vlaneseq
    %v250 = vshrl.u32 %v249, 7
    %v251 = vsub.s32 7, %v250
    %v252 = vrot.slane %v219, %v251
    %v389 = vunpack.c.l.b16 %v91
    %v390 = vunpack.c.h.b16 %v91
    %v391 = vunpack.c.l.b16 %v92
    %v392 = vunpack.c.h.b16 %v92
    %v393 = vunpack.c.l.b16 %v93
    %v394 = vunpack.c.h.b16 %v93
    %v395 = vunpack.c.l.b16 %v94
    %v396 = vunpack.c.h.b16 %v94
    %v397 = vunpack.c.l.b16 %v95
    %v398 = vunpack.c.h.b16 %v95
    %v399 = vunpack.c.l.b16 %v96
    %v400 = vunpack.c.h.b16 %v96
    %v401 = vunpack.c.l.b16 %v97
    %v402 = vunpack.c.h.b16 %v97
    %v403 = vunpack.c.l.b16 %v98
    %v404 = vunpack.c.h.b16 %v98
    %v405 = vunpack.c.l.b16 %v99
    %v406 = vunpack.c.h.b16 %v99
    %v407 = vunpack.c.l.b16 %v100
    %v408 = vunpack.c.h.b16 %v100
    %v409 = vunpack.c.l.b16 %v101
    %v410 = vunpack.c.h.b16 %v101
    %v411 = vunpack.c.l.b16 %v102
    %v412 = vunpack.c.h.b16 %v102
    %v413 = vunpack.c.l.b16 %v103
    %v414 = vunpack.c.h.b16 %v103
    %v415 = vunpack.c.l.b16 %v104
    %v416 = vunpack.c.h.b16 %v104
    %v417 = vunpack.c.l.b16 %v105
    %v418 = vunpack.c.h.b16 %v105
    %v419 = vunpack.c.l.b16 %v106
    %v420 = vunpack.c.h.b16 %v106
    %v421 = vunpack.c.l.b16 %v107
    %v422 = vunpack.c.h.b16 %v107
    %v423 = vunpack.c.l.b16 %v108
    %v424 = vunpack.c.h.b16 %v108
    %v425 = vunpack.c.l.b16 %v109
    %v426 = vunpack.c.h.b16 %v109
    %v427 = vunpack.c.l.b16 %v110
    %v428 = vunpack.c.h.b16 %v110
    %v429 = vunpack.c.l.b16 %v111
    %v430 = vunpack.c.h.b16 %v111
    %v431 = vunpack.c.l.b16 %v112
    %v432 = vunpack.c.h.b16 %v112
    %v433 = vunpack.c.l.b16 %v113
    %v434 = vunpack.c.h.b16 %v113
    %v435 = vunpack.c.l.b16 %v114
    %v436 = vunpack.c.h.b16 %v114
    %v437 = vunpack.c.l.b16 %v115
    %v438 = vunpack.c.h.b16 %v115
    %v439 = vunpack.c.l.b16 %v116
    %v440 = vunpack.c.h.b16 %v116
    %v441 = vunpack.c.l.b16 %v117
    %v442 = vunpack.c.h.b16 %v117
    %v443 = vunpack.c.l.b16 %v118
    %v444 = vunpack.c.h.b16 %v118
    %v445 = vunpack.c.l.b16 %v119
    %v446 = vunpack.c.h.b16 %v119
    %v447 = vunpack.c.l.b16 %v120
    %v448 = vunpack.c.h.b16 %v120
    %v449 = vunpack.c.l.b16 %v121
    %v450 = vunpack.c.h.b16 %v121
    %v451 = vunpack.c.l.b16 %v122
    %v452 = vunpack.c.h.b16 %v122
    %v453 = vunpack.c.l.b16 %v123
    %v454 = vunpack.c.h.b16 %v123
    %v455 = vunpack.c.l.b16 %v124
    %v456 = vunpack.c.h.b16 %v124
    %v457 = vunpack.c.l.b16 %v125
    %v458 = vunpack.c.h.b16 %v125
    %v459 = vunpack.c.l.b16 %v126
    %v460 = vunpack.c.h.b16 %v126
    %v461 = vunpack.c.l.b16 %v127
    %v462 = vunpack.c.h.b16 %v127
    %v463 = vunpack.c.l.b16 %v128
    %v464 = vunpack.c.h.b16 %v128
    %v465 = vunpack.c.l.b16 %v129
    %v466 = vunpack.c.h.b16 %v129
    %v467 = vunpack.c.l.b16 %v130
    %v468 = vunpack.c.h.b16 %v130
    %v469 = vunpack.c.l.b16 %v131
    %v470 = vunpack.c.h.b16 %v131
    %v471 = vunpack.c.l.b16 %v132
    %v472 = vunpack.c.h.b16 %v132
    %v473 = vunpack.c.l.b16 %v133
    %v474 = vunpack.c.h.b16 %v133
    %v475 = vunpack.c.l.b16 %v134
    %v476 = vunpack.c.h.b16 %v134
    %v477 = vunpack.c.l.b16 %v135
    %v478 = vunpack.c.h.b16 %v135
    %v479 = vunpack.c.l.b16 %v136
    %v480 = vunpack.c.h.b16 %v136
    %v481 = vunpack.c.l.b16 %v137
    %v482 = vunpack.c.h.b16 %v137
    %v483 = vunpack.c.l.b16 %v138
    %v484 = vunpack.c.h.b16 %v138
    %v485 = vunpack.c.l.b16 %v139
    %v486 = vunpack.c.h.b16 %v139
    %v487 = vunpack.c.l.b16 %v140
    %v488 = vunpack.c.h.b16 %v140
    %v489 = vunpack.c.l.b16 %v141
    %v490 = vunpack.c.h.b16 %v141
    %v491 = vunpack.c.l.b16 %v142
    %v492 = vunpack.c.h.b16 %v142
    %v493 = vunpack.c.l.b16 %v143
    %v494 = vunpack.c.h.b16 %v143
    %v495 = vunpack.c.l.b16 %v144
    %v496 = vunpack.c.h.b16 %v144
    %v497 = vunpack.c.l.b16 %v145
    %v498 = vunpack.c.h.b16 %v145
    %v499 = vunpack.c.l.b16 %v146
    %v500 = vunpack.c.h.b16 %v146
    %v501 = vunpack.c.l.b16 %v147
    %v502 = vunpack.c.h.b16 %v147
    %v503 = vunpack.c.l.b16 %v148
    %v504 = vunpack.c.h.b16 %v148
    %v505 = vunpack.c.l.b16 %v149
    %v506 = vunpack.c.h.b16 %v149
    %v507 = vunpack.c.l.b16 %v150
    %v508 = vunpack.c.h.b16 %v150
    %v509 = vunpack.c.l.b16 %v151
    %v510 = vunpack.c.h.b16 %v151
    %v511 = vunpack.c.l.b16 %v152
    %v512 = vunpack.c.h.b16 %v152
    %v513 = vunpack.c.l.b16 %v153
    %v514 = vunpack.c.h.b16 %v153
    %v515 = vunpack.c.l.b16 %v154
    %v516 = vunpack.c.h.b16 %v154
    %v517 = vunpack.c.l.b16 %v155
    %v518 = vunpack.c.h.b16 %v155
    %v519 = vunpack.c.l.b16 %v156
    %v520 = vunpack.c.h.b16 %v156
    %v521 = vunpack.c.l.b16 %v157
    %v522 = vunpack.c.h.b16 %v157
    %v523 = vunpack.c.l.b16 %v158
    %v524 = vunpack.c.h.b16 %v158
    %v525 = vunpack.c.l.b16 %v159
    %v526 = vunpack.c.h.b16 %v159
    %v527 = vunpack.c.l.b16 %v160
    %v528 = vunpack.c.h.b16 %v160
    %v529 = vunpack.c.l.b16 %v161
    %v530 = vunpack.c.h.b16 %v161
    %v531 = vunpack.c.l.b16 %v162
    %v532 = vunpack.c.h.b16 %v162
    %v533 = vunpack.c.l.b16 %v163
    %v534 = vunpack.c.h.b16 %v163
    %v535 = vunpack.c.l.b16 %v164
    %v536 = vunpack.c.h.b16 %v164
    %v537 = vunpack.c.l.b16 %v165
    %v538 = vunpack.c.h.b16 %v165
    %v539 = vunpack.c.l.b16 %v166
    %v540 = vunpack.c.h.b16 %v166
    %v541 = vunpack.c.l.b16 %v167
    %v542 = vunpack.c.h.b16 %v167
    %v543 = vunpack.c.l.b16 %v168
    %v544 = vunpack.c.h.b16 %v168
    %v545 = vunpack.c.l.b16 %v169
    %v546 = vunpack.c.h.b16 %v169
    %v547 = vunpack.c.l.b16 %v170
    %v548 = vunpack.c.h.b16 %v170
    %v549 = vunpack.c.l.b16 %v171
    %v550 = vunpack.c.h.b16 %v171
    %v551 = vunpack.c.l.b16 %v172
    %v552 = vunpack.c.h.b16 %v172
    %v553 = vunpack.c.l.b16 %v173
    %v554 = vunpack.c.h.b16 %v173
    %v555 = vunpack.c.l.b16 %v174
    %v556 = vunpack.c.h.b16 %v174
    %v557 = vunpack.c.l.b16 %v175
    %v558 = vunpack.c.h.b16 %v175
    %v559 = vunpack.c.l.b16 %v176
    %v560 = vunpack.c.h.b16 %v176
    %v561 = vunpack.c.l.b16 %v177
    %v562 = vunpack.c.h.b16 %v177
    %v563 = vunpack.c.l.b16 %v178
    %v564 = vunpack.c.h.b16 %v178
    %v565 = vunpack.c.l.b16 %v179
    %v566 = vunpack.c.h.b16 %v179
    %v567 = vunpack.c.l.b16 %v180
    %v568 = vunpack.c.h.b16 %v180
    %v569 = vunpack.c.l.b16 %v181
    %v570 = vunpack.c.h.b16 %v181
    %v571 = vunpack.c.l.b16 %v182
    %v572 = vunpack.c.h.b16 %v182
    %v573 = vunpack.c.l.b16 %v183
    %v574 = vunpack.c.h.b16 %v183
    %v575 = vunpack.c.l.b16 %v184
    %v576 = vunpack.c.h.b16 %v184
    %v577 = vunpack.c.l.b16 %v185
    %v578 = vunpack.c.h.b16 %v185
    %v579 = vunpack.c.l.b16 %v186
    %v580 = vunpack.c.h.b16 %v186
    %v581 = vunpack.c.l.b16 %v187
    %v582 = vunpack.c.h.b16 %v187
    %v583 = vunpack.c.l.b16 %v188
    %v584 = vunpack.c.h.b16 %v188
    %v585 = vunpack.c.l.b16 %v189
    %v586 = vunpack.c.h.b16 %v189
    %v587 = vunpack.c.l.b16 %v190
    %v588 = vunpack.c.h.b16 %v190
    %v589 = vunpack.c.l.b16 %v191
    %v590 = vunpack.c.h.b16 %v191
    %v591 = vunpack.c.l.b16 %v192
    %v592 = vunpack.c.h.b16 %v192
    %v593 = vunpack.c.l.b16 %v193
    %v594 = vunpack.c.h.b16 %v193
    %v595 = vunpack.c.l.b16 %v194
    %v596 = vunpack.c.h.b16 %v194
    %v597 = vunpack.c.l.b16 %v195
    %v598 = vunpack.c.h.b16 %v195
    %v599 = vunpack.c.l.b16 %v196
    %v600 = vunpack.c.h.b16 %v196
    %v601 = vunpack.c.l.b16 %v197
    %v602 = vunpack.c.h.b16 %v197
    %v603 = vunpack.c.l.b16 %v198
    %v604 = vunpack.c.h.b16 %v198
    %v605 = vunpack.c.l.b16 %v199
    %v606 = vunpack.c.h.b16 %v199
    %v607 = vunpack.c.l.b16 %v200
    %v608 = vunpack.c.h.b16 %v200
    %v609 = vunpack.c.l.b16 %v201
    %v610 = vunpack.c.h.b16 %v201
    %v611 = vunpack.c.l.b16 %v202
    %v612 = vunpack.c.h.b16 %v202
    %v613 = vunpack.c.l.b16 %v203
    %v614 = vunpack.c.h.b16 %v203
    %v615 = vunpack.c.l.b16 %v204
    %v616 = vunpack.c.h.b16 %v204
    %v617 = vunpack.c.l.b16 %v205
    %v618 = vunpack.c.h.b16 %v205
    %v619 = vunpack.c.l.b16 %v206
    %v620 = vunpack.c.h.b16 %v206
    %v621 = vunpack.c.l.b16 %v207
    %v622 = vunpack.c.h.b16 %v207
    %v623 = vunpack.c.l.b16 %v208
    %v624 = vunpack.c.h.b16 %v208
    %v625 = vunpack.c.l.b16 %v209
    %v626 = vunpack.c.h.b16 %v209
    %v627 = vunpack.c.l.b16 %v210
    %v628 = vunpack.c.h.b16 %v210
    %v629 = vunpack.c.l.b16 %v211
    %v630 = vunpack.c.h.b16 %v211
    %v631 = vunpack.c.l.b16 %v212
    %v632 = vunpack.c.h.b16 %v212
    %v633 = vunpack.c.l.b16 %v213
    %v634 = vunpack.c.h.b16 %v213
    %v635 = vunpack.c.l.b16 %v214
    %v636 = vunpack.c.h.b16 %v214
    %v637 = vunpack.c.l.b16 %v215
    %v638 = vunpack.c.h.b16 %v215
    %v639 = vunpack.c.l.b16 %v216
    %v640 = vunpack.c.h.b16 %v216
    %v641 = vunpack.c.l.b16 %v217
    %v642 = vunpack.c.h.b16 %v217
    %v643 = vunpack.c.l.b16 %v218
    %v644 = vunpack.c.h.b16 %v218
    %v645 = vpack.c.b16 %v397, %v389
    %v646 = vpack.c.b16 %v398, %v390
    %v647 = vpack.c.b16 %v399, %v391
    %v648 = vpack.c.b16 %v400, %v392
    %v649 = vpack.c.b16 %v401, %v393
    %v650 = vpack.c.b16 %v402, %v394
    %v651 = vpack.c.b16 %v403, %v395
    %v652 = vpack.c.b16 %v404, %v396
    %v653 = vpack.c.b16 %v413, %v405
    %v654 = vpack.c.b16 %v414, %v406
    %v655 = vpack.c.b16 %v415, %v407
    %v656 = vpack.c.b16 %v416, %v408
    %v657 = vpack.c.b16 %v417, %v409
    %v658 = vpack.c.b16 %v418, %v410
    %v659 = vpack.c.b16 %v419, %v411
    %v660 = vpack.c.b16 %v420, %v412
    %v661 = vpack.c.b16 %v429, %v421
    %v662 = vpack.c.b16 %v430, %v422
    %v663 = vpack.c.b16 %v431, %v423
    %v664 = vpack.c.b16 %v432, %v424
    %v665 = vpack.c.b16 %v433, %v425
    %v666 = vpack.c.b16 %v434, %v426
    %v667 = vpack.c.b16 %v435, %v427
    %v668 = vpack.c.b16 %v436, %v428
    %v669 = vpack.c.b16 %v445, %v437
    %v670 = vpack.c.b16 %v446, %v438
    %v671 = vpack.c.b16 %v447, %v439
    %v672 = vpack.c.b16 %v448, %v440
    %v673 = vpack.c.b16 %v449, %v441
    %v674 = vpack.c.b16 %v450, %v442
    %v675 = vpack.c.b16 %v451, %v443
    %v676 = vpack.c.b16 %v452, %v444
    %v677 = vpack.c.b16 %v461, %v453
    %v678 = vpack.c.b16 %v462, %v454
    %v679 = vpack.c.b16 %v463, %v455
    %v680 = vpack.c.b16 %v464, %v456
    %v681 = vpack.c.b16 %v465, %v457
    %v682 = vpack.c.b16 %v466, %v458
    %v683 = vpack.c.b16 %v467, %v459
    %v684 = vpack.c.b16 %v468, %v460
    %v685 = vpack.c.b16 %v477, %v469
    %v686 = vpack.c.b16 %v478, %v470
    %v687 = vpack.c.b16 %v479, %v471
    %v688 = vpack.c.b16 %v480, %v472
    %v689 = vpack.c.b16 %v481, %v473
    %v690 = vpack.c.b16 %v482, %v474
    %v691 = vpack.c.b16 %v483, %v475
    %v692 = vpack.c.b16 %v484, %v476
    %v693 = vpack.c.b16 %v493, %v485
    %v694 = vpack.c.b16 %v494, %v486
    %v695 = vpack.c.b16 %v495, %v487
    %v696 = vpack.c.b16 %v496, %v488
    %v697 = vpack.c.b16 %v497, %v489
    %v698 = vpack.c.b16 %v498, %v490
    %v699 = vpack.c.b16 %v499, %v491
    %v700 = vpack.c.b16 %v500, %v492
    %v701 = vpack.c.b16 %v509, %v501
    %v702 = vpack.c.b16 %v510, %v502
    %v703 = vpack.c.b16 %v511, %v503
    %v704 = vpack.c.b16 %v512, %v504
    %v705 = vpack.c.b16 %v513, %v505
    %v706 = vpack.c.b16 %v514, %v506
    %v707 = vpack.c.b16 %v515, %v507
    %v708 = vpack.c.b16 %v516, %v508
    %v709 = vpack.c.b16 %v525, %v517
    %v710 = vpack.c.b16 %v526, %v518
    %v711 = vpack.c.b16 %v527, %v519
    %v712 = vpack.c.b16 %v528, %v520
    %v713 = vpack.c.b16 %v529, %v521
    %v714 = vpack.c.b16 %v530, %v522
    %v715 = vpack.c.b16 %v531, %v523
    %v716 = vpack.c.b16 %v532, %v524
    %v717 = vpack.c.b16 %v541, %v533
    %v718 = vpack.c.b16 %v542, %v534
    %v719 = vpack.c.b16 %v543, %v535
    %v720 = vpack.c.b16 %v544, %v536
    %v721 = vpack.c.b16 %v545, %v537
    %v722 = vpack.c.b16 %v546, %v538
    %v723 = vpack.c.b16 %v547, %v539
    %v724 = vpack.c.b16 %v548, %v540
    %v725 = vpack.c.b16 %v557, %v549
    %v726 = vpack.c.b16 %v558, %v550
    %v727 = vpack.c.b16 %v559, %v551
    %v728 = vpack.c.b16 %v560, %v552
    %v729 = vpack.c.b16 %v561, %v553
    %v730 = vpack.c.b16 %v562, %v554
    %v731 = vpack.c.b16 %v563, %v555
    %v732 = vpack.c.b16 %v564, %v556
    %v733 = vpack.c.b16 %v573, %v565
    %v734 = vpack.c.b16 %v574, %v566
    %v735 = vpack.c.b16 %v575, %v567
    %v736 = vpack.c.b16 %v576, %v568
    %v737 = vpack.c.b16 %v577, %v569
    %v738 = vpack.c.b16 %v578, %v570
    %v739 = vpack.c.b16 %v579, %v571
    %v740 = vpack.c.b16 %v580, %v572
    %v741 = vpack.c.b16 %v589, %v581
    %v742 = vpack.c.b16 %v590, %v582
    %v743 = vpack.c.b16 %v591, %v583
    %v744 = vpack.c.b16 %v592, %v584
    %v745 = vpack.c.b16 %v593, %v585
    %v746 = vpack.c.b16 %v594, %v586
    %v747 = vpack.c.b16 %v595, %v587
    %v748 = vpack.c.b16 %v596, %v588
    %v749 = vpack.c.b16 %v605, %v597
    %v750 = vpack.c.b16 %v606, %v598
    %v751 = vpack.c.b16 %v607, %v599
    %v752 = vpack.c.b16 %v608, %v600
    %v753 = vpack.c.b16 %v609, %v601
    %v754 = vpack.c.b16 %v610, %v602
    %v755 = vpack.c.b16 %v611, %v603
    %v756 = vpack.c.b16 %v612, %v604
    %v757 = vpack.c.b16 %v621, %v613
    %v758 = vpack.c.b16 %v622, %v614
    %v759 = vpack.c.b16 %v623, %v615
    %v760 = vpack.c.b16 %v624, %v616
    %v761 = vpack.c.b16 %v625, %v617
    %v762 = vpack.c.b16 %v626, %v618
    %v763 = vpack.c.b16 %v627, %v619
    %v764 = vpack.c.b16 %v628, %v620
    %v765 = vpack.c.b16 %v637, %v629
    %v766 = vpack.c.b16 %v638, %v630
    %v767 = vpack.c.b16 %v639, %v631
    %v768 = vpack.c.b16 %v640, %v632
    %v769 = vpack.c.b16 %v641, %v633
    %v770 = vpack.c.b16 %v642, %v634
    %v771 = vpack.c.b16 %v643, %v635
    %v772 = vpack.c.b16 %v644, %v636
    %901 = vmatprep.subr.bf16.mxu0 %v646
    %902 = vmatpush1.bf16.msra.mxu0 %v645
    %903 = vmatprep.subr.bf16.mxu0 %v654
    %904 = vmatpush1.bf16.msra.mxu0 %v653
    %905 = vmatprep.subr.bf16.mxu0 %v662
    %906 = vmatpush1.bf16.msra.mxu0 %v661
    %907 = vmatprep.subr.bf16.mxu0 %v670
    %908 = vmatpush1.bf16.msra.mxu0 %v669
    %909 = vmatprep.subr.bf16.mxu0 %v678
    %910 = vmatpush1.bf16.msra.mxu0 %v677
    %911 = vmatprep.subr.bf16.mxu0 %v686
    %912 = vmatpush1.bf16.msra.mxu0 %v685
    %913 = vmatprep.subr.bf16.mxu0 %v694
    %914 = vmatpush1.bf16.msra.mxu0 %v693
    %915 = vmatprep.subr.bf16.mxu0 %v702
    %916 = vmatpush1.bf16.msra.mxu0 %v701
    %917 = vmatprep.subr.bf16.mxu0 %v710
    %918 = vmatpush1.bf16.msra.mxu0 %v709
    %919 = vmatprep.subr.bf16.mxu0 %v718
    %920 = vmatpush1.bf16.msra.mxu0 %v717
    %921 = vmatprep.subr.bf16.mxu0 %v726
    %922 = vmatpush1.bf16.msra.mxu0 %v725
    %923 = vmatprep.subr.bf16.mxu0 %v734
    %924 = vmatpush1.bf16.msra.mxu0 %v733
    %925 = vmatprep.subr.bf16.mxu0 %v742
    %926 = vmatpush1.bf16.msra.mxu0 %v741
    %927 = vmatprep.subr.bf16.mxu0 %v750
    %928 = vmatpush1.bf16.msra.mxu0 %v749
    %929 = vmatprep.subr.bf16.mxu0 %v758
    %930 = vmatpush1.bf16.msra.mxu0 %v757
    %931 = vmatprep.subr.bf16.mxu0 %v766
    %932 = vmatpush1.bf16.msra.mxu0 %v765
    %933 = vmatprep.mubr.bf16.mxu0 %v90
    %934 = vmatmul.mubr.bf16.gmra.mrb[0].mxu0 %v89
    %v935 = vpop.f32.mrb[0].mxu0
    %v936 = vadd.f32 %v224, %v935
    %v937 = vpop.f32.mrb[0].mxu0
    %v938 = vadd.f32 %v228, %v937
    %v939 = vpop.f32.mrb[0].mxu0
    %v940 = vadd.f32 %v224, %v939
    %v941 = vpop.f32.mrb[0].mxu0
    %v942 = vadd.f32 %v228, %v941
    %943 = vdwg.mxu0
    %944 = vmatprep.subr.bf16.mxu0 %v648
    %945 = vmatpush1.bf16.msra.mxu0 %v647
    %946 = vmatprep.subr.bf16.mxu0 %v656
    %947 = vmatpush1.bf16.msra.mxu0 %v655
    %948 = vmatprep.subr.bf16.mxu0 %v664
    %949 = vmatpush1.bf16.msra.mxu0 %v663
    %950 = vmatprep.subr.bf16.mxu0 %v672
    %951 = vmatpush1.bf16.msra.mxu0 %v671
    %952 = vmatprep.subr.bf16.mxu0 %v680
    %953 = vmatpush1.bf16.msra.mxu0 %v679
    %954 = vmatprep.subr.bf16.mxu0 %v688
    %955 = vmatpush1.bf16.msra.mxu0 %v687
    %956 = vmatprep.subr.bf16.mxu0 %v696
    %957 = vmatpush1.bf16.msra.mxu0 %v695
    %958 = vmatprep.subr.bf16.mxu0 %v704
    %959 = vmatpush1.bf16.msra.mxu0 %v703
    %960 = vmatprep.subr.bf16.mxu0 %v712
    %961 = vmatpush1.bf16.msra.mxu0 %v711
    %962 = vmatprep.subr.bf16.mxu0 %v720
    %963 = vmatpush1.bf16.msra.mxu0 %v719
    %964 = vmatprep.subr.bf16.mxu0 %v728
    %965 = vmatpush1.bf16.msra.mxu0 %v727
    %966 = vmatprep.subr.bf16.mxu0 %v736
    %967 = vmatpush1.bf16.msra.mxu0 %v735
    %968 = vmatprep.subr.bf16.mxu0 %v744
    %969 = vmatpush1.bf16.msra.mxu0 %v743
    %970 = vmatprep.subr.bf16.mxu0 %v752
    %971 = vmatpush1.bf16.msra.mxu0 %v751
    %972 = vmatprep.subr.bf16.mxu0 %v760
    %973 = vmatpush1.bf16.msra.mxu0 %v759
    %974 = vmatprep.subr.bf16.mxu0 %v768
    %975 = vmatpush1.bf16.msra.mxu0 %v767
    %976 = vmatprep.mubr.bf16.mxu0 %v90
    %977 = vmatmul.mubr.bf16.gmra.mrb[0].mxu0 %v89
    %v978 = vpop.f32.mrb[0].mxu0
    %v979 = vadd.f32 %v232, %v978
    %v980 = vpop.f32.mrb[0].mxu0
    %v981 = vadd.f32 %v236, %v980
    %v982 = vpop.f32.mrb[0].mxu0
    %v983 = vadd.f32 %v232, %v982
    %v984 = vpop.f32.mrb[0].mxu0
    %v985 = vadd.f32 %v236, %v984
    %986 = vdwg.mxu0
    %987 = vmatprep.subr.bf16.mxu0 %v650
    %988 = vmatpush1.bf16.msra.mxu0 %v649
    %989 = vmatprep.subr.bf16.mxu0 %v658
    %990 = vmatpush1.bf16.msra.mxu0 %v657
    %991 = vmatprep.subr.bf16.mxu0 %v666
    %992 = vmatpush1.bf16.msra.mxu0 %v665
    %993 = vmatprep.subr.bf16.mxu0 %v674
    %994 = vmatpush1.bf16.msra.mxu0 %v673
    %995 = vmatprep.subr.bf16.mxu0 %v682
    %996 = vmatpush1.bf16.msra.mxu0 %v681
    %997 = vmatprep.subr.bf16.mxu0 %v690
    %998 = vmatpush1.bf16.msra.mxu0 %v689
    %999 = vmatprep.subr.bf16.mxu0 %v698
    %1000 = vmatpush1.bf16.msra.mxu0 %v697
    %1001 = vmatprep.subr.bf16.mxu0 %v706
    %1002 = vmatpush1.bf16.msra.mxu0 %v705
    %1003 = vmatprep.subr.bf16.mxu0 %v714
    %1004 = vmatpush1.bf16.msra.mxu0 %v713
    %1005 = vmatprep.subr.bf16.mxu0 %v722
    %1006 = vmatpush1.bf16.msra.mxu0 %v721
    %1007 = vmatprep.subr.bf16.mxu0 %v730
    %1008 = vmatpush1.bf16.msra.mxu0 %v729
    %1009 = vmatprep.subr.bf16.mxu0 %v738
    %1010 = vmatpush1.bf16.msra.mxu0 %v737
    %1011 = vmatprep.subr.bf16.mxu0 %v746
    %1012 = vmatpush1.bf16.msra.mxu0 %v745
    %1013 = vmatprep.subr.bf16.mxu0 %v754
    %1014 = vmatpush1.bf16.msra.mxu0 %v753
    %1015 = vmatprep.subr.bf16.mxu0 %v762
    %1016 = vmatpush1.bf16.msra.mxu0 %v761
    %1017 = vmatprep.subr.bf16.mxu0 %v770
    %1018 = vmatpush1.bf16.msra.mxu0 %v769
    %1019 = vmatprep.mubr.bf16.mxu0 %v90
    %1020 = vmatmul.mubr.bf16.gmra.mrb[0].mxu0 %v89
    %v1021 = vpop.f32.mrb[0].mxu0
    %v1022 = vadd.f32 %v240, %v1021
    %v1023 = vpop.f32.mrb[0].mxu0
    %v1024 = vadd.f32 %v244, %v1023
    %v1025 = vpop.f32.mrb[0].mxu0
    %v1026 = vadd.f32 %v240, %v1025
    %v1027 = vpop.f32.mrb[0].mxu0
    %v1028 = vadd.f32 %v244, %v1027
    %1029 = vdwg.mxu0
    %1030 = vmatprep.subr.bf16.mxu0 %v652
    %1031 = vmatpush1.bf16.msra.mxu0 %v651
    %1032 = vmatprep.subr.bf16.mxu0 %v660
    %1033 = vmatpush1.bf16.msra.mxu0 %v659
    %1034 = vmatprep.subr.bf16.mxu0 %v668
    %1035 = vmatpush1.bf16.msra.mxu0 %v667
    %1036 = vmatprep.subr.bf16.mxu0 %v676
    %1037 = vmatpush1.bf16.msra.mxu0 %v675
    %1038 = vmatprep.subr.bf16.mxu0 %v684
    %1039 = vmatpush1.bf16.msra.mxu0 %v683
    %1040 = vmatprep.subr.bf16.mxu0 %v692
    %1041 = vmatpush1.bf16.msra.mxu0 %v691
    %1042 = vmatprep.subr.bf16.mxu0 %v700
    %1043 = vmatpush1.bf16.msra.mxu0 %v699
    %1044 = vmatprep.subr.bf16.mxu0 %v708
    %1045 = vmatpush1.bf16.msra.mxu0 %v707
    %1046 = vmatprep.subr.bf16.mxu0 %v716
    %1047 = vmatpush1.bf16.msra.mxu0 %v715
    %1048 = vmatprep.subr.bf16.mxu0 %v724
    %1049 = vmatpush1.bf16.msra.mxu0 %v723
    %1050 = vmatprep.subr.bf16.mxu0 %v732
    %1051 = vmatpush1.bf16.msra.mxu0 %v731
    %1052 = vmatprep.subr.bf16.mxu0 %v740
    %1053 = vmatpush1.bf16.msra.mxu0 %v739
    %1054 = vmatprep.subr.bf16.mxu0 %v748
    %1055 = vmatpush1.bf16.msra.mxu0 %v747
    %1056 = vmatprep.subr.bf16.mxu0 %v756
    %1057 = vmatpush1.bf16.msra.mxu0 %v755
    %1058 = vmatprep.subr.bf16.mxu0 %v764
    %1059 = vmatpush1.bf16.msra.mxu0 %v763
    %1060 = vmatprep.subr.bf16.mxu0 %v772
    %1061 = vmatpush1.bf16.msra.mxu0 %v771
    %1062 = vmatprep.mubr.bf16.mxu0 %v90
    %1063 = vmatmul.mubr.bf16.gmra.mrb[0].mxu0 %v89
    %v1064 = vpop.f32.mrb[0].mxu0
    %v1065 = vadd.f32 %v248, %v1064
    %v1066 = vpop.f32.mrb[0].mxu0
    %v1067 = vadd.f32 %v252, %v1066
    %v1068 = vpop.f32.mrb[0].mxu0
    %v1069 = vadd.f32 %v248, %v1068
    %v1070 = vpop.f32.mrb[0].mxu0
    %v1071 = vadd.f32 %v252, %v1070
    %1072 = vdwg.mxu0
    %v1073 = vmul.f32 %v936, 0.5
    %v1074 = vmul.f32 %v938, 0.5
    %v1075 = vmul.f32 %v979, 0.5
    %v1076 = vmul.f32 %v981, 0.5
    %v1077 = vmul.f32 %v1022, 0.5
    %v1078 = vmul.f32 %v1024, 0.5
    %v1079 = vmul.f32 %v1065, 0.5
    %v1080 = vmul.f32 %v1067, 0.5
    %v1081 = vmul.f32 %v940, 0.5
    %v1082 = vmul.f32 %v942, 0.5
    %v1083 = vmul.f32 %v983, 0.5
    %v1084 = vmul.f32 %v985, 0.5
    %v1085 = vmul.f32 %v1026, 0.5
    %v1086 = vmul.f32 %v1028, 0.5
    %v1087 = vmul.f32 %v1069, 0.5
    %v1088 = vmul.f32 %v1071, 0.5
    %v1089 = vmul.f32 %v936, 0.70710677
    %v1090 = vmul.f32 %v938, 0.70710677
    %v1091 = vmul.f32 %v979, 0.70710677
    %v1092 = vmul.f32 %v981, 0.70710677
    %v1093 = vmul.f32 %v1022, 0.70710677
    %v1094 = vmul.f32 %v1024, 0.70710677
    %v1095 = vmul.f32 %v1065, 0.70710677
    %v1096 = vmul.f32 %v1067, 0.70710677
    %v1097 = vmul.f32 %v940, 0.70710677
    %v1098 = vmul.f32 %v942, 0.70710677
    %v1099 = vmul.f32 %v983, 0.70710677
    %v1100 = vmul.f32 %v985, 0.70710677
    %v1101 = vmul.f32 %v1026, 0.70710677
    %v1102 = vmul.f32 %v1028, 0.70710677
    %v1103 = vmul.f32 %v1069, 0.70710677
    %v1104 = vmul.f32 %v1071, 0.70710677
    %v1105 = vand.u32 2147483647, %v1089
    %v1106 = vand.u32 2147483647, %v1090
    %v1107 = vand.u32 2147483647, %v1091
    %v1108 = vand.u32 2147483647, %v1092
    %v1109 = vand.u32 2147483647, %v1093
    %v1110 = vand.u32 2147483647, %v1094
    %v1111 = vand.u32 2147483647, %v1095
    %v1112 = vand.u32 2147483647, %v1096
    %v1113 = vand.u32 2147483647, %v1097
    %v1114 = vand.u32 2147483647, %v1098
    %v1115 = vand.u32 2147483647, %v1099
    %v1116 = vand.u32 2147483647, %v1100
    %v1117 = vand.u32 2147483647, %v1101
    %v1118 = vand.u32 2147483647, %v1102
    %v1119 = vand.u32 2147483647, %v1103
    %v1120 = vand.u32 2147483647, %v1104
    %v1121 = vmul.f32 %v1105, 0.3275911
    %v1122 = vmul.f32 %v1106, 0.3275911
    %v1123 = vmul.f32 %v1107, 0.3275911
    %v1124 = vmul.f32 %v1108, 0.3275911
    %v1125 = vmul.f32 %v1109, 0.3275911
    %v1126 = vmul.f32 %v1110, 0.3275911
    %v1127 = vmul.f32 %v1111, 0.3275911
    %v1128 = vmul.f32 %v1112, 0.3275911
    %v1129 = vmul.f32 %v1113, 0.3275911
    %v1130 = vmul.f32 %v1114, 0.3275911
    %v1131 = vmul.f32 %v1115, 0.3275911
    %v1132 = vmul.f32 %v1116, 0.3275911
    %v1133 = vmul.f32 %v1117, 0.3275911
    %v1134 = vmul.f32 %v1118, 0.3275911
    %v1135 = vmul.f32 %v1119, 0.3275911
    %v1136 = vmul.f32 %v1120, 0.3275911
    %v1137 = vadd.f32 %v1121, 1.0
    %v1138 = vadd.f32 %v1122, 1.0
    %v1139 = vadd.f32 %v1123, 1.0
    %v1140 = vadd.f32 %v1124, 1.0
    %v1141 = vadd.f32 %v1125, 1.0
    %v1142 = vadd.f32 %v1126, 1.0
    %v1143 = vadd.f32 %v1127, 1.0
    %v1144 = vadd.f32 %v1128, 1.0
    %v1145 = vadd.f32 %v1129, 1.0
    %v1146 = vadd.f32 %v1130, 1.0
    %v1147 = vadd.f32 %v1131, 1.0
    %v1148 = vadd.f32 %v1132, 1.0
    %v1149 = vadd.f32 %v1133, 1.0
    %v1150 = vadd.f32 %v1134, 1.0
    %v1151 = vadd.f32 %v1135, 1.0
    %v1152 = vadd.f32 %v1136, 1.0
    %v1153 = vrcp.pop %v1137
    %v1154 = vrcp.pop %v1138
    %v1155 = vrcp.pop %v1139
    %v1156 = vrcp.pop %v1140
    %v1157 = vrcp.pop %v1141
    %v1158 = vrcp.pop %v1142
    %v1159 = vrcp.pop %v1143
    %v1160 = vrcp.pop %v1144
    %v1161 = vrcp.pop %v1145
    %v1162 = vrcp.pop %v1146
    %v1163 = vrcp.pop %v1147
    %v1164 = vrcp.pop %v1148
    %v1165 = vrcp.pop %v1149
    %v1166 = vrcp.pop %v1150
    %v1167 = vrcp.pop %v1151
    %v1168 = vrcp.pop %v1152
    %v1169 = vsub.f32 0.0, %v1105
    %v1170 = vsub.f32 0.0, %v1106
    %v1171 = vsub.f32 0.0, %v1107
    %v1172 = vsub.f32 0.0, %v1108
    %v1173 = vsub.f32 0.0, %v1109
    %v1174 = vsub.f32 0.0, %v1110
    %v1175 = vsub.f32 0.0, %v1111
    %v1176 = vsub.f32 0.0, %v1112
    %v1177 = vsub.f32 0.0, %v1113
    %v1178 = vsub.f32 0.0, %v1114
    %v1179 = vsub.f32 0.0, %v1115
    %v1180 = vsub.f32 0.0, %v1116
    %v1181 = vsub.f32 0.0, %v1117
    %v1182 = vsub.f32 0.0, %v1118
    %v1183 = vsub.f32 0.0, %v1119
    %v1184 = vsub.f32 0.0, %v1120
    %v1185 = vmul.f32 %v1169, %v1105
    %v1186 = vmul.f32 %v1170, %v1106
    %v1187 = vmul.f32 %v1171, %v1107
    %v1188 = vmul.f32 %v1172, %v1108
    %v1189 = vmul.f32 %v1173, %v1109
    %v1190 = vmul.f32 %v1174, %v1110
    %v1191 = vmul.f32 %v1175, %v1111
    %v1192 = vmul.f32 %v1176, %v1112
    %v1193 = vmul.f32 %v1177, %v1113
    %v1194 = vmul.f32 %v1178, %v1114
    %v1195 = vmul.f32 %v1179, %v1115
    %v1196 = vmul.f32 %v1180, %v1116
    %v1197 = vmul.f32 %v1181, %v1117
    %v1198 = vmul.f32 %v1182, %v1118
    %v1199 = vmul.f32 %v1183, %v1119
    %v1200 = vmul.f32 %v1184, %v1120
    %v1201 = vmul.f32 %v1185, 1.442695
    %v1202 = vpow.pop %v1201
    %v1203 = vmul.f32 %v1186, 1.442695
    %v1204 = vpow.pop %v1203
    %v1205 = vmul.f32 %v1187, 1.442695
    %v1206 = vpow.pop %v1205
    %v1207 = vmul.f32 %v1188, 1.442695
    %v1208 = vpow.pop %v1207
    %v1209 = vmul.f32 %v1189, 1.442695
    %v1210 = vpow.pop %v1209
    %v1211 = vmul.f32 %v1190, 1.442695
    %v1212 = vpow.pop %v1211
    %v1213 = vmul.f32 %v1191, 1.442695
    %v1214 = vpow.pop %v1213
    %v1215 = vmul.f32 %v1192, 1.442695
    %v1216 = vpow.pop %v1215
    %v1217 = vmul.f32 %v1193, 1.442695
    %v1218 = vpow.pop %v1217
    %v1219 = vmul.f32 %v1194, 1.442695
    %v1220 = vpow.pop %v1219
    %v1221 = vmul.f32 %v1195, 1.442695
    %v1222 = vpow.pop %v1221
    %v1223 = vmul.f32 %v1196, 1.442695
    %v1224 = vpow.pop %v1223
    %v1225 = vmul.f32 %v1197, 1.442695
    %v1226 = vpow.pop %v1225
    %v1227 = vmul.f32 %v1198, 1.442695
    %v1228 = vpow.pop %v1227
    %v1229 = vmul.f32 %v1199, 1.442695
    %v1230 = vpow.pop %v1229
    %v1231 = vmul.f32 %v1200, 1.442695
    %v1232 = vpow.pop %v1231
    %v1233 = vmul.f32 %v1153, 1.0614054
    %v1234 = vmul.f32 %v1154, 1.0614054
    %v1235 = vmul.f32 %v1155, 1.0614054
    %v1236 = vmul.f32 %v1156, 1.0614054
    %v1237 = vmul.f32 %v1157, 1.0614054
    %v1238 = vmul.f32 %v1158, 1.0614054
    %v1239 = vmul.f32 %v1159, 1.0614054
    %v1240 = vmul.f32 %v1160, 1.0614054
    %v1241 = vmul.f32 %v1161, 1.0614054
    %v1242 = vmul.f32 %v1162, 1.0614054
    %v1243 = vmul.f32 %v1163, 1.0614054
    %v1244 = vmul.f32 %v1164, 1.0614054
    %v1245 = vmul.f32 %v1165, 1.0614054
    %v1246 = vmul.f32 %v1166, 1.0614054
    %v1247 = vmul.f32 %v1167, 1.0614054
    %v1248 = vmul.f32 %v1168, 1.0614054
    %v1249 = vadd.f32 %v1233, -1.4531521
    %v1250 = vadd.f32 %v1234, -1.4531521
    %v1251 = vadd.f32 %v1235, -1.4531521
    %v1252 = vadd.f32 %v1236, -1.4531521
    %v1253 = vadd.f32 %v1237, -1.4531521
    %v1254 = vadd.f32 %v1238, -1.4531521
    %v1255 = vadd.f32 %v1239, -1.4531521
    %v1256 = vadd.f32 %v1240, -1.4531521
    %v1257 = vadd.f32 %v1241, -1.4531521
    %v1258 = vadd.f32 %v1242, -1.4531521
    %v1259 = vadd.f32 %v1243, -1.4531521
    %v1260 = vadd.f32 %v1244, -1.4531521
    %v1261 = vadd.f32 %v1245, -1.4531521
    %v1262 = vadd.f32 %v1246, -1.4531521
    %v1263 = vadd.f32 %v1247, -1.4531521
    %v1264 = vadd.f32 %v1248, -1.4531521
    %v1265 = vmul.f32 %v1249, %v1153
    %v1266 = vmul.f32 %v1250, %v1154
    %v1267 = vmul.f32 %v1251, %v1155
    %v1268 = vmul.f32 %v1252, %v1156
    %v1269 = vmul.f32 %v1253, %v1157
    %v1270 = vmul.f32 %v1254, %v1158
    %v1271 = vmul.f32 %v1255, %v1159
    %v1272 = vmul.f32 %v1256, %v1160
    %v1273 = vmul.f32 %v1257, %v1161
    %v1274 = vmul.f32 %v1258, %v1162
    %v1275 = vmul.f32 %v1259, %v1163
    %v1276 = vmul.f32 %v1260, %v1164
    %v1277 = vmul.f32 %v1261, %v1165
    %v1278 = vmul.f32 %v1262, %v1166
    %v1279 = vmul.f32 %v1263, %v1167
    %v1280 = vmul.f32 %v1264, %v1168
    %v1281 = vadd.f32 %v1265, 1.4214138
    %v1282 = vadd.f32 %v1266, 1.4214138
    %v1283 = vadd.f32 %v1267, 1.4214138
    %v1284 = vadd.f32 %v1268, 1.4214138
    %v1285 = vadd.f32 %v1269, 1.4214138
    %v1286 = vadd.f32 %v1270, 1.4214138
    %v1287 = vadd.f32 %v1271, 1.4214138
    %v1288 = vadd.f32 %v1272, 1.4214138
    %v1289 = vadd.f32 %v1273, 1.4214138
    %v1290 = vadd.f32 %v1274, 1.4214138
    %v1291 = vadd.f32 %v1275, 1.4214138
    %v1292 = vadd.f32 %v1276, 1.4214138
    %v1293 = vadd.f32 %v1277, 1.4214138
    %v1294 = vadd.f32 %v1278, 1.4214138
    %v1295 = vadd.f32 %v1279, 1.4214138
    %v1296 = vadd.f32 %v1280, 1.4214138
    %v1297 = vmul.f32 %v1281, %v1153
    %v1298 = vmul.f32 %v1282, %v1154
    %v1299 = vmul.f32 %v1283, %v1155
    %v1300 = vmul.f32 %v1284, %v1156
    %v1301 = vmul.f32 %v1285, %v1157
    %v1302 = vmul.f32 %v1286, %v1158
    %v1303 = vmul.f32 %v1287, %v1159
    %v1304 = vmul.f32 %v1288, %v1160
    %v1305 = vmul.f32 %v1289, %v1161
    %v1306 = vmul.f32 %v1290, %v1162
    %v1307 = vmul.f32 %v1291, %v1163
    %v1308 = vmul.f32 %v1292, %v1164
    %v1309 = vmul.f32 %v1293, %v1165
    %v1310 = vmul.f32 %v1294, %v1166
    %v1311 = vmul.f32 %v1295, %v1167
    %v1312 = vmul.f32 %v1296, %v1168
    %v1313 = vadd.f32 %v1297, -0.28449672
    %v1314 = vadd.f32 %v1298, -0.28449672
    %v1315 = vadd.f32 %v1299, -0.28449672
    %v1316 = vadd.f32 %v1300, -0.28449672
    %v1317 = vadd.f32 %v1301, -0.28449672
    %v1318 = vadd.f32 %v1302, -0.28449672
    %v1319 = vadd.f32 %v1303, -0.28449672
    %v1320 = vadd.f32 %v1304, -0.28449672
    %v1321 = vadd.f32 %v1305, -0.28449672
    %v1322 = vadd.f32 %v1306, -0.28449672
    %v1323 = vadd.f32 %v1307, -0.28449672
    %v1324 = vadd.f32 %v1308, -0.28449672
    %v1325 = vadd.f32 %v1309, -0.28449672
    %v1326 = vadd.f32 %v1310, -0.28449672
    %v1327 = vadd.f32 %v1311, -0.28449672
    %v1328 = vadd.f32 %v1312, -0.28449672
    %v1329 = vmul.f32 %v1313, %v1153
    %v1330 = vmul.f32 %v1314, %v1154
    %v1331 = vmul.f32 %v1315, %v1155
    %v1332 = vmul.f32 %v1316, %v1156
    %v1333 = vmul.f32 %v1317, %v1157
    %v1334 = vmul.f32 %v1318, %v1158
    %v1335 = vmul.f32 %v1319, %v1159
    %v1336 = vmul.f32 %v1320, %v1160
    %v1337 = vmul.f32 %v1321, %v1161
    %v1338 = vmul.f32 %v1322, %v1162
    %v1339 = vmul.f32 %v1323, %v1163
    %v1340 = vmul.f32 %v1324, %v1164
    %v1341 = vmul.f32 %v1325, %v1165
    %v1342 = vmul.f32 %v1326, %v1166
    %v1343 = vmul.f32 %v1327, %v1167
    %v1344 = vmul.f32 %v1328, %v1168
    %v1345 = vadd.f32 %v1329, 0.2548296
    %v1346 = vadd.f32 %v1330, 0.2548296
    %v1347 = vadd.f32 %v1331, 0.2548296
    %v1348 = vadd.f32 %v1332, 0.2548296
    %v1349 = vadd.f32 %v1333, 0.2548296
    %v1350 = vadd.f32 %v1334, 0.2548296
    %v1351 = vadd.f32 %v1335, 0.2548296
    %v1352 = vadd.f32 %v1336, 0.2548296
    %v1353 = vadd.f32 %v1337, 0.2548296
    %v1354 = vadd.f32 %v1338, 0.2548296
    %v1355 = vadd.f32 %v1339, 0.2548296
    %v1356 = vadd.f32 %v1340, 0.2548296
    %v1357 = vadd.f32 %v1341, 0.2548296
    %v1358 = vadd.f32 %v1342, 0.2548296
    %v1359 = vadd.f32 %v1343, 0.2548296
    %v1360 = vadd.f32 %v1344, 0.2548296
    %v1361 = vmul.f32 %v1345, %v1153
    %v1362 = vmul.f32 %v1346, %v1154
    %v1363 = vmul.f32 %v1347, %v1155
    %v1364 = vmul.f32 %v1348, %v1156
    %v1365 = vmul.f32 %v1349, %v1157
    %v1366 = vmul.f32 %v1350, %v1158
    %v1367 = vmul.f32 %v1351, %v1159
    %v1368 = vmul.f32 %v1352, %v1160
    %v1369 = vmul.f32 %v1353, %v1161
    %v1370 = vmul.f32 %v1354, %v1162
    %v1371 = vmul.f32 %v1355, %v1163
    %v1372 = vmul.f32 %v1356, %v1164
    %v1373 = vmul.f32 %v1357, %v1165
    %v1374 = vmul.f32 %v1358, %v1166
    %v1375 = vmul.f32 %v1359, %v1167
    %v1376 = vmul.f32 %v1360, %v1168
    %v1377 = vmul.f32 %v1361, %v1202
    %v1378 = vmul.f32 %v1362, %v1204
    %v1379 = vmul.f32 %v1363, %v1206
    %v1380 = vmul.f32 %v1364, %v1208
    %v1381 = vmul.f32 %v1365, %v1210
    %v1382 = vmul.f32 %v1366, %v1212
    %v1383 = vmul.f32 %v1367, %v1214
    %v1384 = vmul.f32 %v1368, %v1216
    %v1385 = vmul.f32 %v1369, %v1218
    %v1386 = vmul.f32 %v1370, %v1220
    %v1387 = vmul.f32 %v1371, %v1222
    %v1388 = vmul.f32 %v1372, %v1224
    %v1389 = vmul.f32 %v1373, %v1226
    %v1390 = vmul.f32 %v1374, %v1228
    %v1391 = vmul.f32 %v1375, %v1230
    %v1392 = vmul.f32 %v1376, %v1232
    %v1393 = vsub.f32 1.0, %v1377
    %v1394 = vsub.f32 1.0, %v1378
    %v1395 = vsub.f32 1.0, %v1379
    %v1396 = vsub.f32 1.0, %v1380
    %v1397 = vsub.f32 1.0, %v1381
    %v1398 = vsub.f32 1.0, %v1382
    %v1399 = vsub.f32 1.0, %v1383
    %v1400 = vsub.f32 1.0, %v1384
    %v1401 = vsub.f32 1.0, %v1385
    %v1402 = vsub.f32 1.0, %v1386
    %v1403 = vsub.f32 1.0, %v1387
    %v1404 = vsub.f32 1.0, %v1388
    %v1405 = vsub.f32 1.0, %v1389
    %v1406 = vsub.f32 1.0, %v1390
    %v1407 = vsub.f32 1.0, %v1391
    %v1408 = vsub.f32 1.0, %v1392
    %vm1409 = vcmp.lt.f32.partialorder %v1089, 0.0
    %vm1410 = vcmp.lt.f32.partialorder %v1090, 0.0
    %vm1411 = vcmp.lt.f32.partialorder %v1091, 0.0
    %vm1412 = vcmp.lt.f32.partialorder %v1092, 0.0
    %vm1413 = vcmp.lt.f32.partialorder %v1093, 0.0
    %vm1414 = vcmp.lt.f32.partialorder %v1094, 0.0
    %vm1415 = vcmp.lt.f32.partialorder %v1095, 0.0
    %vm1416 = vcmp.lt.f32.partialorder %v1096, 0.0
    %vm1417 = vcmp.lt.f32.partialorder %v1097, 0.0
    %vm1418 = vcmp.lt.f32.partialorder %v1098, 0.0
    %vm1419 = vcmp.lt.f32.partialorder %v1099, 0.0
    %vm1420 = vcmp.lt.f32.partialorder %v1100, 0.0
    %vm1421 = vcmp.lt.f32.partialorder %v1101, 0.0
    %vm1422 = vcmp.lt.f32.partialorder %v1102, 0.0
    %vm1423 = vcmp.lt.f32.partialorder %v1103, 0.0
    %vm1424 = vcmp.lt.f32.partialorder %v1104, 0.0
    %v1425 = vsub.f32 0.0, %v1393
    %v1426 = vsub.f32 0.0, %v1394
    %v1427 = vsub.f32 0.0, %v1395
    %v1428 = vsub.f32 0.0, %v1396
    %v1429 = vsub.f32 0.0, %v1397
    %v1430 = vsub.f32 0.0, %v1398
    %v1431 = vsub.f32 0.0, %v1399
    %v1432 = vsub.f32 0.0, %v1400
    %v1433 = vsub.f32 0.0, %v1401
    %v1434 = vsub.f32 0.0, %v1402
    %v1435 = vsub.f32 0.0, %v1403
    %v1436 = vsub.f32 0.0, %v1404
    %v1437 = vsub.f32 0.0, %v1405
    %v1438 = vsub.f32 0.0, %v1406
    %v1439 = vsub.f32 0.0, %v1407
    %v1440 = vsub.f32 0.0, %v1408
    %v1441 = vsel %vm1409, %v1425, %v1393
    %v1442 = vsel %vm1410, %v1426, %v1394
    %v1443 = vsel %vm1411, %v1427, %v1395
    %v1444 = vsel %vm1412, %v1428, %v1396
    %v1445 = vsel %vm1413, %v1429, %v1397
    %v1446 = vsel %vm1414, %v1430, %v1398
    %v1447 = vsel %vm1415, %v1431, %v1399
    %v1448 = vsel %vm1416, %v1432, %v1400
    %v1449 = vsel %vm1417, %v1433, %v1401
    %v1450 = vsel %vm1418, %v1434, %v1402
    %v1451 = vsel %vm1419, %v1435, %v1403
    %v1452 = vsel %vm1420, %v1436, %v1404
    %v1453 = vsel %vm1421, %v1437, %v1405
    %v1454 = vsel %vm1422, %v1438, %v1406
    %v1455 = vsel %vm1423, %v1439, %v1407
    %v1456 = vsel %vm1424, %v1440, %v1408
    %v1457 = vadd.f32 %v1441, 1.0
    %v1458 = vadd.f32 %v1442, 1.0
    %v1459 = vadd.f32 %v1443, 1.0
    %v1460 = vadd.f32 %v1444, 1.0
    %v1461 = vadd.f32 %v1445, 1.0
    %v1462 = vadd.f32 %v1446, 1.0
    %v1463 = vadd.f32 %v1447, 1.0
    %v1464 = vadd.f32 %v1448, 1.0
    %v1465 = vadd.f32 %v1449, 1.0
    %v1466 = vadd.f32 %v1450, 1.0
    %v1467 = vadd.f32 %v1451, 1.0
    %v1468 = vadd.f32 %v1452, 1.0
    %v1469 = vadd.f32 %v1453, 1.0
    %v1470 = vadd.f32 %v1454, 1.0
    %v1471 = vadd.f32 %v1455, 1.0
    %v1472 = vadd.f32 %v1456, 1.0
    %v1473 = vmul.f32 %v1073, %v1457
    %v1474 = vmul.f32 %v1074, %v1458
    %v1475 = vmul.f32 %v1075, %v1459
    %v1476 = vmul.f32 %v1076, %v1460
    %v1477 = vmul.f32 %v1077, %v1461
    %v1478 = vmul.f32 %v1078, %v1462
    %v1479 = vmul.f32 %v1079, %v1463
    %v1480 = vmul.f32 %v1080, %v1464
    %v1481 = vmul.f32 %v1081, %v1465
    %v1482 = vmul.f32 %v1082, %v1466
    %v1483 = vmul.f32 %v1083, %v1467
    %v1484 = vmul.f32 %v1084, %v1468
    %v1485 = vmul.f32 %v1085, %v1469
    %v1486 = vmul.f32 %v1086, %v1470
    %v1487 = vmul.f32 %v1087, %v1471
    %v1488 = vmul.f32 %v1088, %v1472
    %v1489 = vpack.c.bf16 %v1481, %v1473
    %v1490 = vpack.c.bf16 %v1482, %v1474
    %v1491 = vpack.c.bf16 %v1483, %v1475
    %v1492 = vpack.c.bf16 %v1484, %v1476
    %v1493 = vpack.c.bf16 %v1485, %v1477
    %v1494 = vpack.c.bf16 %v1486, %v1478
    %v1495 = vpack.c.bf16 %v1487, %v1479
    %v1496 = vpack.c.bf16 %v1488, %v1480
    %v1497 = vld [vmem:[#allocation8] sm:$0xff]
    %v1498 = vld [vmem:[#allocation8 + $0x8] sm:$0xff]
    %v1499 = vld [vmem:[#allocation8 + $0x10] sm:$0xff]
    %v1500 = vld [vmem:[#allocation8 + $0x18] sm:$0xff]
    %v1501 = vld [vmem:[#allocation8 + $0x20] sm:$0xff]
    %v1502 = vld [vmem:[#allocation8 + $0x28] sm:$0xff]
    %v1503 = vld [vmem:[#allocation8 + $0x30] sm:$0xff]
    %v1504 = vld [vmem:[#allocation8 + $0x38] sm:$0xff]
    %v1505 = vld [vmem:[#allocation8 + $0x40] sm:$0xff]
    %v1506 = vld [vmem:[#allocation8 + $0x48] sm:$0xff]
    %v1507 = vld [vmem:[#allocation8 + $0x50] sm:$0xff]
    %v1508 = vld [vmem:[#allocation8 + $0x58] sm:$0xff]
    %v1509 = vld [vmem:[#allocation8 + $0x60] sm:$0xff]
    %v1510 = vld [vmem:[#allocation8 + $0x68] sm:$0xff]
    %v1511 = vld [vmem:[#allocation8 + $0x70] sm:$0xff]
    %v1512 = vld [vmem:[#allocation8 + $0x78] sm:$0xff]
    %v1513 = vld [vmem:[#allocation8 + $0x80] sm:$0xff]
    %v1514 = vld [vmem:[#allocation8 + $0x88] sm:$0xff]
    %v1515 = vld [vmem:[#allocation8 + $0x90] sm:$0xff]
    %v1516 = vld [vmem:[#allocation8 + $0x98] sm:$0xff]
    %v1517 = vld [vmem:[#allocation8 + $0xa0] sm:$0xff]
    %v1518 = vld [vmem:[#allocation8 + $0xa8] sm:$0xff]
    %v1519 = vld [vmem:[#allocation8 + $0xb0] sm:$0xff]
    %v1520 = vld [vmem:[#allocation8 + $0xb8] sm:$0xff]
    %v1521 = vld [vmem:[#allocation8 + $0xc0] sm:$0xff]
    %v1522 = vld [vmem:[#allocation8 + $0xc8] sm:$0xff]
    %v1523 = vld [vmem:[#allocation8 + $0xd0] sm:$0xff]
    %v1524 = vld [vmem:[#allocation8 + $0xd8] sm:$0xff]
    %v1525 = vld [vmem:[#allocation8 + $0xe0] sm:$0xff]
    %v1526 = vld [vmem:[#allocation8 + $0xe8] sm:$0xff]
    %v1527 = vld [vmem:[#allocation8 + $0xf0] sm:$0xff]
    %v1528 = vld [vmem:[#allocation8 + $0xf8] sm:$0xff]
    %v1529 = vld [vmem:[#allocation8 + $0x100] sm:$0xff]
    %v1530 = vld [vmem:[#allocation8 + $0x108] sm:$0xff]
    %v1531 = vld [vmem:[#allocation8 + $0x110] sm:$0xff]
    %v1532 = vld [vmem:[#allocation8 + $0x118] sm:$0xff]
    %v1533 = vld [vmem:[#allocation8 + $0x120] sm:$0xff]
    %v1534 = vld [vmem:[#allocation8 + $0x128] sm:$0xff]
    %v1535 = vld [vmem:[#allocation8 + $0x130] sm:$0xff]
    %v1536 = vld [vmem:[#allocation8 + $0x138] sm:$0xff]
    %v1537 = vld [vmem:[#allocation8 + $0x140] sm:$0xff]
    %v1538 = vld [vmem:[#allocation8 + $0x148] sm:$0xff]
    %v1539 = vld [vmem:[#allocation8 + $0x150] sm:$0xff]
    %v1540 = vld [vmem:[#allocation8 + $0x158] sm:$0xff]
    %v1541 = vld [vmem:[#allocation8 + $0x160] sm:$0xff]
    %v1542 = vld [vmem:[#allocation8 + $0x168] sm:$0xff]
    %v1543 = vld [vmem:[#allocation8 + $0x170] sm:$0xff]
    %v1544 = vld [vmem:[#allocation8 + $0x178] sm:$0xff]
    %v1545 = vld [vmem:[#allocation8 + $0x180] sm:$0xff]
    %v1546 = vld [vmem:[#allocation8 + $0x188] sm:$0xff]
    %v1547 = vld [vmem:[#allocation8 + $0x190] sm:$0xff]
    %v1548 = vld [vmem:[#allocation8 + $0x198] sm:$0xff]
    %v1549 = vld [vmem:[#allocation8 + $0x1a0] sm:$0xff]
    %v1550 = vld [vmem:[#allocation8 + $0x1a8] sm:$0xff]
    %v1551 = vld [vmem:[#allocation8 + $0x1b0] sm:$0xff]
    %v1552 = vld [vmem:[#allocation8 + $0x1b8] sm:$0xff]
    %v1553 = vld [vmem:[#allocation8 + $0x1c0] sm:$0xff]
    %v1554 = vld [vmem:[#allocation8 + $0x1c8] sm:$0xff]
    %v1555 = vld [vmem:[#allocation8 + $0x1d0] sm:$0xff]
    %v1556 = vld [vmem:[#allocation8 + $0x1d8] sm:$0xff]
    %v1557 = vld [vmem:[#allocation8 + $0x1e0] sm:$0xff]
    %v1558 = vld [vmem:[#allocation8 + $0x1e8] sm:$0xff]
    %v1559 = vld [vmem:[#allocation8 + $0x1f0] sm:$0xff]
    %v1560 = vld [vmem:[#allocation8 + $0x1f8] sm:$0xff]
    %v1561 = vld [vmem:[#allocation8 + $0x200] sm:$0xff]
    %v1562 = vld [vmem:[#allocation8 + $0x208] sm:$0xff]
    %v1563 = vld [vmem:[#allocation8 + $0x210] sm:$0xff]
    %v1564 = vld [vmem:[#allocation8 + $0x218] sm:$0xff]
    %v1565 = vld [vmem:[#allocation8 + $0x220] sm:$0xff]
    %v1566 = vld [vmem:[#allocation8 + $0x228] sm:$0xff]
    %v1567 = vld [vmem:[#allocation8 + $0x230] sm:$0xff]
    %v1568 = vld [vmem:[#allocation8 + $0x238] sm:$0xff]
    %v1569 = vld [vmem:[#allocation8 + $0x240] sm:$0xff]
    %v1570 = vld [vmem:[#allocation8 + $0x248] sm:$0xff]
    %v1571 = vld [vmem:[#allocation8 + $0x250] sm:$0xff]
    %v1572 = vld [vmem:[#allocation8 + $0x258] sm:$0xff]
    %v1573 = vld [vmem:[#allocation8 + $0x260] sm:$0xff]
    %v1574 = vld [vmem:[#allocation8 + $0x268] sm:$0xff]
    %v1575 = vld [vmem:[#allocation8 + $0x270] sm:$0xff]
    %v1576 = vld [vmem:[#allocation8 + $0x278] sm:$0xff]
    %v1577 = vld [vmem:[#allocation8 + $0x280] sm:$0xff]
    %v1578 = vld [vmem:[#allocation8 + $0x288] sm:$0xff]
    %v1579 = vld [vmem:[#allocation8 + $0x290] sm:$0xff]
    %v1580 = vld [vmem:[#allocation8 + $0x298] sm:$0xff]
    %v1581 = vld [vmem:[#allocation8 + $0x2a0] sm:$0xff]
    %v1582 = vld [vmem:[#allocation8 + $0x2a8] sm:$0xff]
    %v1583 = vld [vmem:[#allocation8 + $0x2b0] sm:$0xff]
    %v1584 = vld [vmem:[#allocation8 + $0x2b8] sm:$0xff]
    %v1585 = vld [vmem:[#allocation8 + $0x2c0] sm:$0xff]
    %v1586 = vld [vmem:[#allocation8 + $0x2c8] sm:$0xff]
    %v1587 = vld [vmem:[#allocation8 + $0x2d0] sm:$0xff]
    %v1588 = vld [vmem:[#allocation8 + $0x2d8] sm:$0xff]
    %v1589 = vld [vmem:[#allocation8 + $0x2e0] sm:$0xff]
    %v1590 = vld [vmem:[#allocation8 + $0x2e8] sm:$0xff]
    %v1591 = vld [vmem:[#allocation8 + $0x2f0] sm:$0xff]
    %v1592 = vld [vmem:[#allocation8 + $0x2f8] sm:$0xff]
    %v1593 = vld [vmem:[#allocation8 + $0x300] sm:$0xff]
    %v1594 = vld [vmem:[#allocation8 + $0x308] sm:$0xff]
    %v1595 = vld [vmem:[#allocation8 + $0x310] sm:$0xff]
    %v1596 = vld [vmem:[#allocation8 + $0x318] sm:$0xff]
    %v1597 = vld [vmem:[#allocation8 + $0x320] sm:$0xff]
    %v1598 = vld [vmem:[#allocation8 + $0x328] sm:$0xff]
    %v1599 = vld [vmem:[#allocation8 + $0x330] sm:$0xff]
    %v1600 = vld [vmem:[#allocation8 + $0x338] sm:$0xff]
    %v1601 = vld [vmem:[#allocation8 + $0x340] sm:$0xff]
    %v1602 = vld [vmem:[#allocation8 + $0x348] sm:$0xff]
    %v1603 = vld [vmem:[#allocation8 + $0x350] sm:$0xff]
    %v1604 = vld [vmem:[#allocation8 + $0x358] sm:$0xff]
    %v1605 = vld [vmem:[#allocation8 + $0x360] sm:$0xff]
    %v1606 = vld [vmem:[#allocation8 + $0x368] sm:$0xff]
    %v1607 = vld [vmem:[#allocation8 + $0x370] sm:$0xff]
    %v1608 = vld [vmem:[#allocation8 + $0x378] sm:$0xff]
    %v1609 = vld [vmem:[#allocation8 + $0x380] sm:$0xff]
    %v1610 = vld [vmem:[#allocation8 + $0x388] sm:$0xff]
    %v1611 = vld [vmem:[#allocation8 + $0x390] sm:$0xff]
    %v1612 = vld [vmem:[#allocation8 + $0x398] sm:$0xff]
    %v1613 = vld [vmem:[#allocation8 + $0x3a0] sm:$0xff]
    %v1614 = vld [vmem:[#allocation8 + $0x3a8] sm:$0xff]
    %v1615 = vld [vmem:[#allocation8 + $0x3b0] sm:$0xff]
    %v1616 = vld [vmem:[#allocation8 + $0x3b8] sm:$0xff]
    %v1617 = vld [vmem:[#allocation8 + $0x3c0] sm:$0xff]
    %v1618 = vld [vmem:[#allocation8 + $0x3c8] sm:$0xff]
    %v1619 = vld [vmem:[#allocation8 + $0x3d0] sm:$0xff]
    %v1620 = vld [vmem:[#allocation8 + $0x3d8] sm:$0xff]
    %v1621 = vld [vmem:[#allocation8 + $0x3e0] sm:$0xff]
    %v1622 = vld [vmem:[#allocation8 + $0x3e8] sm:$0xff]
    %v1623 = vld [vmem:[#allocation8 + $0x3f0] sm:$0xff]
    %v1624 = vld [vmem:[#allocation8 + $0x3f8] sm:$0xff]
    %v1625 = vld [vmem:[#allocation10] sm:$0x3]
    %v1627 = vlaneseq
    %v1628 = vshrl.u32 %v1627, 7
    %v1629 = vsub.s32 0, %v1628
    %v1630 = vrot.slane %v1625, %v1629
    %v1631 = vlaneseq
    %v1632 = vshrl.u32 %v1631, 7
    %v1633 = vsub.s32 1, %v1632
    %v1634 = vrot.slane %v1625, %v1633
    %v1765 = vunpack.c.l.b16 %v1497
    %v1766 = vunpack.c.h.b16 %v1497
    %v1767 = vunpack.c.l.b16 %v1498
    %v1768 = vunpack.c.h.b16 %v1498
    %v1769 = vunpack.c.l.b16 %v1499
    %v1770 = vunpack.c.h.b16 %v1499
    %v1771 = vunpack.c.l.b16 %v1500
    %v1772 = vunpack.c.h.b16 %v1500
    %v1773 = vunpack.c.l.b16 %v1501
    %v1774 = vunpack.c.h.b16 %v1501
    %v1775 = vunpack.c.l.b16 %v1502
    %v1776 = vunpack.c.h.b16 %v1502
    %v1777 = vunpack.c.l.b16 %v1503
    %v1778 = vunpack.c.h.b16 %v1503
    %v1779 = vunpack.c.l.b16 %v1504
    %v1780 = vunpack.c.h.b16 %v1504
    %v1781 = vunpack.c.l.b16 %v1505
    %v1782 = vunpack.c.h.b16 %v1505
    %v1783 = vunpack.c.l.b16 %v1506
    %v1784 = vunpack.c.h.b16 %v1506
    %v1785 = vunpack.c.l.b16 %v1507
    %v1786 = vunpack.c.h.b16 %v1507
    %v1787 = vunpack.c.l.b16 %v1508
    %v1788 = vunpack.c.h.b16 %v1508
    %v1789 = vunpack.c.l.b16 %v1509
    %v1790 = vunpack.c.h.b16 %v1509
    %v1791 = vunpack.c.l.b16 %v1510
    %v1792 = vunpack.c.h.b16 %v1510
    %v1793 = vunpack.c.l.b16 %v1511
    %v1794 = vunpack.c.h.b16 %v1511
    %v1795 = vunpack.c.l.b16 %v1512
    %v1796 = vunpack.c.h.b16 %v1512
    %v1797 = vunpack.c.l.b16 %v1513
    %v1798 = vunpack.c.h.b16 %v1513
    %v1799 = vunpack.c.l.b16 %v1514
    %v1800 = vunpack.c.h.b16 %v1514
    %v1801 = vunpack.c.l.b16 %v1515
    %v1802 = vunpack.c.h.b16 %v1515
    %v1803 = vunpack.c.l.b16 %v1516
    %v1804 = vunpack.c.h.b16 %v1516
    %v1805 = vunpack.c.l.b16 %v1517
    %v1806 = vunpack.c.h.b16 %v1517
    %v1807 = vunpack.c.l.b16 %v1518
    %v1808 = vunpack.c.h.b16 %v1518
    %v1809 = vunpack.c.l.b16 %v1519
    %v1810 = vunpack.c.h.b16 %v1519
    %v1811 = vunpack.c.l.b16 %v1520
    %v1812 = vunpack.c.h.b16 %v1520
    %v1813 = vunpack.c.l.b16 %v1521
    %v1814 = vunpack.c.h.b16 %v1521
    %v1815 = vunpack.c.l.b16 %v1522
    %v1816 = vunpack.c.h.b16 %v1522
    %v1817 = vunpack.c.l.b16 %v1523
    %v1818 = vunpack.c.h.b16 %v1523
    %v1819 = vunpack.c.l.b16 %v1524
    %v1820 = vunpack.c.h.b16 %v1524
    %v1821 = vunpack.c.l.b16 %v1525
    %v1822 = vunpack.c.h.b16 %v1525
    %v1823 = vunpack.c.l.b16 %v1526
    %v1824 = vunpack.c.h.b16 %v1526
    %v1825 = vunpack.c.l.b16 %v1527
    %v1826 = vunpack.c.h.b16 %v1527
    %v1827 = vunpack.c.l.b16 %v1528
    %v1828 = vunpack.c.h.b16 %v1528
    %v1829 = vunpack.c.l.b16 %v1529
    %v1830 = vunpack.c.h.b16 %v1529
    %v1831 = vunpack.c.l.b16 %v1530
    %v1832 = vunpack.c.h.b16 %v1530
    %v1833 = vunpack.c.l.b16 %v1531
    %v1834 = vunpack.c.h.b16 %v1531
    %v1835 = vunpack.c.l.b16 %v1532
    %v1836 = vunpack.c.h.b16 %v1532
    %v1837 = vunpack.c.l.b16 %v1533
    %v1838 = vunpack.c.h.b16 %v1533
    %v1839 = vunpack.c.l.b16 %v1534
    %v1840 = vunpack.c.h.b16 %v1534
    %v1841 = vunpack.c.l.b16 %v1535
    %v1842 = vunpack.c.h.b16 %v1535
    %v1843 = vunpack.c.l.b16 %v1536
    %v1844 = vunpack.c.h.b16 %v1536
    %v1845 = vunpack.c.l.b16 %v1537
    %v1846 = vunpack.c.h.b16 %v1537
    %v1847 = vunpack.c.l.b16 %v1538
    %v1848 = vunpack.c.h.b16 %v1538
    %v1849 = vunpack.c.l.b16 %v1539
    %v1850 = vunpack.c.h.b16 %v1539
    %v1851 = vunpack.c.l.b16 %v1540
    %v1852 = vunpack.c.h.b16 %v1540
    %v1853 = vunpack.c.l.b16 %v1541
    %v1854 = vunpack.c.h.b16 %v1541
    %v1855 = vunpack.c.l.b16 %v1542
    %v1856 = vunpack.c.h.b16 %v1542
    %v1857 = vunpack.c.l.b16 %v1543
    %v1858 = vunpack.c.h.b16 %v1543
    %v1859 = vunpack.c.l.b16 %v1544
    %v1860 = vunpack.c.h.b16 %v1544
    %v1861 = vunpack.c.l.b16 %v1545
    %v1862 = vunpack.c.h.b16 %v1545
    %v1863 = vunpack.c.l.b16 %v1546
    %v1864 = vunpack.c.h.b16 %v1546
    %v1865 = vunpack.c.l.b16 %v1547
    %v1866 = vunpack.c.h.b16 %v1547
    %v1867 = vunpack.c.l.b16 %v1548
    %v1868 = vunpack.c.h.b16 %v1548
    %v1869 = vunpack.c.l.b16 %v1549
    %v1870 = vunpack.c.h.b16 %v1549
    %v1871 = vunpack.c.l.b16 %v1550
    %v1872 = vunpack.c.h.b16 %v1550
    %v1873 = vunpack.c.l.b16 %v1551
    %v1874 = vunpack.c.h.b16 %v1551
    %v1875 = vunpack.c.l.b16 %v1552
    %v1876 = vunpack.c.h.b16 %v1552
    %v1877 = vunpack.c.l.b16 %v1553
    %v1878 = vunpack.c.h.b16 %v1553
    %v1879 = vunpack.c.l.b16 %v1554
    %v1880 = vunpack.c.h.b16 %v1554
    %v1881 = vunpack.c.l.b16 %v1555
    %v1882 = vunpack.c.h.b16 %v1555
    %v1883 = vunpack.c.l.b16 %v1556
    %v1884 = vunpack.c.h.b16 %v1556
    %v1885 = vunpack.c.l.b16 %v1557
    %v1886 = vunpack.c.h.b16 %v1557
    %v1887 = vunpack.c.l.b16 %v1558
    %v1888 = vunpack.c.h.b16 %v1558
    %v1889 = vunpack.c.l.b16 %v1559
    %v1890 = vunpack.c.h.b16 %v1559
    %v1891 = vunpack.c.l.b16 %v1560
    %v1892 = vunpack.c.h.b16 %v1560
    %v1893 = vunpack.c.l.b16 %v1561
    %v1894 = vunpack.c.h.b16 %v1561
    %v1895 = vunpack.c.l.b16 %v1562
    %v1896 = vunpack.c.h.b16 %v1562
    %v1897 = vunpack.c.l.b16 %v1563
    %v1898 = vunpack.c.h.b16 %v1563
    %v1899 = vunpack.c.l.b16 %v1564
    %v1900 = vunpack.c.h.b16 %v1564
    %v1901 = vunpack.c.l.b16 %v1565
    %v1902 = vunpack.c.h.b16 %v1565
    %v1903 = vunpack.c.l.b16 %v1566
    %v1904 = vunpack.c.h.b16 %v1566
    %v1905 = vunpack.c.l.b16 %v1567
    %v1906 = vunpack.c.h.b16 %v1567
    %v1907 = vunpack.c.l.b16 %v1568
    %v1908 = vunpack.c.h.b16 %v1568
    %v1909 = vunpack.c.l.b16 %v1569
    %v1910 = vunpack.c.h.b16 %v1569
    %v1911 = vunpack.c.l.b16 %v1570
    %v1912 = vunpack.c.h.b16 %v1570
    %v1913 = vunpack.c.l.b16 %v1571
    %v1914 = vunpack.c.h.b16 %v1571
    %v1915 = vunpack.c.l.b16 %v1572
    %v1916 = vunpack.c.h.b16 %v1572
    %v1917 = vunpack.c.l.b16 %v1573
    %v1918 = vunpack.c.h.b16 %v1573
    %v1919 = vunpack.c.l.b16 %v1574
    %v1920 = vunpack.c.h.b16 %v1574
    %v1921 = vunpack.c.l.b16 %v1575
    %v1922 = vunpack.c.h.b16 %v1575
    %v1923 = vunpack.c.l.b16 %v1576
    %v1924 = vunpack.c.h.b16 %v1576
    %v1925 = vunpack.c.l.b16 %v1577
    %v1926 = vunpack.c.h.b16 %v1577
    %v1927 = vunpack.c.l.b16 %v1578
    %v1928 = vunpack.c.h.b16 %v1578
    %v1929 = vunpack.c.l.b16 %v1579
    %v1930 = vunpack.c.h.b16 %v1579
    %v1931 = vunpack.c.l.b16 %v1580
    %v1932 = vunpack.c.h.b16 %v1580
    %v1933 = vunpack.c.l.b16 %v1581
    %v1934 = vunpack.c.h.b16 %v1581
    %v1935 = vunpack.c.l.b16 %v1582
    %v1936 = vunpack.c.h.b16 %v1582
    %v1937 = vunpack.c.l.b16 %v1583
    %v1938 = vunpack.c.h.b16 %v1583
    %v1939 = vunpack.c.l.b16 %v1584
    %v1940 = vunpack.c.h.b16 %v1584
    %v1941 = vunpack.c.l.b16 %v1585
    %v1942 = vunpack.c.h.b16 %v1585
    %v1943 = vunpack.c.l.b16 %v1586
    %v1944 = vunpack.c.h.b16 %v1586
    %v1945 = vunpack.c.l.b16 %v1587
    %v1946 = vunpack.c.h.b16 %v1587
    %v1947 = vunpack.c.l.b16 %v1588
    %v1948 = vunpack.c.h.b16 %v1588
    %v1949 = vunpack.c.l.b16 %v1589
    %v1950 = vunpack.c.h.b16 %v1589
    %v1951 = vunpack.c.l.b16 %v1590
    %v1952 = vunpack.c.h.b16 %v1590
    %v1953 = vunpack.c.l.b16 %v1591
    %v1954 = vunpack.c.h.b16 %v1591
    %v1955 = vunpack.c.l.b16 %v1592
    %v1956 = vunpack.c.h.b16 %v1592
    %v1957 = vunpack.c.l.b16 %v1593
    %v1958 = vunpack.c.h.b16 %v1593
    %v1959 = vunpack.c.l.b16 %v1594
    %v1960 = vunpack.c.h.b16 %v1594
    %v1961 = vunpack.c.l.b16 %v1595
    %v1962 = vunpack.c.h.b16 %v1595
    %v1963 = vunpack.c.l.b16 %v1596
    %v1964 = vunpack.c.h.b16 %v1596
    %v1965 = vunpack.c.l.b16 %v1597
    %v1966 = vunpack.c.h.b16 %v1597
    %v1967 = vunpack.c.l.b16 %v1598
    %v1968 = vunpack.c.h.b16 %v1598
    %v1969 = vunpack.c.l.b16 %v1599
    %v1970 = vunpack.c.h.b16 %v1599
    %v1971 = vunpack.c.l.b16 %v1600
    %v1972 = vunpack.c.h.b16 %v1600
    %v1973 = vunpack.c.l.b16 %v1601
    %v1974 = vunpack.c.h.b16 %v1601
    %v1975 = vunpack.c.l.b16 %v1602
    %v1976 = vunpack.c.h.b16 %v1602
    %v1977 = vunpack.c.l.b16 %v1603
    %v1978 = vunpack.c.h.b16 %v1603
    %v1979 = vunpack.c.l.b16 %v1604
    %v1980 = vunpack.c.h.b16 %v1604
    %v1981 = vunpack.c.l.b16 %v1605
    %v1982 = vunpack.c.h.b16 %v1605
    %v1983 = vunpack.c.l.b16 %v1606
    %v1984 = vunpack.c.h.b16 %v1606
    %v1985 = vunpack.c.l.b16 %v1607
    %v1986 = vunpack.c.h.b16 %v1607
    %v1987 = vunpack.c.l.b16 %v1608
    %v1988 = vunpack.c.h.b16 %v1608
    %v1989 = vunpack.c.l.b16 %v1609
    %v1990 = vunpack.c.h.b16 %v1609
    %v1991 = vunpack.c.l.b16 %v1610
    %v1992 = vunpack.c.h.b16 %v1610
    %v1993 = vunpack.c.l.b16 %v1611
    %v1994 = vunpack.c.h.b16 %v1611
    %v1995 = vunpack.c.l.b16 %v1612
    %v1996 = vunpack.c.h.b16 %v1612
    %v1997 = vunpack.c.l.b16 %v1613
    %v1998 = vunpack.c.h.b16 %v1613
    %v1999 = vunpack.c.l.b16 %v1614
    %v2000 = vunpack.c.h.b16 %v1614
    %v2001 = vunpack.c.l.b16 %v1615
    %v2002 = vunpack.c.h.b16 %v1615
    %v2003 = vunpack.c.l.b16 %v1616
    %v2004 = vunpack.c.h.b16 %v1616
    %v2005 = vunpack.c.l.b16 %v1617
    %v2006 = vunpack.c.h.b16 %v1617
    %v2007 = vunpack.c.l.b16 %v1618
    %v2008 = vunpack.c.h.b16 %v1618
    %v2009 = vunpack.c.l.b16 %v1619
    %v2010 = vunpack.c.h.b16 %v1619
    %v2011 = vunpack.c.l.b16 %v1620
    %v2012 = vunpack.c.h.b16 %v1620
    %v2013 = vunpack.c.l.b16 %v1621
    %v2014 = vunpack.c.h.b16 %v1621
    %v2015 = vunpack.c.l.b16 %v1622
    %v2016 = vunpack.c.h.b16 %v1622
    %v2017 = vunpack.c.l.b16 %v1623
    %v2018 = vunpack.c.h.b16 %v1623
    %v2019 = vunpack.c.l.b16 %v1624
    %v2020 = vunpack.c.h.b16 %v1624
    %v2021 = vpack.c.b16 %v1767, %v1765
    %v2022 = vpack.c.b16 %v1768, %v1766
    %v2023 = vpack.c.b16 %v1771, %v1769
    %v2024 = vpack.c.b16 %v1772, %v1770
    %v2025 = vpack.c.b16 %v1775, %v1773
    %v2026 = vpack.c.b16 %v1776, %v1774
    %v2027 = vpack.c.b16 %v1779, %v1777
    %v2028 = vpack.c.b16 %v1780, %v1778
    %v2029 = vpack.c.b16 %v1783, %v1781
    %v2030 = vpack.c.b16 %v1784, %v1782
    %v2031 = vpack.c.b16 %v1787, %v1785
    %v2032 = vpack.c.b16 %v1788, %v1786
    %v2033 = vpack.c.b16 %v1791, %v1789
    %v2034 = vpack.c.b16 %v1792, %v1790
    %v2035 = vpack.c.b16 %v1795, %v1793
    %v2036 = vpack.c.b16 %v1796, %v1794
    %v2037 = vpack.c.b16 %v1799, %v1797
    %v2038 = vpack.c.b16 %v1800, %v1798
    %v2039 = vpack.c.b16 %v1803, %v1801
    %v2040 = vpack.c.b16 %v1804, %v1802
    %v2041 = vpack.c.b16 %v1807, %v1805
    %v2042 = vpack.c.b16 %v1808, %v1806
    %v2043 = vpack.c.b16 %v1811, %v1809
    %v2044 = vpack.c.b16 %v1812, %v1810
    %v2045 = vpack.c.b16 %v1815, %v1813
    %v2046 = vpack.c.b16 %v1816, %v1814
    %v2047 = vpack.c.b16 %v1819, %v1817
    %v2048 = vpack.c.b16 %v1820, %v1818
    %v2049 = vpack.c.b16 %v1823, %v1821
    %v2050 = vpack.c.b16 %v1824, %v1822
    %v2051 = vpack.c.b16 %v1827, %v1825
    %v2052 = vpack.c.b16 %v1828, %v1826
    %v2053 = vpack.c.b16 %v1831, %v1829
    %v2054 = vpack.c.b16 %v1832, %v1830
    %v2055 = vpack.c.b16 %v1835, %v1833
    %v2056 = vpack.c.b16 %v1836, %v1834
    %v2057 = vpack.c.b16 %v1839, %v1837
    %v2058 = vpack.c.b16 %v1840, %v1838
    %v2059 = vpack.c.b16 %v1843, %v1841
    %v2060 = vpack.c.b16 %v1844, %v1842
    %v2061 = vpack.c.b16 %v1847, %v1845
    %v2062 = vpack.c.b16 %v1848, %v1846
    %v2063 = vpack.c.b16 %v1851, %v1849
    %v2064 = vpack.c.b16 %v1852, %v1850
    %v2065 = vpack.c.b16 %v1855, %v1853
    %v2066 = vpack.c.b16 %v1856, %v1854
    %v2067 = vpack.c.b16 %v1859, %v1857
    %v2068 = vpack.c.b16 %v1860, %v1858
    %v2069 = vpack.c.b16 %v1863, %v1861
    %v2070 = vpack.c.b16 %v1864, %v1862
    %v2071 = vpack.c.b16 %v1867, %v1865
    %v2072 = vpack.c.b16 %v1868, %v1866
    %v2073 = vpack.c.b16 %v1871, %v1869
    %v2074 = vpack.c.b16 %v1872, %v1870
    %v2075 = vpack.c.b16 %v1875, %v1873
    %v2076 = vpack.c.b16 %v1876, %v1874
    %v2077 = vpack.c.b16 %v1879, %v1877
    %v2078 = vpack.c.b16 %v1880, %v1878
    %v2079 = vpack.c.b16 %v1883, %v1881
    %v2080 = vpack.c.b16 %v1884, %v1882
    %v2081 = vpack.c.b16 %v1887, %v1885
    %v2082 = vpack.c.b16 %v1888, %v1886
    %v2083 = vpack.c.b16 %v1891, %v1889
    %v2084 = vpack.c.b16 %v1892, %v1890
    %v2085 = vpack.c.b16 %v1895, %v1893
    %v2086 = vpack.c.b16 %v1896, %v1894
    %v2087 = vpack.c.b16 %v1899, %v1897
    %v2088 = vpack.c.b16 %v1900, %v1898
    %v2089 = vpack.c.b16 %v1903, %v1901
    %v2090 = vpack.c.b16 %v1904, %v1902
    %v2091 = vpack.c.b16 %v1907, %v1905
    %v2092 = vpack.c.b16 %v1908, %v1906
    %v2093 = vpack.c.b16 %v1911, %v1909
    %v2094 = vpack.c.b16 %v1912, %v1910
    %v2095 = vpack.c.b16 %v1915, %v1913
    %v2096 = vpack.c.b16 %v1916, %v1914
    %v2097 = vpack.c.b16 %v1919, %v1917
    %v2098 = vpack.c.b16 %v1920, %v1918
    %v2099 = vpack.c.b16 %v1923, %v1921
    %v2100 = vpack.c.b16 %v1924, %v1922
    %v2101 = vpack.c.b16 %v1927, %v1925
    %v2102 = vpack.c.b16 %v1928, %v1926
    %v2103 = vpack.c.b16 %v1931, %v1929
    %v2104 = vpack.c.b16 %v1932, %v1930
    %v2105 = vpack.c.b16 %v1935, %v1933
    %v2106 = vpack.c.b16 %v1936, %v1934
    %v2107 = vpack.c.b16 %v1939, %v1937
    %v2108 = vpack.c.b16 %v1940, %v1938
    %v2109 = vpack.c.b16 %v1943, %v1941
    %v2110 = vpack.c.b16 %v1944, %v1942
    %v2111 = vpack.c.b16 %v1947, %v1945
    %v2112 = vpack.c.b16 %v1948, %v1946
    %v2113 = vpack.c.b16 %v1951, %v1949
    %v2114 = vpack.c.b16 %v1952, %v1950
    %v2115 = vpack.c.b16 %v1955, %v1953
    %v2116 = vpack.c.b16 %v1956, %v1954
    %v2117 = vpack.c.b16 %v1959, %v1957
    %v2118 = vpack.c.b16 %v1960, %v1958
    %v2119 = vpack.c.b16 %v1963, %v1961
    %v2120 = vpack.c.b16 %v1964, %v1962
    %v2121 = vpack.c.b16 %v1967, %v1965
    %v2122 = vpack.c.b16 %v1968, %v1966
    %v2123 = vpack.c.b16 %v1971, %v1969
    %v2124 = vpack.c.b16 %v1972, %v1970
    %v2125 = vpack.c.b16 %v1975, %v1973
    %v2126 = vpack.c.b16 %v1976, %v1974
    %v2127 = vpack.c.b16 %v1979, %v1977
    %v2128 = vpack.c.b16 %v1980, %v1978
    %v2129 = vpack.c.b16 %v1983, %v1981
    %v2130 = vpack.c.b16 %v1984, %v1982
    %v2131 = vpack.c.b16 %v1987, %v1985
    %v2132 = vpack.c.b16 %v1988, %v1986
    %v2133 = vpack.c.b16 %v1991, %v1989
    %v2134 = vpack.c.b16 %v1992, %v1990
    %v2135 = vpack.c.b16 %v1995, %v1993
    %v2136 = vpack.c.b16 %v1996, %v1994
    %v2137 = vpack.c.b16 %v1999, %v1997
    %v2138 = vpack.c.b16 %v2000, %v1998
    %v2139 = vpack.c.b16 %v2003, %v2001
    %v2140 = vpack.c.b16 %v2004, %v2002
    %v2141 = vpack.c.b16 %v2007, %v2005
    %v2142 = vpack.c.b16 %v2008, %v2006
    %v2143 = vpack.c.b16 %v2011, %v2009
    %v2144 = vpack.c.b16 %v2012, %v2010
    %v2145 = vpack.c.b16 %v2015, %v2013
    %v2146 = vpack.c.b16 %v2016, %v2014
    %v2147 = vpack.c.b16 %v2019, %v2017
    %v2148 = vpack.c.b16 %v2020, %v2018
    %2277 = vmatprep.subr.bf16.mxu0 %v2022
    %2278 = vmatpush1.bf16.msra.mxu0 %v2021
    %2279 = vmatprep.subr.bf16.mxu0 %v2024
    %2280 = vmatpush1.bf16.msra.mxu0 %v2023
    %2281 = vmatprep.subr.bf16.mxu0 %v2026
    %2282 = vmatpush1.bf16.msra.mxu0 %v2025
    %2283 = vmatprep.subr.bf16.mxu0 %v2028
    %2284 = vmatpush1.bf16.msra.mxu0 %v2027
    %2285 = vmatprep.subr.bf16.mxu0 %v2030
    %2286 = vmatpush1.bf16.msra.mxu0 %v2029
    %2287 = vmatprep.subr.bf16.mxu0 %v2032
    %2288 = vmatpush1.bf16.msra.mxu0 %v2031
    %2289 = vmatprep.subr.bf16.mxu0 %v2034
    %2290 = vmatpush1.bf16.msra.mxu0 %v2033
    %2291 = vmatprep.subr.bf16.mxu0 %v2036
    %2292 = vmatpush1.bf16.msra.mxu0 %v2035
    %2293 = vmatprep.subr.bf16.mxu0 %v2038
    %2294 = vmatpush1.bf16.msra.mxu0 %v2037
    %2295 = vmatprep.subr.bf16.mxu0 %v2040
    %2296 = vmatpush1.bf16.msra.mxu0 %v2039
    %2297 = vmatprep.subr.bf16.mxu0 %v2042
    %2298 = vmatpush1.bf16.msra.mxu0 %v2041
    %2299 = vmatprep.subr.bf16.mxu0 %v2044
    %2300 = vmatpush1.bf16.msra.mxu0 %v2043
    %2301 = vmatprep.subr.bf16.mxu0 %v2046
    %2302 = vmatpush1.bf16.msra.mxu0 %v2045
    %2303 = vmatprep.subr.bf16.mxu0 %v2048
    %2304 = vmatpush1.bf16.msra.mxu0 %v2047
    %2305 = vmatprep.subr.bf16.mxu0 %v2050
    %2306 = vmatpush1.bf16.msra.mxu0 %v2049
    %2307 = vmatprep.subr.bf16.mxu0 %v2052
    %2308 = vmatpush1.bf16.msra.mxu0 %v2051
    %2309 = vmatprep.mubr.bf16.mxu0 %v1490
    %2310 = vmatmul.mubr.bf16.gmra.mrb[0].mxu0 %v1489
    %v2311 = vpop.f32.mrb[0].mxu0
    %v2312 = vadd.f32 %v1630, %v2311
    %v2313 = vpop.f32.mrb[0].mxu0
    %v2314 = vadd.f32 %v1634, %v2313
    %v2315 = vpop.f32.mrb[0].mxu0
    %v2316 = vadd.f32 %v1630, %v2315
    %v2317 = vpop.f32.mrb[0].mxu0
    %v2318 = vadd.f32 %v1634, %v2317
    %2319 = vdwg.mxu0
    %2320 = vmatprep.subr.bf16.mxu0 %v2054
    %2321 = vmatpush1.bf16.msra.mxu0 %v2053
    %2322 = vmatprep.subr.bf16.mxu0 %v2056
    %2323 = vmatpush1.bf16.msra.mxu0 %v2055
    %2324 = vmatprep.subr.bf16.mxu0 %v2058
    %2325 = vmatpush1.bf16.msra.mxu0 %v2057
    %2326 = vmatprep.subr.bf16.mxu0 %v2060
    %2327 = vmatpush1.bf16.msra.mxu0 %v2059
    %2328 = vmatprep.subr.bf16.mxu0 %v2062
    %2329 = vmatpush1.bf16.msra.mxu0 %v2061
    %2330 = vmatprep.subr.bf16.mxu0 %v2064
    %2331 = vmatpush1.bf16.msra.mxu0 %v2063
    %2332 = vmatprep.subr.bf16.mxu0 %v2066
    %2333 = vmatpush1.bf16.msra.mxu0 %v2065
    %2334 = vmatprep.subr.bf16.mxu0 %v2068
    %2335 = vmatpush1.bf16.msra.mxu0 %v2067
    %2336 = vmatprep.subr.bf16.mxu0 %v2070
    %2337 = vmatpush1.bf16.msra.mxu0 %v2069
    %2338 = vmatprep.subr.bf16.mxu0 %v2072
    %2339 = vmatpush1.bf16.msra.mxu0 %v2071
    %2340 = vmatprep.subr.bf16.mxu0 %v2074
    %2341 = vmatpush1.bf16.msra.mxu0 %v2073
    %2342 = vmatprep.subr.bf16.mxu0 %v2076
    %2343 = vmatpush1.bf16.msra.mxu0 %v2075
    %2344 = vmatprep.subr.bf16.mxu0 %v2078
    %2345 = vmatpush1.bf16.msra.mxu0 %v2077
    %2346 = vmatprep.subr.bf16.mxu0 %v2080
    %2347 = vmatpush1.bf16.msra.mxu0 %v2079
    %2348 = vmatprep.subr.bf16.mxu0 %v2082
    %2349 = vmatpush1.bf16.msra.mxu0 %v2081
    %2350 = vmatprep.subr.bf16.mxu0 %v2084
    %2351 = vmatpush1.bf16.msra.mxu0 %v2083
    %2352 = vmatprep.mubr.bf16.mxu0 %v1492
    %2353 = vmatmul.mubr.bf16.gmra.mrb[0].mxu0 %v1491
    %v2354 = vpop.f32.mrb[0].mxu0
    %v2355 = vadd.f32 %v2312, %v2354
    %v2356 = vpop.f32.mrb[0].mxu0
    %v2357 = vadd.f32 %v2314, %v2356
    %v2358 = vpop.f32.mrb[0].mxu0
    %v2359 = vadd.f32 %v2316, %v2358
    %v2360 = vpop.f32.mrb[0].mxu0
    %v2361 = vadd.f32 %v2318, %v2360
    %2362 = vdwg.mxu0
    %2363 = vmatprep.subr.bf16.mxu0 %v2086
    %2364 = vmatpush1.bf16.msra.mxu0 %v2085
    %2365 = vmatprep.subr.bf16.mxu0 %v2088
    %2366 = vmatpush1.bf16.msra.mxu0 %v2087
    %2367 = vmatprep.subr.bf16.mxu0 %v2090
    %2368 = vmatpush1.bf16.msra.mxu0 %v2089
    %2369 = vmatprep.subr.bf16.mxu0 %v2092
    %2370 = vmatpush1.bf16.msra.mxu0 %v2091
    %2371 = vmatprep.subr.bf16.mxu0 %v2094
    %2372 = vmatpush1.bf16.msra.mxu0 %v2093
    %2373 = vmatprep.subr.bf16.mxu0 %v2096
    %2374 = vmatpush1.bf16.msra.mxu0 %v2095
    %2375 = vmatprep.subr.bf16.mxu0 %v2098
    %2376 = vmatpush1.bf16.msra.mxu0 %v2097
    %2377 = vmatprep.subr.bf16.mxu0 %v2100
    %2378 = vmatpush1.bf16.msra.mxu0 %v2099
    %2379 = vmatprep.subr.bf16.mxu0 %v2102
    %2380 = vmatpush1.bf16.msra.mxu0 %v2101
    %2381 = vmatprep.subr.bf16.mxu0 %v2104
    %2382 = vmatpush1.bf16.msra.mxu0 %v2103
    %2383 = vmatprep.subr.bf16.mxu0 %v2106
    %2384 = vmatpush1.bf16.msra.mxu0 %v2105
    %2385 = vmatprep.subr.bf16.mxu0 %v2108
    %2386 = vmatpush1.bf16.msra.mxu0 %v2107
    %2387 = vmatprep.subr.bf16.mxu0 %v2110
    %2388 = vmatpush1.bf16.msra.mxu0 %v2109
    %2389 = vmatprep.subr.bf16.mxu0 %v2112
    %2390 = vmatpush1.bf16.msra.mxu0 %v2111
    %2391 = vmatprep.subr.bf16.mxu0 %v2114
    %2392 = vmatpush1.bf16.msra.mxu0 %v2113
    %2393 = vmatprep.subr.bf16.mxu0 %v2116
    %2394 = vmatpush1.bf16.msra.mxu0 %v2115
    %2395 = vmatprep.mubr.bf16.mxu0 %v1494
    %2396 = vmatmul.mubr.bf16.gmra.mrb[0].mxu0 %v1493
    %v2397 = vpop.f32.mrb[0].mxu0
    %v2398 = vadd.f32 %v2355, %v2397
    %v2399 = vpop.f32.mrb[0].mxu0
    %v2400 = vadd.f32 %v2357, %v2399
    %v2401 = vpop.f32.mrb[0].mxu0
    %v2402 = vadd.f32 %v2359, %v2401
    %v2403 = vpop.f32.mrb[0].mxu0
    %v2404 = vadd.f32 %v2361, %v2403
    %2405 = vdwg.mxu0
    %2406 = vmatprep.subr.bf16.mxu0 %v2118
    %2407 = vmatpush1.bf16.msra.mxu0 %v2117
    %2408 = vmatprep.subr.bf16.mxu0 %v2120
    %2409 = vmatpush1.bf16.msra.mxu0 %v2119
    %2410 = vmatprep.subr.bf16.mxu0 %v2122
    %2411 = vmatpush1.bf16.msra.mxu0 %v2121
    %2412 = vmatprep.subr.bf16.mxu0 %v2124
    %2413 = vmatpush1.bf16.msra.mxu0 %v2123
    %2414 = vmatprep.subr.bf16.mxu0 %v2126
    %2415 = vmatpush1.bf16.msra.mxu0 %v2125
    %2416 = vmatprep.subr.bf16.mxu0 %v2128
    %2417 = vmatpush1.bf16.msra.mxu0 %v2127
    %2418 = vmatprep.subr.bf16.mxu0 %v2130
    %2419 = vmatpush1.bf16.msra.mxu0 %v2129
    %2420 = vmatprep.subr.bf16.mxu0 %v2132
    %2421 = vmatpush1.bf16.msra.mxu0 %v2131
    %2422 = vmatprep.subr.bf16.mxu0 %v2134
    %2423 = vmatpush1.bf16.msra.mxu0 %v2133
    %2424 = vmatprep.subr.bf16.mxu0 %v2136
    %2425 = vmatpush1.bf16.msra.mxu0 %v2135
    %2426 = vmatprep.subr.bf16.mxu0 %v2138
    %2427 = vmatpush1.bf16.msra.mxu0 %v2137
    %2428 = vmatprep.subr.bf16.mxu0 %v2140
    %2429 = vmatpush1.bf16.msra.mxu0 %v2139
    %2430 = vmatprep.subr.bf16.mxu0 %v2142
    %2431 = vmatpush1.bf16.msra.mxu0 %v2141
    %2432 = vmatprep.subr.bf16.mxu0 %v2144
    %2433 = vmatpush1.bf16.msra.mxu0 %v2143
    %2434 = vmatprep.subr.bf16.mxu0 %v2146
    %2435 = vmatpush1.bf16.msra.mxu0 %v2145
    %2436 = vmatprep.subr.bf16.mxu0 %v2148
    %2437 = vmatpush1.bf16.msra.mxu0 %v2147
    %2438 = vmatprep.mubr.bf16.mxu0 %v1496
    %2439 = vmatmul.mubr.bf16.gmra.mrb[0].mxu0 %v1495
    %v2440 = vpop.f32.mrb[0].mxu0
    %v2441 = vadd.f32 %v2398, %v2440
    %v2442 = vpop.f32.mrb[0].mxu0
    %v2443 = vadd.f32 %v2400, %v2442
    %v2444 = vpop.f32.mrb[0].mxu0
    %v2445 = vadd.f32 %v2402, %v2444
    %v2446 = vpop.f32.mrb[0].mxu0
    %v2447 = vadd.f32 %v2404, %v2446
    %2448 = vdwg.mxu0
    %v2449 = vpack.c.bf16 %v2445, %v2441
    %v2450 = vpack.c.bf16 %v2447, %v2443
    %v2453 = vunpack.c.l.b16 %v2449
    %v2454 = vunpack.c.l.b16 %v2450
    %v2455 = vunpack.c.h.b16 %v2449
    %v2456 = vunpack.c.h.b16 %v2450
    %v2457 = vpack.c.b16 %v2454, %v2453
    %v2458 = vpack.c.b16 %v2456, %v2455
    %2461 = vst [vmem:[#allocation11] sm:$0xff] %v2457
    %2462 = vst [vmem:[#allocation11 + $0x8] sm:$0xff] %v2458
    // Predicated region
    $region42: #{tpu_custom_call.1} parent=1 // pred_check
      _
    $region43: #{tpu_custom_call.1} parent=1 // pred_check_branch
      %2464 = sbr.rel (0) target = $region45
    $region44: #{tpu_custom_call.1} parent=1 // pred_region
      %s2466 = ssub.s32 256, 256
      %2467 = vsyncadd [#allocation4], %s2466
      %s2468 = sshll.u32 [#allocation11], 4
      %s2469 = int_to_ptr.vmem [resolvable:$true] %s2468
      %2474 = dma.vmem_to_hbm [thread:$0]  %s2469, 256, %s5, [#allocation4], 128, 128, 8
    $region45: #{tpu_custom_call.1} parent=1 // pred_fallthru
      _
    // Predicated region
    $region46: #{tpu_custom_call.1} parent=1 // pred_check
      _
    $region47: #{tpu_custom_call.1} parent=1 // pred_check_branch
      %2476 = sbr.rel (0) target = $region49
    $region48: #{tpu_custom_call.1} parent=1 // pred_region
      %2477 = dma.done [#allocation4], 256
    $region49: #{tpu_custom_call.1} parent=1 // pred_fallthru
      _
    %2478 = vsyncpa [#allocation3], 1
    %2479 = vsyncpa [#allocation6], 1
    %2480 = vsyncpa [#allocation9], 1
    %2481 = vsyncpa [#allocation4], 1

</llo_original>
